<compile_context>
chip_gen: v5e
topology: v5e:2x2
jax: 0.10.0
libtpu: 0.0.40
codegen_flags: <defaults>
</compile_context>

<pallas_src>
import jax
import jax.numpy as jnp
from jax.experimental import pallas as pl
from jax.experimental.pallas import tpu as pltpu

n_generator_feature = 16
noiseSize = 100
_BN_EPS = 1e-5

# (c_in, c_out, kernel, stride, padding, has_bn)
_LAYER_CFG = [
    (noiseSize, n_generator_feature * 8, 4, 1, 0, True),
    (n_generator_feature * 8, n_generator_feature * 4, 4, 2, 1, True),
    (n_generator_feature * 4, n_generator_feature * 2, 4, 2, 1, True),
    (n_generator_feature * 2, n_generator_feature, 4, 2, 1, True),
    (n_generator_feature, 3, 5, 3, 1, False),
]


def _round_up(x, m):
    return ((x + m - 1) // m) * m


# ------------------------------ Pallas kernels ------------------------------ #
def _gemm_kernel(x_ref, w_ref, o_ref):
    # (rows, K) @ (K, N) on the MXU, bf16 operands, f32 accumulation.
    acc = jnp.dot(x_ref[...].astype(jnp.bfloat16), w_ref[...],
                  preferred_element_type=jnp.float32)
    o_ref[...] = acc.astype(o_ref.dtype)


def _gemm_prologue_kernel(x_ref, w_ref, shift_ref, o_ref):
    # Previous layer's BatchNorm shift + ReLU fused as the matmul prologue.
    x = jnp.maximum(x_ref[...].astype(jnp.float32) + shift_ref[...], 0.0)
    acc = jnp.dot(x.astype(jnp.bfloat16), w_ref[...],
                  preferred_element_type=jnp.float32)
    o_ref[...] = acc.astype(o_ref.dtype)


def _tanh_kernel(x_ref, o_ref):
    o_ref[...] = jnp.tanh(x_ref[...])


# ------------------------------ matmul wrapper ------------------------------ #
def _fused_gemm(x2d, w, shift_row, out_dtype, rows_per_block):
    """(M, K) @ (K, N); optional fused shift+ReLU prologue on the input rows."""
    M, K = x2d.shape
    Kw, N = w.shape
    assert K == Kw and M % rows_per_block == 0
    grid = (M // rows_per_block,)

    in_specs = [
        pl.BlockSpec((rows_per_block, K), lambda i: (i, 0)),
        pl.BlockSpec((K, N), lambda i: (0, 0)),  # constant block index: DMA'd once
    ]
    args = [x2d, w]
    if shift_row is not None:
        in_specs.append(pl.BlockSpec((1, K), lambda i: (0, 0)))
        args.append(shift_row)
        kernel = _gemm_prologue_kernel
    else:
        kernel = _gemm_kernel

    return pl.pallas_call(
        kernel,
        out_shape=jax.ShapeDtypeStruct((M, N), out_dtype),
        grid=grid,
        in_specs=in_specs,
        out_specs=pl.BlockSpec((rows_per_block, N), lambda i: (i, 0)),
        compiler_params=pltpu.CompilerParams(dimension_semantics=("parallel",)),
    )(*args)


def _tanh_pallas(flat2d):
    return pl.pallas_call(
        _tanh_kernel,
        out_shape=jax.ShapeDtypeStruct(flat2d.shape, jnp.float32),
        grid=(1,),
        in_specs=[pl.BlockSpec(flat2d.shape, lambda i: (0, 0))],
        out_specs=pl.BlockSpec(flat2d.shape, lambda i: (0, 0)),
    )(flat2d)


# ------------------------ col2im (light XLA glue) ---------------------------- #
def _col2im_parity(cols, B, H, W, C, k, s, p):
    """Transposed-conv overlap-add, parity / sub-pixel formulation.

    `cols` rows are (b, h, w) raster ordered, columns ordered (kh, kw, co).
    Requires k - 2*p == s (true for every strided layer here), so the output is
    exactly (B, s*H, s*W, C).
    """
    assert k - 2 * p == s
    c = cols.reshape(B, H, W, k, k, C)

    def taps(par):
        # output index o = s*u + par gets kernel tap kk from input h = u + d,
        # d = (par + p - kk) / s, only when that is integral.
        out = []
        for kk in range(k):
            if (par + p - kk) % s == 0:
                out.append((kk, (par + p - kk) // s))
        return out

    def shifted(tap, dh, dw):
        # result[u, v] = tap[u + dh, v + dw], zero outside the input range.
        padded = jnp.pad(tap, ((0, 0),
                               (max(-dh, 0), max(dh, 0)),
                               (max(-dw, 0), max(dw, 0)),
                               (0, 0)))
        oh, ow = max(dh, 0), max(dw, 0)
        return padded[:, oh:oh + H, ow:ow + W, :]

    par_taps = [taps(q) for q in range(s)]
    planes = []
    for ph in range(s):
        row = []
        for pw in range(s):
            acc = None
            for kh, dh in par_taps[ph]:
                for kw, dw in par_taps[pw]:
                    t = shifted(c[:, :, :, kh, kw, :], dh, dw)
                    acc = t if acc is None else acc + t
            row.append(acc)
        planes.append(row)

    stacked = jnp.stack([jnp.stack(r, axis=0) for r in planes], axis=0)  # (s,s,B,H,W,C)
    out = jnp.transpose(stacked, (2, 3, 0, 4, 1, 5))                     # (B,H,s,W,s,C)
    return out.reshape(B, s * H, s * W, C)


# --------------------------------- params ----------------------------------- #
def init_params(key):
    params = []
    for cin, cout, k, _, _, _ in _LAYER_CFG:
        key, kw_, kg_, kb_ = jax.random.split(key, 4)
        w = 0.02 * jax.random.normal(kw_, (cin, cout, k, k), jnp.float32)
        gamma = 1.0 + 0.02 * jax.random.normal(kg_, (cout,), jnp.float32)
        beta = 0.01 * jax.random.normal(kb_, (cout,), jnp.float32)
        params.append((w, gamma, beta))
    return params


def prepare_params(params):
    """One-time weight/shift preparation (hoisted out of the forward pass).

    Per layer: eval-mode BN scale folded into the weight, weight laid out as
    (cin, (kh, kw, cout)) with the lane dim padded to a multiple of 128 where
    needed, cast to bf16; BN shift kept as an f32 (1, cout) row for the next
    layer's fused prologue.
    """
    prepared = []
    for idx, ((w, gamma, beta), (cin, cout, k, _, _, has_bn)) in enumerate(
            zip(params, _LAYER_CFG)):
        w2 = jnp.transpose(w, (0, 2, 3, 1)).reshape(cin, k * k * cout)
        if has_bn:
            scale = gamma / jnp.sqrt(1.0 + _BN_EPS)  # running_mean=0, running_var=1
            w2 = w2 * jnp.tile(scale, k * k)[None, :]
            shift = beta.astype(jnp.float32).reshape(1, cout)
        else:
            shift = None
        kp = 128 if idx == 0 else cin                 # only the tiny layer-1 K padded
        np_ = _round_up(k * k * cout, 128)            # lane-dense columns (layer 5)
        w2 = jnp.pad(w2, ((0, kp - cin), (0, np_ - k * k * cout))).astype(jnp.bfloat16)
        prepared.append((w2, shift))
    return prepared


# ------------------------------- NetGenerator -------------------------------- #
def net_generator_forward(x_nchw, prepared):
    B = x_nchw.shape[0]

    # ---- layer 1: ConvTranspose(100 -> 128, 4x4, s=1, p=0); col2im == reshape ----
    cin0, cout0, k0, _, _, _ = _LAYER_CFG[0]
    mp = _round_up(B, 8)
    x2d = x_nchw.reshape(B, cin0)
    x2d = jnp.pad(x2d, ((0, mp - B), (0, 128 - cin0)))            # (mp, 128) f32, tiny
    cols = _fused_gemm(x2d, prepared[0][0], None, jnp.bfloat16, rows_per_block=mp)
    y = cols[:B, :k0 * k0 * cout0].reshape(B, k0, k0, cout0)       # NHWC (B, 4, 4, 128)

    # ---- layers 2..5: fused [shift+ReLU -> matmul] + parity col2im ----
    for li in range(1, len(_LAYER_CFG)):
        cin, cout, k, s, p, has_bn = _LAYER_CFG[li]
        _, H, W, _ = y.shape
        out_dtype = jnp.bfloat16 if has_bn else jnp.float32        # pre-tanh stays f32
        cols = _fused_gemm(y.reshape(B * H * W, cin), prepared[li][0],
                           prepared[li - 1][1], out_dtype, rows_per_block=H * W)
        y = _col2im_parity(cols[:, :k * k * cout], B, H, W, cout, k, s, p)

    # ---- final Tanh on a lane-dense (B, 27648) view ----
    Bq, Ho, Wo, Cq = y.shape
    out = _tanh_pallas(y.reshape(Bq, Ho * Wo * Cq))
    return jnp.transpose(out.reshape(Bq, Ho, Wo, Cq), (0, 3, 1, 2))  # NCHW


if __name__ == "__main__":
    key = jax.random.PRNGKey(0)
    k_x, k_p = jax.random.split(key)
    params = init_params(k_p)
    prepared = prepare_params(params)   # hoisted: executes once, not per step

    # DCGAN generator input: (batch, noiseSize, 1, 1) in NCHW
    x = jax.random.normal(k_x, (2, noiseSize, 1, 1), jnp.float32)

    fwd = jax.jit(net_generator_forward)
    out = jax.block_until_ready(fwd(x, prepared))

    assert out.shape == (2, 3, 96, 96), out.shape
    assert out.dtype == jnp.float32
    assert bool(jnp.all(jnp.isfinite(out)))
    assert bool(jnp.all(jnp.abs(out) <= 1.0))   # tanh output range
    print("KERNEL_OK")
</pallas_src>

<mosaic_0001>
module attributes {stable_mosaic.version = 11 : i64} {
  func.func @_gemm_kernel(%arg0: i32, %arg1: memref<8x128xf32, #tpu.memory_space<vmem>>, %arg2: memref<128x2048xbf16, #tpu.memory_space<vmem>>, %arg3: memref<8x2048xbf16, #tpu.memory_space<vmem>>) attributes {dimension_semantics = [#tpu.dimension_semantics<parallel>], iteration_bounds = array<i64: 1>, scalar_prefetch = 0 : i64, scratch_operands = 0 : i64, tpu.core_type = #tpu.core_type<tc>, window_params = [{transform_indices = @transform_0, window_bounds = array<i64: 8, 128>}, {pipeline_mode = #tpu.pipeline_mode<synchronous>, transform_indices = @transform_1, window_bounds = array<i64: 128, 2048>}, {transform_indices = @transform_2, window_bounds = array<i64: 8, 2048>}]} {
    %c0 = arith.constant 0 : index
    %c0_0 = arith.constant 0 : index
    %0 = vector.load %arg1[%c0, %c0_0] : memref<8x128xf32, #tpu.memory_space<vmem>>, vector<8x128xf32>
    %1 = arith.truncf %0 : vector<8x128xf32> to vector<8x128xbf16>
    %c0_1 = arith.constant 0 : index
    %c0_2 = arith.constant 0 : index
    %2 = vector.load %arg2[%c0_1, %c0_2] : memref<128x2048xbf16, #tpu.memory_space<vmem>>, vector<128x2048xbf16>
    %cst = arith.constant dense<0.000000e+00> : vector<8x2048xf32>
    %3 = tpu.matmul %1, %2, %cst {dimension_numbers = #tpu.dot_dimension_numbers<[1], [0], [0], [1], [0, 0, 1, 1], [], []>} : vector<8x128xbf16>, vector<128x2048xbf16>, vector<8x2048xf32> -> vector<8x2048xf32>
    %4 = arith.truncf %3 : vector<8x2048xf32> to vector<8x2048xbf16>
    %c0_3 = arith.constant 0 : index
    %c0_4 = arith.constant 0 : index
    %5 = vector.load %arg3[%c0_3, %c0_4] : memref<8x2048xbf16, #tpu.memory_space<vmem>>, vector<8x2048xbf16>
    tpu.vector_store %arg3[%c0_3, %c0_4], %4 {strides = array<i32>} : memref<8x2048xbf16, #tpu.memory_space<vmem>>, vector<8x2048xbf16>,
    return
  }
  func.func @transform_0(%arg0: i32) -> (i32, i32) {
    %c0_i32 = arith.constant 0 : i32
    %c0_i32_0 = arith.constant 0 : i32
    return %arg0, %c0_i32 : i32, i32
  }
  func.func @transform_1(%arg0: i32) -> (i32, i32) {
    %c0_i32 = arith.constant 0 : i32
    %c0_i32_0 = arith.constant 0 : i32
    %c0_i32_1 = arith.constant 0 : i32
    return %c0_i32, %c0_i32_0 : i32, i32
  }
  func.func @transform_2(%arg0: i32) -> (i32, i32) {
    %c0_i32 = arith.constant 0 : i32
    %c0_i32_0 = arith.constant 0 : i32
    return %arg0, %c0_i32 : i32, i32
  }
}

module attributes {stable_mosaic.version = 11 : i64} {
  func.func @_gemm_prologue_kernel(%arg0: i32, %arg1: memref<16x128xbf16, #tpu.memory_space<vmem>>, %arg2: memref<128x1024xbf16, #tpu.memory_space<vmem>>, %arg3: memref<1x128xf32, #tpu.memory_space<vmem>>, %arg4: memref<16x1024xbf16, #tpu.memory_space<vmem>>) attributes {dimension_semantics = [#tpu.dimension_semantics<parallel>], iteration_bounds = array<i64: 2>, scalar_prefetch = 0 : i64, scratch_operands = 0 : i64, tpu.core_type = #tpu.core_type<tc>, window_params = [{transform_indices = @transform_0, window_bounds = array<i64: 16, 128>}, {pipeline_mode = #tpu.pipeline_mode<synchronous>, transform_indices = @transform_1, window_bounds = array<i64: 128, 1024>}, {pipeline_mode = #tpu.pipeline_mode<synchronous>, transform_indices = @transform_2, window_bounds = array<i64: 1, 128>}, {transform_indices = @transform_3, window_bounds = array<i64: 16, 1024>}]} {
    %c0 = arith.constant 0 : index
    %c0_0 = arith.constant 0 : index
    %0 = vector.load %arg1[%c0, %c0_0] : memref<16x128xbf16, #tpu.memory_space<vmem>>, vector<16x128xbf16>
    %1 = arith.extf %0 : vector<16x128xbf16> to vector<16x128xf32>
    %c0_1 = arith.constant 0 : index
    %c0_2 = arith.constant 0 : index
    %2 = vector.load %arg3[%c0_1, %c0_2] : memref<1x128xf32, #tpu.memory_space<vmem>>, vector<1x128xf32>
    %3 = vector.broadcast %2 : vector<1x128xf32> to vector<16x128xf32>
    %4 = arith.addf %1, %3 : vector<16x128xf32>
    %cst = arith.constant 0.000000e+00 : f32
    %5 = vector.broadcast %cst : f32 to vector<16x128xf32>
    %6 = arith.maximumf %4, %5 : vector<16x128xf32>
    %7 = arith.truncf %6 : vector<16x128xf32> to vector<16x128xbf16>
    %c0_3 = arith.constant 0 : index
    %c0_4 = arith.constant 0 : index
    %8 = vector.load %arg2[%c0_3, %c0_4] : memref<128x1024xbf16, #tpu.memory_space<vmem>>, vector<128x1024xbf16>
    %cst_5 = arith.constant dense<0.000000e+00> : vector<16x1024xf32>
    %9 = tpu.matmul %7, %8, %cst_5 {dimension_numbers = #tpu.dot_dimension_numbers<[1], [0], [0], [1], [0, 0, 1, 1], [], []>} : vector<16x128xbf16>, vector<128x1024xbf16>, vector<16x1024xf32> -> vector<16x1024xf32>
    %10 = arith.truncf %9 : vector<16x1024xf32> to vector<16x1024xbf16>
    %c0_6 = arith.constant 0 : index
    %c0_7 = arith.constant 0 : index
    %11 = vector.load %arg4[%c0_6, %c0_7] : memref<16x1024xbf16, #tpu.memory_space<vmem>>, vector<16x1024xbf16>
    tpu.vector_store %arg4[%c0_6, %c0_7], %10 {strides = array<i32>} : memref<16x1024xbf16, #tpu.memory_space<vmem>>, vector<16x1024xbf16>,
    return
  }
  func.func @transform_0(%arg0: i32) -> (i32, i32) {
    %c0_i32 = arith.constant 0 : i32
    %c0_i32_0 = arith.constant 0 : i32
    return %arg0, %c0_i32 : i32, i32
  }
  func.func @transform_1(%arg0: i32) -> (i32, i32) {
    %c0_i32 = arith.constant 0 : i32
    %c0_i32_0 = arith.constant 0 : i32
    %c0_i32_1 = arith.constant 0 : i32
    return %c0_i32, %c0_i32_0 : i32, i32
  }
  func.func @transform_2(%arg0: i32) -> (i32, i32) {
    %c0_i32 = arith.constant 0 : i32
    %c0_i32_0 = arith.constant 0 : i32
    %c0_i32_1 = arith.constant 0 : i32
    return %c0_i32, %c0_i32_0 : i32, i32
  }
  func.func @transform_3(%arg0: i32) -> (i32, i32) {
    %c0_i32 = arith.constant 0 : i32
    %c0_i32_0 = arith.constant 0 : i32
    return %arg0, %c0_i32 : i32, i32
  }
}

module attributes {stable_mosaic.version = 11 : i64} {
  func.func @_gemm_prologue_kernel(%arg0: i32, %arg1: memref<64x64xbf16, #tpu.memory_space<vmem>>, %arg2: memref<64x512xbf16, #tpu.memory_space<vmem>>, %arg3: memref<1x64xf32, #tpu.memory_space<vmem>>, %arg4: memref<64x512xbf16, #tpu.memory_space<vmem>>) attributes {dimension_semantics = [#tpu.dimension_semantics<parallel>], iteration_bounds = array<i64: 2>, scalar_prefetch = 0 : i64, scratch_operands = 0 : i64, tpu.core_type = #tpu.core_type<tc>, window_params = [{transform_indices = @transform_0, window_bounds = array<i64: 64, 64>}, {pipeline_mode = #tpu.pipeline_mode<synchronous>, transform_indices = @transform_1, window_bounds = array<i64: 64, 512>}, {pipeline_mode = #tpu.pipeline_mode<synchronous>, transform_indices = @transform_2, window_bounds = array<i64: 1, 64>}, {transform_indices = @transform_3, window_bounds = array<i64: 64, 512>}]} {
    %c0 = arith.constant 0 : index
    %c0_0 = arith.constant 0 : index
    %0 = vector.load %arg1[%c0, %c0_0] : memref<64x64xbf16, #tpu.memory_space<vmem>>, vector<64x64xbf16>
    %1 = arith.extf %0 : vector<64x64xbf16> to vector<64x64xf32>
    %c0_1 = arith.constant 0 : index
    %c0_2 = arith.constant 0 : index
    %2 = vector.load %arg3[%c0_1, %c0_2] : memref<1x64xf32, #tpu.memory_space<vmem>>, vector<1x64xf32>
    %3 = vector.broadcast %2 : vector<1x64xf32> to vector<64x64xf32>
    %4 = arith.addf %1, %3 : vector<64x64xf32>
    %cst = arith.constant 0.000000e+00 : f32
    %5 = vector.broadcast %cst : f32 to vector<64x64xf32>
    %6 = arith.maximumf %4, %5 : vector<64x64xf32>
    %7 = arith.truncf %6 : vector<64x64xf32> to vector<64x64xbf16>
    %c0_3 = arith.constant 0 : index
    %c0_4 = arith.constant 0 : index
    %8 = vector.load %arg2[%c0_3, %c0_4] : memref<64x512xbf16, #tpu.memory_space<vmem>>, vector<64x512xbf16>
    %cst_5 = arith.constant dense<0.000000e+00> : vector<64x512xf32>
    %9 = tpu.matmul %7, %8, %cst_5 {dimension_numbers = #tpu.dot_dimension_numbers<[1], [0], [0], [1], [0, 0, 1, 1], [], []>} : vector<64x64xbf16>, vector<64x512xbf16>, vector<64x512xf32> -> vector<64x512xf32>
    %10 = arith.truncf %9 : vector<64x512xf32> to vector<64x512xbf16>
    %c0_6 = arith.constant 0 : index
    %c0_7 = arith.constant 0 : index
    %11 = vector.load %arg4[%c0_6, %c0_7] : memref<64x512xbf16, #tpu.memory_space<vmem>>, vector<64x512xbf16>
    tpu.vector_store %arg4[%c0_6, %c0_7], %10 {strides = array<i32>} : memref<64x512xbf16, #tpu.memory_space<vmem>>, vector<64x512xbf16>,
    return
  }
  func.func @transform_0(%arg0: i32) -> (i32, i32) {
    %c0_i32 = arith.constant 0 : i32
    %c0_i32_0 = arith.constant 0 : i32
    return %arg0, %c0_i32 : i32, i32
  }
  func.func @transform_1(%arg0: i32) -> (i32, i32) {
    %c0_i32 = arith.constant 0 : i32
    %c0_i32_0 = arith.constant 0 : i32
    %c0_i32_1 = arith.constant 0 : i32
    return %c0_i32, %c0_i32_0 : i32, i32
  }
  func.func @transform_2(%arg0: i32) -> (i32, i32) {
    %c0_i32 = arith.constant 0 : i32
    %c0_i32_0 = arith.constant 0 : i32
    %c0_i32_1 = arith.constant 0 : i32
    return %c0_i32, %c0_i32_0 : i32, i32
  }
  func.func @transform_3(%arg0: i32) -> (i32, i32) {
    %c0_i32 = arith.constant 0 : i32
    %c0_i32_0 = arith.constant 0 : i32
    return %arg0, %c0_i32 : i32, i32
  }
}

module attributes {stable_mosaic.version = 11 : i64} {
  func.func @_gemm_prologue_kernel(%arg0: i32, %arg1: memref<256x32xbf16, #tpu.memory_space<vmem>>, %arg2: memref<32x256xbf16, #tpu.memory_space<vmem>>, %arg3: memref<1x32xf32, #tpu.memory_space<vmem>>, %arg4: memref<256x256xbf16, #tpu.memory_space<vmem>>) attributes {dimension_semantics = [#tpu.dimension_semantics<parallel>], iteration_bounds = array<i64: 2>, scalar_prefetch = 0 : i64, scratch_operands = 0 : i64, tpu.core_type = #tpu.core_type<tc>, window_params = [{transform_indices = @transform_0, window_bounds = array<i64: 256, 32>}, {pipeline_mode = #tpu.pipeline_mode<synchronous>, transform_indices = @transform_1, window_bounds = array<i64: 32, 256>}, {pipeline_mode = #tpu.pipeline_mode<synchronous>, transform_indices = @transform_2, window_bounds = array<i64: 1, 32>}, {transform_indices = @transform_3, window_bounds = array<i64: 256, 256>}]} {
    %c0 = arith.constant 0 : index
    %c0_0 = arith.constant 0 : index
    %0 = vector.load %arg1[%c0, %c0_0] : memref<256x32xbf16, #tpu.memory_space<vmem>>, vector<256x32xbf16>
    %1 = arith.extf %0 : vector<256x32xbf16> to vector<256x32xf32>
    %c0_1 = arith.constant 0 : index
    %c0_2 = arith.constant 0 : index
    %2 = vector.load %arg3[%c0_1, %c0_2] : memref<1x32xf32, #tpu.memory_space<vmem>>, vector<1x32xf32>
    %3 = vector.broadcast %2 : vector<1x32xf32> to vector<256x32xf32>
    %4 = arith.addf %1, %3 : vector<256x32xf32>
    %cst = arith.constant 0.000000e+00 : f32
    %5 = vector.broadcast %cst : f32 to vector<256x32xf32>
    %6 = arith.maximumf %4, %5 : vector<256x32xf32>
    %7 = arith.truncf %6 : vector<256x32xf32> to vector<256x32xbf16>
    %c0_3 = arith.constant 0 : index
    %c0_4 = arith.constant 0 : index
    %8 = vector.load %arg2[%c0_3, %c0_4] : memref<32x256xbf16, #tpu.memory_space<vmem>>, vector<32x256xbf16>
    %cst_5 = arith.constant dense<0.000000e+00> : vector<256x256xf32>
    %9 = tpu.matmul %7, %8, %cst_5 {dimension_numbers = #tpu.dot_dimension_numbers<[1], [0], [0], [1], [0, 0, 1, 1], [], []>} : vector<256x32xbf16>, vector<32x256xbf16>, vector<256x256xf32> -> vector<256x256xf32>
    %10 = arith.truncf %9 : vector<256x256xf32> to vector<256x256xbf16>
    %c0_6 = arith.constant 0 : index
    %c0_7 = arith.constant 0 : index
    %11 = vector.load %arg4[%c0_6, %c0_7] : memref<256x256xbf16, #tpu.memory_space<vmem>>, vector<256x256xbf16>
    tpu.vector_store %arg4[%c0_6, %c0_7], %10 {strides = array<i32>} : memref<256x256xbf16, #tpu.memory_space<vmem>>, vector<256x256xbf16>,
    return
  }
  func.func @transform_0(%arg0: i32) -> (i32, i32) {
    %c0_i32 = arith.constant 0 : i32
    %c0_i32_0 = arith.constant 0 : i32
    return %arg0, %c0_i32 : i32, i32
  }
  func.func @transform_1(%arg0: i32) -> (i32, i32) {
    %c0_i32 = arith.constant 0 : i32
    %c0_i32_0 = arith.constant 0 : i32
    %c0_i32_1 = arith.constant 0 : i32
    return %c0_i32, %c0_i32_0 : i32, i32
  }
  func.func @transform_2(%arg0: i32) -> (i32, i32) {
    %c0_i32 = arith.constant 0 : i32
    %c0_i32_0 = arith.constant 0 : i32
    %c0_i32_1 = arith.constant 0 : i32
    return %c0_i32, %c0_i32_0 : i32, i32
  }
  func.func @transform_3(%arg0: i32) -> (i32, i32) {
    %c0_i32 = arith.constant 0 : i32
    %c0_i32_0 = arith.constant 0 : i32
    return %arg0, %c0_i32 : i32, i32
  }
}

module attributes {stable_mosaic.version = 11 : i64} {
  func.func @_gemm_prologue_kernel(%arg0: i32, %arg1: memref<1024x16xbf16, #tpu.memory_space<vmem>>, %arg2: memref<16x128xbf16, #tpu.memory_space<vmem>>, %arg3: memref<1x16xf32, #tpu.memory_space<vmem>>, %arg4: memref<1024x128xf32, #tpu.memory_space<vmem>>) attributes {dimension_semantics = [#tpu.dimension_semantics<parallel>], iteration_bounds = array<i64: 2>, scalar_prefetch = 0 : i64, scratch_operands = 0 : i64, tpu.core_type = #tpu.core_type<tc>, window_params = [{transform_indices = @transform_0, window_bounds = array<i64: 1024, 16>}, {pipeline_mode = #tpu.pipeline_mode<synchronous>, transform_indices = @transform_1, window_bounds = array<i64: 16, 128>}, {pipeline_mode = #tpu.pipeline_mode<synchronous>, transform_indices = @transform_2, window_bounds = array<i64: 1, 16>}, {transform_indices = @transform_3, window_bounds = array<i64: 1024, 128>}]} {
    %c0 = arith.constant 0 : index
    %c0_0 = arith.constant 0 : index
    %0 = vector.load %arg1[%c0, %c0_0] : memref<1024x16xbf16, #tpu.memory_space<vmem>>, vector<1024x16xbf16>
    %1 = arith.extf %0 : vector<1024x16xbf16> to vector<1024x16xf32>
    %c0_1 = arith.constant 0 : index
    %c0_2 = arith.constant 0 : index
    %2 = vector.load %arg3[%c0_1, %c0_2] : memref<1x16xf32, #tpu.memory_space<vmem>>, vector<1x16xf32>
    %3 = vector.broadcast %2 : vector<1x16xf32> to vector<1024x16xf32>
    %4 = arith.addf %1, %3 : vector<1024x16xf32>
    %cst = arith.constant 0.000000e+00 : f32
    %5 = vector.broadcast %cst : f32 to vector<1024x16xf32>
    %6 = arith.maximumf %4, %5 : vector<1024x16xf32>
    %7 = arith.truncf %6 : vector<1024x16xf32> to vector<1024x16xbf16>
    %c0_3 = arith.constant 0 : index
    %c0_4 = arith.constant 0 : index
    %8 = vector.load %arg2[%c0_3, %c0_4] : memref<16x128xbf16, #tpu.memory_space<vmem>>, vector<16x128xbf16>
    %cst_5 = arith.constant dense<0.000000e+00> : vector<1024x128xf32>
    %9 = tpu.matmul %7, %8, %cst_5 {dimension_numbers = #tpu.dot_dimension_numbers<[1], [0], [0], [1], [0, 0, 1, 1], [], []>} : vector<1024x16xbf16>, vector<16x128xbf16>, vector<1024x128xf32> -> vector<1024x128xf32>
    %c0_6 = arith.constant 0 : index
    %c0_7 = arith.constant 0 : index
    %10 = vector.load %arg4[%c0_6, %c0_7] : memref<1024x128xf32, #tpu.memory_space<vmem>>, vector<1024x128xf32>
    tpu.vector_store %arg4[%c0_6, %c0_7], %9 {strides = array<i32>} : memref<1024x128xf32, #tpu.memory_space<vmem>>, vector<1024x128xf32>,
    return
  }
  func.func @transform_0(%arg0: i32) -> (i32, i32) {
    %c0_i32 = arith.constant 0 : i32
    %c0_i32_0 = arith.constant 0 : i32
    return %arg0, %c0_i32 : i32, i32
  }
  func.func @transform_1(%arg0: i32) -> (i32, i32) {
    %c0_i32 = arith.constant 0 : i32
    %c0_i32_0 = arith.constant 0 : i32
    %c0_i32_1 = arith.constant 0 : i32
    return %c0_i32, %c0_i32_0 : i32, i32
  }
  func.func @transform_2(%arg0: i32) -> (i32, i32) {
    %c0_i32 = arith.constant 0 : i32
    %c0_i32_0 = arith.constant 0 : i32
    %c0_i32_1 = arith.constant 0 : i32
    return %c0_i32, %c0_i32_0 : i32, i32
  }
  func.func @transform_3(%arg0: i32) -> (i32, i32) {
    %c0_i32 = arith.constant 0 : i32
    %c0_i32_0 = arith.constant 0 : i32
    return %arg0, %c0_i32 : i32, i32
  }
}

module attributes {stable_mosaic.version = 11 : i64} {
  func.func @_tanh_kernel(%arg0: i32, %arg1: memref<2x27648xf32, #tpu.memory_space<vmem>>, %arg2: memref<2x27648xf32, #tpu.memory_space<vmem>>) attributes {dimension_semantics = [#tpu.dimension_semantics<arbitrary>], iteration_bounds = array<i64: 1>, scalar_prefetch = 0 : i64, scratch_operands = 0 : i64, tpu.core_type = #tpu.core_type<tc>, window_params = [{pipeline_mode = #tpu.pipeline_mode<synchronous>, transform_indices = @transform_0, window_bounds = array<i64: 2, 27648>}, {pipeline_mode = #tpu.pipeline_mode<synchronous>, transform_indices = @transform_1, window_bounds = array<i64: 2, 27648>}]} {
    %c0 = arith.constant 0 : index
    %c0_0 = arith.constant 0 : index
    %0 = vector.load %arg1[%c0, %c0_0] : memref<2x27648xf32, #tpu.memory_space<vmem>>, vector<2x27648xf32>
    %1 = math.tanh %0 : vector<2x27648xf32>
    %c0_1 = arith.constant 0 : index
    %c0_2 = arith.constant 0 : index
    %2 = vector.load %arg2[%c0_1, %c0_2] : memref<2x27648xf32, #tpu.memory_space<vmem>>, vector<2x27648xf32>
    tpu.vector_store %arg2[%c0_1, %c0_2], %1 {strides = array<i32>} : memref<2x27648xf32, #tpu.memory_space<vmem>>, vector<2x27648xf32>,
    return
  }
  func.func @transform_0(%arg0: i32) -> (i32, i32) {
    %c0_i32 = arith.constant 0 : i32
    %c0_i32_0 = arith.constant 0 : i32
    %c0_i32_1 = arith.constant 0 : i32
    return %c0_i32, %c0_i32_0 : i32, i32
  }
  func.func @transform_1(%arg0: i32) -> (i32, i32) {
    %c0_i32 = arith.constant 0 : i32
    %c0_i32_0 = arith.constant 0 : i32
    %c0_i32_1 = arith.constant 0 : i32
    return %c0_i32, %c0_i32_0 : i32, i32
  }
}

</mosaic_0001>

<llo_original>
// kernel: net_generator_forward.7
$region0: #{net_generator_forward.7}
  #allocation0 [shape = 'u32[]', space=smem, size = 0x4, offset = 0x4, fixed_abs, tag = 'smem constant byte address 0x4 - core index']
  #allocation1 [shape = 'u32[72,128]{1,0:T(1,128)}', space=vmem, size = 0x9000, scoped, tag = 'internal scratch']
  %s0 = inlined_call_operand.vmem [shape: bf16[32,128], index: 0, kind: input, shape index: {}]
  %s1 = inlined_call_operand.hbm [shape: bf16[128,1024], index: 1, kind: input, shape index: {}]
  %s2 = inlined_call_operand.hbm [shape: f32[1,128], index: 2, kind: input, shape index: {}]
  %s3 = inlined_call_operand.vmem [shape: bf16[32,1024], index: 3, kind: output, shape index: {}]
  %s4 = sld [smem:[#allocation0]]
  $region53: #{net_generator_forward.7} parent=0
    _
  %s6 = ssub.s32 1, %s4
  %s7 = scalar_select 0, %s6, %s4
  $region1: #{net_generator_forward.7} parent=0
    #allocation2 [shape = 'u8[262144]{0}', space=vmem, size = 0x40000, scoped, tag = 'input window, operand 1, single buffered']
    #allocation3 [shape = 's32[2]{0}', space=sflag, size = 0x8, scoped, tag = 'scoped memory for net_generator_forward.7']
    #allocation4 [shape = 'u8[512]{0}', space=vmem, size = 0x400, scoped, tag = 'input window, operand 2, single buffered']
    #allocation5 [shape = 's32[1]{0}', space=sflag, size = 0x4, scoped, tag = 'scoped memory for net_generator_forward.7']
    %8 = vsyncpa [#allocation3], 0
    %9 = vsyncpa [#allocation5], 0
    loop: start=0, step=1, limit=4
    $region2: #{net_generator_forward.7} parent=1 // loop_pre_header
      _
    $region3: #{net_generator_forward.7} parent=1 // loop_header
      %s11 = sphi 0, %s15
      %p12 = scmp.ge.s32.totalorder %s11, 4
      %s21 = sphi 0, %s23
      %s24 = sphi 0, %s21
      %s25 = sphi 0, %s24
      %s41 = sphi 0, %s25
      %s45 = sphi 0, %s45
      %s47 = sphi 0, %s45
      %s48 = sphi 0, %s47
      %s62 = sphi 0, %s48
      %s66 = sphi 0, %s66
      %s68 = sphi 0, %s66
      %s69 = sphi 0, %s68
      %s83 = sphi 0, %s69
      %s89 = sphi 0, %s91
      %s92 = sphi 0, %s89
      %s93 = sphi 0, %s92
      %s109 = sphi 0, %s93
    $region4: #{net_generator_forward.7} parent=1 // loop_header_branch
      %14 = sbr.rel (%p12) target = $region8
    $region5: #{net_generator_forward.7} parent=1 // loop_body
      %s16 = ssub.s32 %s11, 1
      %s17 = ssub.s32 %s11, 2
      %s18 = sadd.s32 %s11, 1
      %s19 = ssub.s32 %s11, %s18
      %p20 = scmp.eq.s32.totalorder %s19, 0
      %s22 = sadd.s32 %s21, 1
      %s23 = scalar_select %p20, %s21, %s22
      %p26 = pneg %p20
      %p27 = scmp.eq.s32.totalorder %s11, 1
      %p28 = por %p26, %p27
      %p29 = scmp.ne.s32.totalorder %s21, %s24
      %p30 = scmp.eq.s32.totalorder %s11, 0
      %p31 = por %p29, %p30
      %p32 = scmp.ne.s32.totalorder %s21, %s24
      %p33 = scmp.eq.s32.totalorder %s16, 1
      %p34 = por %p32, %p33
      %p35 = scmp.ne.s32.totalorder %s24, %s25
      %p36 = scmp.eq.s32.totalorder %s16, 0
      %p37 = por %p35, %p36
      %p38 = scmp.ne.s32.totalorder %s24, %s25
      %p39 = scmp.eq.s32.totalorder %s17, 1
      %p40 = por %p38, %p39
      %p42 = scmp.ne.s32.totalorder %s25, %s41
      %p43 = scmp.eq.s32.totalorder %s17, 0
      %p44 = por %p42, %p43
      %s46 = sadd.s32 %s45, 1
      %p49 = scmp.eq.s32.totalorder %s11, 1
      %p50 = scmp.ne.s32.totalorder %s45, %s47
      %p51 = scmp.eq.s32.totalorder %s11, 0
      %p52 = por %p50, %p51
      %p53 = scmp.ne.s32.totalorder %s45, %s47
      %p54 = scmp.eq.s32.totalorder %s16, 1
      %p55 = por %p53, %p54
      %p56 = scmp.ne.s32.totalorder %s47, %s48
      %p57 = scmp.eq.s32.totalorder %s16, 0
      %p58 = por %p56, %p57
      %p59 = scmp.ne.s32.totalorder %s47, %s48
      %p60 = scmp.eq.s32.totalorder %s17, 1
      %p61 = por %p59, %p60
      %p63 = scmp.ne.s32.totalorder %s48, %s62
      %p64 = scmp.eq.s32.totalorder %s17, 0
      %p65 = por %p63, %p64
      %s67 = sadd.s32 %s66, 1
      %p70 = scmp.eq.s32.totalorder %s11, 1
      %p71 = scmp.ne.s32.totalorder %s66, %s68
      %p72 = scmp.eq.s32.totalorder %s11, 0
      %p73 = por %p71, %p72
      %p74 = scmp.ne.s32.totalorder %s66, %s68
      %p75 = scmp.eq.s32.totalorder %s16, 1
      %p76 = por %p74, %p75
      %p77 = scmp.ne.s32.totalorder %s68, %s69
      %p78 = scmp.eq.s32.totalorder %s16, 0
      %p79 = por %p77, %p78
      %p80 = scmp.ne.s32.totalorder %s68, %s69
      %p81 = scmp.eq.s32.totalorder %s17, 1
      %p82 = por %p80, %p81
      %p84 = scmp.ne.s32.totalorder %s69, %s83
      %p85 = scmp.eq.s32.totalorder %s17, 0
      %p86 = por %p84, %p85
      %s87 = ssub.s32 %s11, %s18
      %p88 = scmp.eq.s32.totalorder %s87, 0
      %s90 = sadd.s32 %s89, 1
      %s91 = scalar_select %p88, %s89, %s90
      %p94 = pneg %p88
      %p95 = scmp.eq.s32.totalorder %s11, 1
      %p96 = por %p94, %p95
      %p97 = scmp.ne.s32.totalorder %s89, %s92
      %p98 = scmp.eq.s32.totalorder %s11, 0
      %p99 = por %p97, %p98
      %p100 = scmp.ne.s32.totalorder %s89, %s92
      %p101 = scmp.eq.s32.totalorder %s16, 1
      %p102 = por %p100, %p101
      %p103 = scmp.ne.s32.totalorder %s92, %s93
      %p104 = scmp.eq.s32.totalorder %s16, 0
      %p105 = por %p103, %p104
      %p106 = scmp.ne.s32.totalorder %s92, %s93
      %p107 = scmp.eq.s32.totalorder %s17, 1
      %p108 = por %p106, %p107
      %p110 = scmp.ne.s32.totalorder %s93, %s109
      %p111 = scmp.eq.s32.totalorder %s17, 0
      %p112 = por %p110, %p111
      %p113 = scmp.le.s32.totalorder 1, %s11
      %p114 = scmp.lt.s32.totalorder %s11, 3
      %p115 = pnand %p113, %p114
      %p116 = pneg %p115
      // Predicated region
      $region9: #{net_generator_forward.7} parent=5 // pred_check
        _
      $region10: #{net_generator_forward.7} parent=5 // pred_check_branch
        %118 = sbr.rel (%p115) target = $region12
      $region11: #{net_generator_forward.7} parent=5 // pred_region
        %s119 = ssub.s32 %s11, 1
        // Predicated region
        $region13: #{net_generator_forward.7} parent=11 // pred_check
          %p120 = pneg %p58
        $region14: #{net_generator_forward.7} parent=11 // pred_check_branch
          %122 = sbr.rel (%p120) target = $region16
        $region15: #{net_generator_forward.7} parent=11 // pred_region
          %124 = vsyncadd [#allocation3], 0
          %s125 = sshll.u32 %s1, 4
          %s126 = int_to_ptr.hbm [resolvable:$true] %s125
          %s127 = sshll.u32 [#allocation2], 4
          %s128 = int_to_ptr.vmem [resolvable:$true] %s127
          %133 = dma.hbm_to_vmem [thread:$0]  %s126, 8192, %s128, [#allocation3], 512, 512, 32
        $region16: #{net_generator_forward.7} parent=11 // pred_fallthru
          _
        // Predicated region
        $region17: #{net_generator_forward.7} parent=11 // pred_check
          %p134 = pneg %p79
        $region18: #{net_generator_forward.7} parent=11 // pred_check_branch
          %136 = sbr.rel (%p134) target = $region20
        $region19: #{net_generator_forward.7} parent=11 // pred_region
          %138 = vsyncadd [#allocation5], 0
          %s140 = sshll.u32 %s2, 4
          %s141 = int_to_ptr.hbm [resolvable:$true] %s140
          %s142 = sshll.u32 [#allocation4], 4
          %s143 = int_to_ptr.vmem [resolvable:$true] %s142
          %145 = dma.hbm_to_vmem [thread:$0]  %s141, 16, %s143, [#allocation5]
        $region20: #{net_generator_forward.7} parent=11 // pred_fallthru
          _
      $region12: #{net_generator_forward.7} parent=5 // pred_fallthru
        _
      %p146 = scmp.lt.s32.totalorder %s11, 2
      // Predicated region
      $region21: #{net_generator_forward.7} parent=5 // pred_check
        %p147 = pneg %p146
      $region22: #{net_generator_forward.7} parent=5 // pred_check_branch
        %149 = sbr.rel (%p147) target = $region24
      $region23: #{net_generator_forward.7} parent=5 // pred_region
        // Predicated region
        $region25: #{net_generator_forward.7} parent=23 // pred_check
          %p150 = pneg %p31
        $region26: #{net_generator_forward.7} parent=23 // pred_check_branch
          %152 = sbr.rel (%p150) target = $region28
        $region27: #{net_generator_forward.7} parent=23 // pred_region
          %s153 = smul.u32 2, %s11
          %p154 = scmp.lt.s32.totalorder %s153, 3
          %s155 = scalar_select %p154, %s153, 3
          %s156 = smul.addr %s155, 4
          %s157 = scalar_lea.vmem %s0, %s156
          %s158 = smul.u32 2, %s11
        $region28: #{net_generator_forward.7} parent=23 // pred_fallthru
          _
      $region24: #{net_generator_forward.7} parent=5 // pred_fallthru
        _
      %p159 = scmp.le.s32.totalorder 1, %s11
      %p160 = scmp.lt.s32.totalorder %s11, 3
      %p161 = pnand %p159, %p160
      %p162 = pneg %p161
      // Predicated region
      $region29: #{net_generator_forward.7} parent=5 // pred_check
        _
      $region30: #{net_generator_forward.7} parent=5 // pred_check_branch
        %164 = sbr.rel (%p161) target = $region32
      $region31: #{net_generator_forward.7} parent=5 // pred_region
        %s165 = ssub.s32 %s11, 1
        // Predicated region
        $region33: #{net_generator_forward.7} parent=31 // pred_check
          %p166 = pneg %p58
        $region34: #{net_generator_forward.7} parent=31 // pred_check_branch
          %168 = sbr.rel (%p166) target = $region36
        $region35: #{net_generator_forward.7} parent=31 // pred_region
          %170 = dma.done [#allocation3], 8192
        $region36: #{net_generator_forward.7} parent=31 // pred_fallthru
          _
        // Predicated region
        $region37: #{net_generator_forward.7} parent=31 // pred_check
          %p171 = pneg %p79
        $region38: #{net_generator_forward.7} parent=31 // pred_check_branch
          %173 = sbr.rel (%p171) target = $region40
        $region39: #{net_generator_forward.7} parent=31 // pred_region
          %175 = dma.done [#allocation5], 16
        $region40: #{net_generator_forward.7} parent=31 // pred_fallthru
          _
        %s176 = smul.u32 2, %s16
        %p177 = scmp.lt.s32.totalorder %s176, 3
        %s178 = scalar_select %p177, %s176, 3
        %s179 = smul.addr %s178, 4
        %s180 = scalar_lea.vmem %s0, %s179
        %p181 = pneg %p37
        %p182 = pneg %p34
        %p183 = pneg %p58
        %p184 = pneg %p55
        %p185 = pneg %p79
        %p186 = pneg %p76
        %p187 = pneg %p105
        %p188 = pneg %p102
        %s189 = smul.u32 2, %s16
        %p190 = scmp.lt.s32.totalorder %s189, 3
        %s191 = scalar_select %p190, %s189, 3
        %s192 = smul.addr %s191, 8
        %s193 = smul.addr %s192, 4
        %s194 = scalar_lea.vmem %s3, %s193
        %s195 = smul.u32 2, %s16
        %p196 = scmp.lt.s32.totalorder %s195, 3
        %s197 = scalar_select %p196, %s195, 3
        %s198 = smul.addr %s197, 4
        %s199 = scalar_lea.vmem %s0, %s198
        %s200 = smul.u32 2, %s16
        %s201 = smul.u32 2, %s16
        %p202 = scmp.lt.s32.totalorder %s201, 3
        %s203 = scalar_select %p202, %s201, 3
        %s204 = smul.addr %s203, 8
        %s205 = smul.addr %s204, 4
        %s206 = scalar_lea.vmem %s3, %s205
        %s207 = smul.u32 2, %s16
        %v208 = vld [vmem:[%s199] sm:$0xf]
        %v209 = vld [vmem:[%s199 + $0x4] sm:$0xf]
        %v210 = vunpack.c.l.bf16 %v208
        %v211 = vunpack.c.l.bf16 %v209
        %v212 = vld [vmem:[#allocation4] sm:$0x1]
        %v214 = vperm.slane %v212, 0
        %v216 = vadd.f32 %v210, %v214
        %v217 = vadd.f32 %v211, %v214
        %v218 = vmax.f32 %v216, 0.0
        %v219 = vmax.f32 %v217, 0.0
        %v220 = vpack.c.bf16 %v219, %v218
        %v221 = vld [vmem:[#allocation2] sm:$0xff]
        %v222 = vld [vmem:[#allocation2 + $0x8] sm:$0xff]
        %v223 = vld [vmem:[#allocation2 + $0x10] sm:$0xff]
        %v224 = vld [vmem:[#allocation2 + $0x18] sm:$0xff]
        %v225 = vld [vmem:[#allocation2 + $0x20] sm:$0xff]
        %v226 = vld [vmem:[#allocation2 + $0x28] sm:$0xff]
        %v227 = vld [vmem:[#allocation2 + $0x30] sm:$0xff]
        %v228 = vld [vmem:[#allocation2 + $0x38] sm:$0xff]
        %v229 = vld [vmem:[#allocation2 + $0x40] sm:$0xff]
        %v230 = vld [vmem:[#allocation2 + $0x48] sm:$0xff]
        %v231 = vld [vmem:[#allocation2 + $0x50] sm:$0xff]
        %v232 = vld [vmem:[#allocation2 + $0x58] sm:$0xff]
        %v233 = vld [vmem:[#allocation2 + $0x60] sm:$0xff]
        %v234 = vld [vmem:[#allocation2 + $0x68] sm:$0xff]
        %v235 = vld [vmem:[#allocation2 + $0x70] sm:$0xff]
        %v236 = vld [vmem:[#allocation2 + $0x78] sm:$0xff]
        %v237 = vld [vmem:[#allocation2 + $0x80] sm:$0xff]
        %v238 = vld [vmem:[#allocation2 + $0x88] sm:$0xff]
        %v239 = vld [vmem:[#allocation2 + $0x90] sm:$0xff]
        %v240 = vld [vmem:[#allocation2 + $0x98] sm:$0xff]
        %v241 = vld [vmem:[#allocation2 + $0xa0] sm:$0xff]
        %v242 = vld [vmem:[#allocation2 + $0xa8] sm:$0xff]
        %v243 = vld [vmem:[#allocation2 + $0xb0] sm:$0xff]
        %v244 = vld [vmem:[#allocation2 + $0xb8] sm:$0xff]
        %v245 = vld [vmem:[#allocation2 + $0xc0] sm:$0xff]
        %v246 = vld [vmem:[#allocation2 + $0xc8] sm:$0xff]
        %v247 = vld [vmem:[#allocation2 + $0xd0] sm:$0xff]
        %v248 = vld [vmem:[#allocation2 + $0xd8] sm:$0xff]
        %v249 = vld [vmem:[#allocation2 + $0xe0] sm:$0xff]
        %v250 = vld [vmem:[#allocation2 + $0xe8] sm:$0xff]
        %v251 = vld [vmem:[#allocation2 + $0xf0] sm:$0xff]
        %v252 = vld [vmem:[#allocation2 + $0xf8] sm:$0xff]
        %v253 = vld [vmem:[#allocation2 + $0x100] sm:$0xff]
        %v254 = vld [vmem:[#allocation2 + $0x108] sm:$0xff]
        %v255 = vld [vmem:[#allocation2 + $0x110] sm:$0xff]
        %v256 = vld [vmem:[#allocation2 + $0x118] sm:$0xff]
        %v257 = vld [vmem:[#allocation2 + $0x120] sm:$0xff]
        %v258 = vld [vmem:[#allocation2 + $0x128] sm:$0xff]
        %v259 = vld [vmem:[#allocation2 + $0x130] sm:$0xff]
        %v260 = vld [vmem:[#allocation2 + $0x138] sm:$0xff]
        %v261 = vld [vmem:[#allocation2 + $0x140] sm:$0xff]
        %v262 = vld [vmem:[#allocation2 + $0x148] sm:$0xff]
        %v263 = vld [vmem:[#allocation2 + $0x150] sm:$0xff]
        %v264 = vld [vmem:[#allocation2 + $0x158] sm:$0xff]
        %v265 = vld [vmem:[#allocation2 + $0x160] sm:$0xff]
        %v266 = vld [vmem:[#allocation2 + $0x168] sm:$0xff]
        %v267 = vld [vmem:[#allocation2 + $0x170] sm:$0xff]
        %v268 = vld [vmem:[#allocation2 + $0x178] sm:$0xff]
        %v269 = vld [vmem:[#allocation2 + $0x180] sm:$0xff]
        %v270 = vld [vmem:[#allocation2 + $0x188] sm:$0xff]
        %v271 = vld [vmem:[#allocation2 + $0x190] sm:$0xff]
        %v272 = vld [vmem:[#allocation2 + $0x198] sm:$0xff]
        %v273 = vld [vmem:[#allocation2 + $0x1a0] sm:$0xff]
        %v274 = vld [vmem:[#allocation2 + $0x1a8] sm:$0xff]
        %v275 = vld [vmem:[#allocation2 + $0x1b0] sm:$0xff]
        %v276 = vld [vmem:[#allocation2 + $0x1b8] sm:$0xff]
        %v277 = vld [vmem:[#allocation2 + $0x1c0] sm:$0xff]
        %v278 = vld [vmem:[#allocation2 + $0x1c8] sm:$0xff]
        %v279 = vld [vmem:[#allocation2 + $0x1d0] sm:$0xff]
        %v280 = vld [vmem:[#allocation2 + $0x1d8] sm:$0xff]
        %v281 = vld [vmem:[#allocation2 + $0x1e0] sm:$0xff]
        %v282 = vld [vmem:[#allocation2 + $0x1e8] sm:$0xff]
        %v283 = vld [vmem:[#allocation2 + $0x1f0] sm:$0xff]
        %v284 = vld [vmem:[#allocation2 + $0x1f8] sm:$0xff]
        %v349 = vunpack.c.l.b16 %v221
        %v350 = vunpack.c.h.b16 %v221
        %v351 = vunpack.c.l.b16 %v222
        %v352 = vunpack.c.h.b16 %v222
        %v353 = vunpack.c.l.b16 %v223
        %v354 = vunpack.c.h.b16 %v223
        %v355 = vunpack.c.l.b16 %v224
        %v356 = vunpack.c.h.b16 %v224
        %v357 = vunpack.c.l.b16 %v225
        %v358 = vunpack.c.h.b16 %v225
        %v359 = vunpack.c.l.b16 %v226
        %v360 = vunpack.c.h.b16 %v226
        %v361 = vunpack.c.l.b16 %v227
        %v362 = vunpack.c.h.b16 %v227
        %v363 = vunpack.c.l.b16 %v228
        %v364 = vunpack.c.h.b16 %v228
        %v365 = vunpack.c.l.b16 %v229
        %v366 = vunpack.c.h.b16 %v229
        %v367 = vunpack.c.l.b16 %v230
        %v368 = vunpack.c.h.b16 %v230
        %v369 = vunpack.c.l.b16 %v231
        %v370 = vunpack.c.h.b16 %v231
        %v371 = vunpack.c.l.b16 %v232
        %v372 = vunpack.c.h.b16 %v232
        %v373 = vunpack.c.l.b16 %v233
        %v374 = vunpack.c.h.b16 %v233
        %v375 = vunpack.c.l.b16 %v234
        %v376 = vunpack.c.h.b16 %v234
        %v377 = vunpack.c.l.b16 %v235
        %v378 = vunpack.c.h.b16 %v235
        %v379 = vunpack.c.l.b16 %v236
        %v380 = vunpack.c.h.b16 %v236
        %v381 = vunpack.c.l.b16 %v237
        %v382 = vunpack.c.h.b16 %v237
        %v383 = vunpack.c.l.b16 %v238
        %v384 = vunpack.c.h.b16 %v238
        %v385 = vunpack.c.l.b16 %v239
        %v386 = vunpack.c.h.b16 %v239
        %v387 = vunpack.c.l.b16 %v240
        %v388 = vunpack.c.h.b16 %v240
        %v389 = vunpack.c.l.b16 %v241
        %v390 = vunpack.c.h.b16 %v241
        %v391 = vunpack.c.l.b16 %v242
        %v392 = vunpack.c.h.b16 %v242
        %v393 = vunpack.c.l.b16 %v243
        %v394 = vunpack.c.h.b16 %v243
        %v395 = vunpack.c.l.b16 %v244
        %v396 = vunpack.c.h.b16 %v244
        %v397 = vunpack.c.l.b16 %v245
        %v398 = vunpack.c.h.b16 %v245
        %v399 = vunpack.c.l.b16 %v246
        %v400 = vunpack.c.h.b16 %v246
        %v401 = vunpack.c.l.b16 %v247
        %v402 = vunpack.c.h.b16 %v247
        %v403 = vunpack.c.l.b16 %v248
        %v404 = vunpack.c.h.b16 %v248
        %v405 = vunpack.c.l.b16 %v249
        %v406 = vunpack.c.h.b16 %v249
        %v407 = vunpack.c.l.b16 %v250
        %v408 = vunpack.c.h.b16 %v250
        %v409 = vunpack.c.l.b16 %v251
        %v410 = vunpack.c.h.b16 %v251
        %v411 = vunpack.c.l.b16 %v252
        %v412 = vunpack.c.h.b16 %v252
        %v413 = vunpack.c.l.b16 %v253
        %v414 = vunpack.c.h.b16 %v253
        %v415 = vunpack.c.l.b16 %v254
        %v416 = vunpack.c.h.b16 %v254
        %v417 = vunpack.c.l.b16 %v255
        %v418 = vunpack.c.h.b16 %v255
        %v419 = vunpack.c.l.b16 %v256
        %v420 = vunpack.c.h.b16 %v256
        %v421 = vunpack.c.l.b16 %v257
        %v422 = vunpack.c.h.b16 %v257
        %v423 = vunpack.c.l.b16 %v258
        %v424 = vunpack.c.h.b16 %v258
        %v425 = vunpack.c.l.b16 %v259
        %v426 = vunpack.c.h.b16 %v259
        %v427 = vunpack.c.l.b16 %v260
        %v428 = vunpack.c.h.b16 %v260
        %v429 = vunpack.c.l.b16 %v261
        %v430 = vunpack.c.h.b16 %v261
        %v431 = vunpack.c.l.b16 %v262
        %v432 = vunpack.c.h.b16 %v262
        %v433 = vunpack.c.l.b16 %v263
        %v434 = vunpack.c.h.b16 %v263
        %v435 = vunpack.c.l.b16 %v264
        %v436 = vunpack.c.h.b16 %v264
        %v437 = vunpack.c.l.b16 %v265
        %v438 = vunpack.c.h.b16 %v265
        %v439 = vunpack.c.l.b16 %v266
        %v440 = vunpack.c.h.b16 %v266
        %v441 = vunpack.c.l.b16 %v267
        %v442 = vunpack.c.h.b16 %v267
        %v443 = vunpack.c.l.b16 %v268
        %v444 = vunpack.c.h.b16 %v268
        %v445 = vunpack.c.l.b16 %v269
        %v446 = vunpack.c.h.b16 %v269
        %v447 = vunpack.c.l.b16 %v270
        %v448 = vunpack.c.h.b16 %v270
        %v449 = vunpack.c.l.b16 %v271
        %v450 = vunpack.c.h.b16 %v271
        %v451 = vunpack.c.l.b16 %v272
        %v452 = vunpack.c.h.b16 %v272
        %v453 = vunpack.c.l.b16 %v273
        %v454 = vunpack.c.h.b16 %v273
        %v455 = vunpack.c.l.b16 %v274
        %v456 = vunpack.c.h.b16 %v274
        %v457 = vunpack.c.l.b16 %v275
        %v458 = vunpack.c.h.b16 %v275
        %v459 = vunpack.c.l.b16 %v276
        %v460 = vunpack.c.h.b16 %v276
        %v461 = vunpack.c.l.b16 %v277
        %v462 = vunpack.c.h.b16 %v277
        %v463 = vunpack.c.l.b16 %v278
        %v464 = vunpack.c.h.b16 %v278
        %v465 = vunpack.c.l.b16 %v279
        %v466 = vunpack.c.h.b16 %v279
        %v467 = vunpack.c.l.b16 %v280
        %v468 = vunpack.c.h.b16 %v280
        %v469 = vunpack.c.l.b16 %v281
        %v470 = vunpack.c.h.b16 %v281
        %v471 = vunpack.c.l.b16 %v282
        %v472 = vunpack.c.h.b16 %v282
        %v473 = vunpack.c.l.b16 %v283
        %v474 = vunpack.c.h.b16 %v283
        %v475 = vunpack.c.l.b16 %v284
        %v476 = vunpack.c.h.b16 %v284
        %v477 = vpack.c.b16 %v357, %v349
        %v478 = vpack.c.b16 %v358, %v350
        %v479 = vpack.c.b16 %v359, %v351
        %v480 = vpack.c.b16 %v360, %v352
        %v481 = vpack.c.b16 %v361, %v353
        %v482 = vpack.c.b16 %v362, %v354
        %v483 = vpack.c.b16 %v363, %v355
        %v484 = vpack.c.b16 %v364, %v356
        %v485 = vpack.c.b16 %v373, %v365
        %v486 = vpack.c.b16 %v374, %v366
        %v487 = vpack.c.b16 %v375, %v367
        %v488 = vpack.c.b16 %v376, %v368
        %v489 = vpack.c.b16 %v377, %v369
        %v490 = vpack.c.b16 %v378, %v370
        %v491 = vpack.c.b16 %v379, %v371
        %v492 = vpack.c.b16 %v380, %v372
        %v493 = vpack.c.b16 %v389, %v381
        %v494 = vpack.c.b16 %v390, %v382
        %v495 = vpack.c.b16 %v391, %v383
        %v496 = vpack.c.b16 %v392, %v384
        %v497 = vpack.c.b16 %v393, %v385
        %v498 = vpack.c.b16 %v394, %v386
        %v499 = vpack.c.b16 %v395, %v387
        %v500 = vpack.c.b16 %v396, %v388
        %v501 = vpack.c.b16 %v405, %v397
        %v502 = vpack.c.b16 %v406, %v398
        %v503 = vpack.c.b16 %v407, %v399
        %v504 = vpack.c.b16 %v408, %v400
        %v505 = vpack.c.b16 %v409, %v401
        %v506 = vpack.c.b16 %v410, %v402
        %v507 = vpack.c.b16 %v411, %v403
        %v508 = vpack.c.b16 %v412, %v404
        %v509 = vpack.c.b16 %v421, %v413
        %v510 = vpack.c.b16 %v422, %v414
        %v511 = vpack.c.b16 %v423, %v415
        %v512 = vpack.c.b16 %v424, %v416
        %v513 = vpack.c.b16 %v425, %v417
        %v514 = vpack.c.b16 %v426, %v418
        %v515 = vpack.c.b16 %v427, %v419
        %v516 = vpack.c.b16 %v428, %v420
        %v517 = vpack.c.b16 %v437, %v429
        %v518 = vpack.c.b16 %v438, %v430
        %v519 = vpack.c.b16 %v439, %v431
        %v520 = vpack.c.b16 %v440, %v432
        %v521 = vpack.c.b16 %v441, %v433
        %v522 = vpack.c.b16 %v442, %v434
        %v523 = vpack.c.b16 %v443, %v435
        %v524 = vpack.c.b16 %v444, %v436
        %v525 = vpack.c.b16 %v453, %v445
        %v526 = vpack.c.b16 %v454, %v446
        %v527 = vpack.c.b16 %v455, %v447
        %v528 = vpack.c.b16 %v456, %v448
        %v529 = vpack.c.b16 %v457, %v449
        %v530 = vpack.c.b16 %v458, %v450
        %v531 = vpack.c.b16 %v459, %v451
        %v532 = vpack.c.b16 %v460, %v452
        %v533 = vpack.c.b16 %v469, %v461
        %v534 = vpack.c.b16 %v470, %v462
        %v535 = vpack.c.b16 %v471, %v463
        %v536 = vpack.c.b16 %v472, %v464
        %v537 = vpack.c.b16 %v473, %v465
        %v538 = vpack.c.b16 %v474, %v466
        %v539 = vpack.c.b16 %v475, %v467
        %v540 = vpack.c.b16 %v476, %v468
        %605 = vmatpush.bf16.msra.mxu0 %v533
        %606 = vmatpush.bf16.msra.mxu0 %v525
        %607 = vmatpush.bf16.msra.mxu0 %v517
        %608 = vmatpush.bf16.msra.mxu0 %v509
        %609 = vmatpush.bf16.msra.mxu0 %v501
        %610 = vmatpush.bf16.msra.mxu0 %v493
        %611 = vmatpush.bf16.msra.mxu0 %v485
        %612 = vmatpush.bf16.msra.mxu0 %v477
        %613 = vmatmul.bf16.gmra.mxu0 %v220
        %v614 = vpop.f32.mrf.mxu0
        %v615 = vadd.f32 0.0, %v614
        %v616 = vpop.f32.mrf.mxu0
        %v617 = vadd.f32 0.0, %v616
        %618 = vdwg.mxu0
        %619 = vmatpush.bf16.msra.mxu0 %v534
        %620 = vmatpush.bf16.msra.mxu0 %v526
        %621 = vmatpush.bf16.msra.mxu0 %v518
        %622 = vmatpush.bf16.msra.mxu0 %v510
        %623 = vmatpush.bf16.msra.mxu0 %v502
        %624 = vmatpush.bf16.msra.mxu0 %v494
        %625 = vmatpush.bf16.msra.mxu0 %v486
        %626 = vmatpush.bf16.msra.mxu0 %v478
        %627 = vmatmul.bf16.gmra.mxu0 %v220
        %v628 = vpop.f32.mrf.mxu0
        %v629 = vadd.f32 0.0, %v628
        %v630 = vpop.f32.mrf.mxu0
        %v631 = vadd.f32 0.0, %v630
        %632 = vdwg.mxu0
        %633 = vmatpush.bf16.msra.mxu0 %v535
        %634 = vmatpush.bf16.msra.mxu0 %v527
        %635 = vmatpush.bf16.msra.mxu0 %v519
        %636 = vmatpush.bf16.msra.mxu0 %v511
        %637 = vmatpush.bf16.msra.mxu0 %v503
        %638 = vmatpush.bf16.msra.mxu0 %v495
        %639 = vmatpush.bf16.msra.mxu0 %v487
        %640 = vmatpush.bf16.msra.mxu0 %v479
        %641 = vmatmul.bf16.gmra.mxu0 %v220
        %v642 = vpop.f32.mrf.mxu0
        %v643 = vadd.f32 0.0, %v642
        %v644 = vpop.f32.mrf.mxu0
        %v645 = vadd.f32 0.0, %v644
        %646 = vdwg.mxu0
        %647 = vmatpush.bf16.msra.mxu0 %v536
        %648 = vmatpush.bf16.msra.mxu0 %v528
        %649 = vmatpush.bf16.msra.mxu0 %v520
        %650 = vmatpush.bf16.msra.mxu0 %v512
        %651 = vmatpush.bf16.msra.mxu0 %v504
        %652 = vmatpush.bf16.msra.mxu0 %v496
        %653 = vmatpush.bf16.msra.mxu0 %v488
        %654 = vmatpush.bf16.msra.mxu0 %v480
        %655 = vmatmul.bf16.gmra.mxu0 %v220
        %v656 = vpop.f32.mrf.mxu0
        %v657 = vadd.f32 0.0, %v656
        %v658 = vpop.f32.mrf.mxu0
        %v659 = vadd.f32 0.0, %v658
        %660 = vdwg.mxu0
        %661 = vmatpush.bf16.msra.mxu0 %v537
        %662 = vmatpush.bf16.msra.mxu0 %v529
        %663 = vmatpush.bf16.msra.mxu0 %v521
        %664 = vmatpush.bf16.msra.mxu0 %v513
        %665 = vmatpush.bf16.msra.mxu0 %v505
        %666 = vmatpush.bf16.msra.mxu0 %v497
        %667 = vmatpush.bf16.msra.mxu0 %v489
        %668 = vmatpush.bf16.msra.mxu0 %v481
        %669 = vmatmul.bf16.gmra.mxu0 %v220
        %v670 = vpop.f32.mrf.mxu0
        %v671 = vadd.f32 0.0, %v670
        %v672 = vpop.f32.mrf.mxu0
        %v673 = vadd.f32 0.0, %v672
        %674 = vdwg.mxu0
        %675 = vmatpush.bf16.msra.mxu0 %v538
        %676 = vmatpush.bf16.msra.mxu0 %v530
        %677 = vmatpush.bf16.msra.mxu0 %v522
        %678 = vmatpush.bf16.msra.mxu0 %v514
        %679 = vmatpush.bf16.msra.mxu0 %v506
        %680 = vmatpush.bf16.msra.mxu0 %v498
        %681 = vmatpush.bf16.msra.mxu0 %v490
        %682 = vmatpush.bf16.msra.mxu0 %v482
        %683 = vmatmul.bf16.gmra.mxu0 %v220
        %v684 = vpop.f32.mrf.mxu0
        %v685 = vadd.f32 0.0, %v684
        %v686 = vpop.f32.mrf.mxu0
        %v687 = vadd.f32 0.0, %v686
        %688 = vdwg.mxu0
        %689 = vmatpush.bf16.msra.mxu0 %v539
        %690 = vmatpush.bf16.msra.mxu0 %v531
        %691 = vmatpush.bf16.msra.mxu0 %v523
        %692 = vmatpush.bf16.msra.mxu0 %v515
        %693 = vmatpush.bf16.msra.mxu0 %v507
        %694 = vmatpush.bf16.msra.mxu0 %v499
        %695 = vmatpush.bf16.msra.mxu0 %v491
        %696 = vmatpush.bf16.msra.mxu0 %v483
        %697 = vmatmul.bf16.gmra.mxu0 %v220
        %v698 = vpop.f32.mrf.mxu0
        %v699 = vadd.f32 0.0, %v698
        %v700 = vpop.f32.mrf.mxu0
        %v701 = vadd.f32 0.0, %v700
        %702 = vdwg.mxu0
        %703 = vmatpush.bf16.msra.mxu0 %v540
        %704 = vmatpush.bf16.msra.mxu0 %v532
        %705 = vmatpush.bf16.msra.mxu0 %v524
        %706 = vmatpush.bf16.msra.mxu0 %v516
        %707 = vmatpush.bf16.msra.mxu0 %v508
        %708 = vmatpush.bf16.msra.mxu0 %v500
        %709 = vmatpush.bf16.msra.mxu0 %v492
        %710 = vmatpush.bf16.msra.mxu0 %v484
        %711 = vmatmul.bf16.gmra.mxu0 %v220
        %v712 = vpop.f32.mrf.mxu0
        %v713 = vadd.f32 0.0, %v712
        %v714 = vpop.f32.mrf.mxu0
        %v715 = vadd.f32 0.0, %v714
        %716 = vdwg.mxu0
        %v717 = vpack.c.bf16 %v629, %v615
        %v718 = vpack.c.bf16 %v657, %v643
        %v719 = vpack.c.bf16 %v685, %v671
        %v720 = vpack.c.bf16 %v713, %v699
        %v721 = vpack.c.bf16 %v631, %v617
        %v722 = vpack.c.bf16 %v659, %v645
        %v723 = vpack.c.bf16 %v687, %v673
        %v724 = vpack.c.bf16 %v715, %v701
        %725 = vst [vmem:[%s206] sm:$0xff] %v717
        %726 = vst [vmem:[%s206 + $0x8] sm:$0xff] %v718
        %727 = vst [vmem:[%s206 + $0x10] sm:$0xff] %v719
        %728 = vst [vmem:[%s206 + $0x18] sm:$0xff] %v720
        %729 = vst [vmem:[%s206 + $0x20] sm:$0xff] %v721
        %730 = vst [vmem:[%s206 + $0x28] sm:$0xff] %v722
        %731 = vst [vmem:[%s206 + $0x30] sm:$0xff] %v723
        %732 = vst [vmem:[%s206 + $0x38] sm:$0xff] %v724
        %s733 = smul.u32 2, %s16
        %p734 = scmp.lt.s32.totalorder %s733, 3
        %s735 = scalar_select %p734, %s733, 3
        %s736 = smul.addr %s735, 8
        %s737 = smul.addr %s736, 4
        %s738 = scalar_lea.vmem %s3, %s737
        // Predicated region
        $region41: #{net_generator_forward.7} parent=31 // pred_check
          %p739 = pneg %p102
        $region42: #{net_generator_forward.7} parent=31 // pred_check_branch
          %741 = sbr.rel (%p739) target = $region44
        $region43: #{net_generator_forward.7} parent=31 // pred_region
          %s742 = smul.u32 2, %s16
        $region44: #{net_generator_forward.7} parent=31 // pred_fallthru
          _
      $region32: #{net_generator_forward.7} parent=5 // pred_fallthru
        _
      %p743 = scmp.le.s32.totalorder 2, %s11
      // Predicated region
      $region45: #{net_generator_forward.7} parent=5 // pred_check
        %p744 = pneg %p743
      $region46: #{net_generator_forward.7} parent=5 // pred_check_branch
        %746 = sbr.rel (%p744) target = $region48
      $region47: #{net_generator_forward.7} parent=5 // pred_region
        %s747 = ssub.s32 %s11, 2
        // Predicated region
        $region49: #{net_generator_forward.7} parent=47 // pred_check
          %p748 = pneg %p108
        $region50: #{net_generator_forward.7} parent=47 // pred_check_branch
          %750 = sbr.rel (%p748) target = $region52
        $region51: #{net_generator_forward.7} parent=47 // pred_region
          %s751 = smul.u32 2, %s17
          %p752 = scmp.lt.s32.totalorder %s751, 3
          %s753 = scalar_select %p752, %s751, 3
          %s754 = smul.addr %s753, 8
          %s755 = smul.addr %s754, 4
          %s756 = scalar_lea.vmem %s3, %s755
        $region52: #{net_generator_forward.7} parent=47 // pred_fallthru
          _
      $region48: #{net_generator_forward.7} parent=5 // pred_fallthru
        _
    $region6: #{net_generator_forward.7} parent=1 // loop_footer
      %s15 = sadd.s32 1, %s11
    $region7: #{net_generator_forward.7} parent=1 // loop_footer_branch
      %10 = sbr.rel target = $region3
    $region8: #{net_generator_forward.7} parent=1 // loop_exit
      _
    %757 = vsyncpa [#allocation3], 1
    %s758 = scalar_lea.sflag [#allocation3], 1
    %759 = vsyncpa %s758, 1
    %760 = vsyncpa [#allocation5], 1

// kernel: net_generator_forward.6
$region0: #{net_generator_forward.6}
  #allocation0 [shape = 'u32[]', space=smem, size = 0x4, offset = 0x4, fixed_abs, tag = 'smem constant byte address 0x4 - core index']
  #allocation1 [shape = 'u32[72,128]{1,0:T(1,128)}', space=vmem, size = 0x9000, scoped, tag = 'internal scratch']
  %s0 = inlined_call_operand.vmem [shape: f32[8,128], index: 0, kind: input, shape index: {}]
  %s1 = inlined_call_operand.hbm [shape: bf16[128,2048], index: 1, kind: input, shape index: {}]
  %s2 = inlined_call_operand.vmem [shape: bf16[8,2048], index: 2, kind: output, shape index: {}]
  %s3 = sld [smem:[#allocation0]]
  $region22: #{net_generator_forward.6} parent=0
    _
  %s5 = ssub.s32 1, %s3
  %s6 = scalar_select 0, %s5, %s3
  $region1: #{net_generator_forward.6} parent=0
    #allocation2 [shape = 'u8[524288]{0}', space=vmem, size = 0x80000, scoped, tag = 'input window, operand 1, single buffered']
    #allocation3 [shape = 's32[1]{0}', space=sflag, size = 0x4, scoped, tag = 'scoped memory for net_generator_forward.6']
    %7 = vsyncpa [#allocation3], 0
    // Predicated region
    $region2: #{net_generator_forward.6} parent=1 // pred_check
      _
    $region3: #{net_generator_forward.6} parent=1 // pred_check_branch
      %9 = sbr.rel (0) target = $region5
    $region4: #{net_generator_forward.6} parent=1 // pred_region
      _
    $region5: #{net_generator_forward.6} parent=1 // pred_fallthru
      _
    // Predicated region
    $region6: #{net_generator_forward.6} parent=1 // pred_check
      _
    $region7: #{net_generator_forward.6} parent=1 // pred_check_branch
      %11 = sbr.rel (0) target = $region9
    $region8: #{net_generator_forward.6} parent=1 // pred_region
      %13 = vsyncadd [#allocation3], 0
      %s14 = sshll.u32 %s1, 4
      %s15 = int_to_ptr.hbm [resolvable:$true] %s14
      %s16 = sshll.u32 [#allocation2], 4
      %s17 = int_to_ptr.vmem [resolvable:$true] %s16
      %22 = dma.hbm_to_vmem [thread:$0]  %s15, 16384, %s17, [#allocation3], 1024, 1024, 64
    $region9: #{net_generator_forward.6} parent=1 // pred_fallthru
      _
    // Predicated region
    $region10: #{net_generator_forward.6} parent=1 // pred_check
      _
    $region11: #{net_generator_forward.6} parent=1 // pred_check_branch
      %24 = sbr.rel (0) target = $region13
    $region12: #{net_generator_forward.6} parent=1 // pred_region
      %26 = dma.done [#allocation3], 16384
    $region13: #{net_generator_forward.6} parent=1 // pred_fallthru
      _
    %v27 = vld [vmem:[%s0] sm:$0xff]
    %v28 = vpack.c.bf16 %v27, %v27
    %v29 = vld [vmem:[#allocation2] sm:$0xff]
    %v30 = vld [vmem:[#allocation2 + $0x8] sm:$0xff]
    %v31 = vld [vmem:[#allocation2 + $0x10] sm:$0xff]
    %v32 = vld [vmem:[#allocation2 + $0x18] sm:$0xff]
    %v33 = vld [vmem:[#allocation2 + $0x20] sm:$0xff]
    %v34 = vld [vmem:[#allocation2 + $0x28] sm:$0xff]
    %v35 = vld [vmem:[#allocation2 + $0x30] sm:$0xff]
    %v36 = vld [vmem:[#allocation2 + $0x38] sm:$0xff]
    %v37 = vld [vmem:[#allocation2 + $0x40] sm:$0xff]
    %v38 = vld [vmem:[#allocation2 + $0x48] sm:$0xff]
    %v39 = vld [vmem:[#allocation2 + $0x50] sm:$0xff]
    %v40 = vld [vmem:[#allocation2 + $0x58] sm:$0xff]
    %v41 = vld [vmem:[#allocation2 + $0x60] sm:$0xff]
    %v42 = vld [vmem:[#allocation2 + $0x68] sm:$0xff]
    %v43 = vld [vmem:[#allocation2 + $0x70] sm:$0xff]
    %v44 = vld [vmem:[#allocation2 + $0x78] sm:$0xff]
    %v45 = vld [vmem:[#allocation2 + $0x80] sm:$0xff]
    %v46 = vld [vmem:[#allocation2 + $0x88] sm:$0xff]
    %v47 = vld [vmem:[#allocation2 + $0x90] sm:$0xff]
    %v48 = vld [vmem:[#allocation2 + $0x98] sm:$0xff]
    %v49 = vld [vmem:[#allocation2 + $0xa0] sm:$0xff]
    %v50 = vld [vmem:[#allocation2 + $0xa8] sm:$0xff]
    %v51 = vld [vmem:[#allocation2 + $0xb0] sm:$0xff]
    %v52 = vld [vmem:[#allocation2 + $0xb8] sm:$0xff]
    %v53 = vld [vmem:[#allocation2 + $0xc0] sm:$0xff]
    %v54 = vld [vmem:[#allocation2 + $0xc8] sm:$0xff]
    %v55 = vld [vmem:[#allocation2 + $0xd0] sm:$0xff]
    %v56 = vld [vmem:[#allocation2 + $0xd8] sm:$0xff]
    %v57 = vld [vmem:[#allocation2 + $0xe0] sm:$0xff]
    %v58 = vld [vmem:[#allocation2 + $0xe8] sm:$0xff]
    %v59 = vld [vmem:[#allocation2 + $0xf0] sm:$0xff]
    %v60 = vld [vmem:[#allocation2 + $0xf8] sm:$0xff]
    %v61 = vld [vmem:[#allocation2 + $0x100] sm:$0xff]
    %v62 = vld [vmem:[#allocation2 + $0x108] sm:$0xff]
    %v63 = vld [vmem:[#allocation2 + $0x110] sm:$0xff]
    %v64 = vld [vmem:[#allocation2 + $0x118] sm:$0xff]
    %v65 = vld [vmem:[#allocation2 + $0x120] sm:$0xff]
    %v66 = vld [vmem:[#allocation2 + $0x128] sm:$0xff]
    %v67 = vld [vmem:[#allocation2 + $0x130] sm:$0xff]
    %v68 = vld [vmem:[#allocation2 + $0x138] sm:$0xff]
    %v69 = vld [vmem:[#allocation2 + $0x140] sm:$0xff]
    %v70 = vld [vmem:[#allocation2 + $0x148] sm:$0xff]
    %v71 = vld [vmem:[#allocation2 + $0x150] sm:$0xff]
    %v72 = vld [vmem:[#allocation2 + $0x158] sm:$0xff]
    %v73 = vld [vmem:[#allocation2 + $0x160] sm:$0xff]
    %v74 = vld [vmem:[#allocation2 + $0x168] sm:$0xff]
    %v75 = vld [vmem:[#allocation2 + $0x170] sm:$0xff]
    %v76 = vld [vmem:[#allocation2 + $0x178] sm:$0xff]
    %v77 = vld [vmem:[#allocation2 + $0x180] sm:$0xff]
    %v78 = vld [vmem:[#allocation2 + $0x188] sm:$0xff]
    %v79 = vld [vmem:[#allocation2 + $0x190] sm:$0xff]
    %v80 = vld [vmem:[#allocation2 + $0x198] sm:$0xff]
    %v81 = vld [vmem:[#allocation2 + $0x1a0] sm:$0xff]
    %v82 = vld [vmem:[#allocation2 + $0x1a8] sm:$0xff]
    %v83 = vld [vmem:[#allocation2 + $0x1b0] sm:$0xff]
    %v84 = vld [vmem:[#allocation2 + $0x1b8] sm:$0xff]
    %v85 = vld [vmem:[#allocation2 + $0x1c0] sm:$0xff]
    %v86 = vld [vmem:[#allocation2 + $0x1c8] sm:$0xff]
    %v87 = vld [vmem:[#allocation2 + $0x1d0] sm:$0xff]
    %v88 = vld [vmem:[#allocation2 + $0x1d8] sm:$0xff]
    %v89 = vld [vmem:[#allocation2 + $0x1e0] sm:$0xff]
    %v90 = vld [vmem:[#allocation2 + $0x1e8] sm:$0xff]
    %v91 = vld [vmem:[#allocation2 + $0x1f0] sm:$0xff]
    %v92 = vld [vmem:[#allocation2 + $0x1f8] sm:$0xff]
    %v93 = vld [vmem:[#allocation2 + $0x200] sm:$0xff]
    %v94 = vld [vmem:[#allocation2 + $0x208] sm:$0xff]
    %v95 = vld [vmem:[#allocation2 + $0x210] sm:$0xff]
    %v96 = vld [vmem:[#allocation2 + $0x218] sm:$0xff]
    %v97 = vld [vmem:[#allocation2 + $0x220] sm:$0xff]
    %v98 = vld [vmem:[#allocation2 + $0x228] sm:$0xff]
    %v99 = vld [vmem:[#allocation2 + $0x230] sm:$0xff]
    %v100 = vld [vmem:[#allocation2 + $0x238] sm:$0xff]
    %v101 = vld [vmem:[#allocation2 + $0x240] sm:$0xff]
    %v102 = vld [vmem:[#allocation2 + $0x248] sm:$0xff]
    %v103 = vld [vmem:[#allocation2 + $0x250] sm:$0xff]
    %v104 = vld [vmem:[#allocation2 + $0x258] sm:$0xff]
    %v105 = vld [vmem:[#allocation2 + $0x260] sm:$0xff]
    %v106 = vld [vmem:[#allocation2 + $0x268] sm:$0xff]
    %v107 = vld [vmem:[#allocation2 + $0x270] sm:$0xff]
    %v108 = vld [vmem:[#allocation2 + $0x278] sm:$0xff]
    %v109 = vld [vmem:[#allocation2 + $0x280] sm:$0xff]
    %v110 = vld [vmem:[#allocation2 + $0x288] sm:$0xff]
    %v111 = vld [vmem:[#allocation2 + $0x290] sm:$0xff]
    %v112 = vld [vmem:[#allocation2 + $0x298] sm:$0xff]
    %v113 = vld [vmem:[#allocation2 + $0x2a0] sm:$0xff]
    %v114 = vld [vmem:[#allocation2 + $0x2a8] sm:$0xff]
    %v115 = vld [vmem:[#allocation2 + $0x2b0] sm:$0xff]
    %v116 = vld [vmem:[#allocation2 + $0x2b8] sm:$0xff]
    %v117 = vld [vmem:[#allocation2 + $0x2c0] sm:$0xff]
    %v118 = vld [vmem:[#allocation2 + $0x2c8] sm:$0xff]
    %v119 = vld [vmem:[#allocation2 + $0x2d0] sm:$0xff]
    %v120 = vld [vmem:[#allocation2 + $0x2d8] sm:$0xff]
    %v121 = vld [vmem:[#allocation2 + $0x2e0] sm:$0xff]
    %v122 = vld [vmem:[#allocation2 + $0x2e8] sm:$0xff]
    %v123 = vld [vmem:[#allocation2 + $0x2f0] sm:$0xff]
    %v124 = vld [vmem:[#allocation2 + $0x2f8] sm:$0xff]
    %v125 = vld [vmem:[#allocation2 + $0x300] sm:$0xff]
    %v126 = vld [vmem:[#allocation2 + $0x308] sm:$0xff]
    %v127 = vld [vmem:[#allocation2 + $0x310] sm:$0xff]
    %v128 = vld [vmem:[#allocation2 + $0x318] sm:$0xff]
    %v129 = vld [vmem:[#allocation2 + $0x320] sm:$0xff]
    %v130 = vld [vmem:[#allocation2 + $0x328] sm:$0xff]
    %v131 = vld [vmem:[#allocation2 + $0x330] sm:$0xff]
    %v132 = vld [vmem:[#allocation2 + $0x338] sm:$0xff]
    %v133 = vld [vmem:[#allocation2 + $0x340] sm:$0xff]
    %v134 = vld [vmem:[#allocation2 + $0x348] sm:$0xff]
    %v135 = vld [vmem:[#allocation2 + $0x350] sm:$0xff]
    %v136 = vld [vmem:[#allocation2 + $0x358] sm:$0xff]
    %v137 = vld [vmem:[#allocation2 + $0x360] sm:$0xff]
    %v138 = vld [vmem:[#allocation2 + $0x368] sm:$0xff]
    %v139 = vld [vmem:[#allocation2 + $0x370] sm:$0xff]
    %v140 = vld [vmem:[#allocation2 + $0x378] sm:$0xff]
    %v141 = vld [vmem:[#allocation2 + $0x380] sm:$0xff]
    %v142 = vld [vmem:[#allocation2 + $0x388] sm:$0xff]
    %v143 = vld [vmem:[#allocation2 + $0x390] sm:$0xff]
    %v144 = vld [vmem:[#allocation2 + $0x398] sm:$0xff]
    %v145 = vld [vmem:[#allocation2 + $0x3a0] sm:$0xff]
    %v146 = vld [vmem:[#allocation2 + $0x3a8] sm:$0xff]
    %v147 = vld [vmem:[#allocation2 + $0x3b0] sm:$0xff]
    %v148 = vld [vmem:[#allocation2 + $0x3b8] sm:$0xff]
    %v149 = vld [vmem:[#allocation2 + $0x3c0] sm:$0xff]
    %v150 = vld [vmem:[#allocation2 + $0x3c8] sm:$0xff]
    %v151 = vld [vmem:[#allocation2 + $0x3d0] sm:$0xff]
    %v152 = vld [vmem:[#allocation2 + $0x3d8] sm:$0xff]
    %v153 = vld [vmem:[#allocation2 + $0x3e0] sm:$0xff]
    %v154 = vld [vmem:[#allocation2 + $0x3e8] sm:$0xff]
    %v155 = vld [vmem:[#allocation2 + $0x3f0] sm:$0xff]
    %v156 = vld [vmem:[#allocation2 + $0x3f8] sm:$0xff]
    %v285 = vunpack.c.l.b16 %v29
    %v286 = vunpack.c.h.b16 %v29
    %v287 = vunpack.c.l.b16 %v30
    %v288 = vunpack.c.h.b16 %v30
    %v289 = vunpack.c.l.b16 %v31
    %v290 = vunpack.c.h.b16 %v31
    %v291 = vunpack.c.l.b16 %v32
    %v292 = vunpack.c.h.b16 %v32
    %v293 = vunpack.c.l.b16 %v33
    %v294 = vunpack.c.h.b16 %v33
    %v295 = vunpack.c.l.b16 %v34
    %v296 = vunpack.c.h.b16 %v34
    %v297 = vunpack.c.l.b16 %v35
    %v298 = vunpack.c.h.b16 %v35
    %v299 = vunpack.c.l.b16 %v36
    %v300 = vunpack.c.h.b16 %v36
    %v301 = vunpack.c.l.b16 %v37
    %v302 = vunpack.c.h.b16 %v37
    %v303 = vunpack.c.l.b16 %v38
    %v304 = vunpack.c.h.b16 %v38
    %v305 = vunpack.c.l.b16 %v39
    %v306 = vunpack.c.h.b16 %v39
    %v307 = vunpack.c.l.b16 %v40
    %v308 = vunpack.c.h.b16 %v40
    %v309 = vunpack.c.l.b16 %v41
    %v310 = vunpack.c.h.b16 %v41
    %v311 = vunpack.c.l.b16 %v42
    %v312 = vunpack.c.h.b16 %v42
    %v313 = vunpack.c.l.b16 %v43
    %v314 = vunpack.c.h.b16 %v43
    %v315 = vunpack.c.l.b16 %v44
    %v316 = vunpack.c.h.b16 %v44
    %v317 = vunpack.c.l.b16 %v45
    %v318 = vunpack.c.h.b16 %v45
    %v319 = vunpack.c.l.b16 %v46
    %v320 = vunpack.c.h.b16 %v46
    %v321 = vunpack.c.l.b16 %v47
    %v322 = vunpack.c.h.b16 %v47
    %v323 = vunpack.c.l.b16 %v48
    %v324 = vunpack.c.h.b16 %v48
    %v325 = vunpack.c.l.b16 %v49
    %v326 = vunpack.c.h.b16 %v49
    %v327 = vunpack.c.l.b16 %v50
    %v328 = vunpack.c.h.b16 %v50
    %v329 = vunpack.c.l.b16 %v51
    %v330 = vunpack.c.h.b16 %v51
    %v331 = vunpack.c.l.b16 %v52
    %v332 = vunpack.c.h.b16 %v52
    %v333 = vunpack.c.l.b16 %v53
    %v334 = vunpack.c.h.b16 %v53
    %v335 = vunpack.c.l.b16 %v54
    %v336 = vunpack.c.h.b16 %v54
    %v337 = vunpack.c.l.b16 %v55
    %v338 = vunpack.c.h.b16 %v55
    %v339 = vunpack.c.l.b16 %v56
    %v340 = vunpack.c.h.b16 %v56
    %v341 = vunpack.c.l.b16 %v57
    %v342 = vunpack.c.h.b16 %v57
    %v343 = vunpack.c.l.b16 %v58
    %v344 = vunpack.c.h.b16 %v58
    %v345 = vunpack.c.l.b16 %v59
    %v346 = vunpack.c.h.b16 %v59
    %v347 = vunpack.c.l.b16 %v60
    %v348 = vunpack.c.h.b16 %v60
    %v349 = vunpack.c.l.b16 %v61
    %v350 = vunpack.c.h.b16 %v61
    %v351 = vunpack.c.l.b16 %v62
    %v352 = vunpack.c.h.b16 %v62
    %v353 = vunpack.c.l.b16 %v63
    %v354 = vunpack.c.h.b16 %v63
    %v355 = vunpack.c.l.b16 %v64
    %v356 = vunpack.c.h.b16 %v64
    %v357 = vunpack.c.l.b16 %v65
    %v358 = vunpack.c.h.b16 %v65
    %v359 = vunpack.c.l.b16 %v66
    %v360 = vunpack.c.h.b16 %v66
    %v361 = vunpack.c.l.b16 %v67
    %v362 = vunpack.c.h.b16 %v67
    %v363 = vunpack.c.l.b16 %v68
    %v364 = vunpack.c.h.b16 %v68
    %v365 = vunpack.c.l.b16 %v69
    %v366 = vunpack.c.h.b16 %v69
    %v367 = vunpack.c.l.b16 %v70
    %v368 = vunpack.c.h.b16 %v70
    %v369 = vunpack.c.l.b16 %v71
    %v370 = vunpack.c.h.b16 %v71
    %v371 = vunpack.c.l.b16 %v72
    %v372 = vunpack.c.h.b16 %v72
    %v373 = vunpack.c.l.b16 %v73
    %v374 = vunpack.c.h.b16 %v73
    %v375 = vunpack.c.l.b16 %v74
    %v376 = vunpack.c.h.b16 %v74
    %v377 = vunpack.c.l.b16 %v75
    %v378 = vunpack.c.h.b16 %v75
    %v379 = vunpack.c.l.b16 %v76
    %v380 = vunpack.c.h.b16 %v76
    %v381 = vunpack.c.l.b16 %v77
    %v382 = vunpack.c.h.b16 %v77
    %v383 = vunpack.c.l.b16 %v78
    %v384 = vunpack.c.h.b16 %v78
    %v385 = vunpack.c.l.b16 %v79
    %v386 = vunpack.c.h.b16 %v79
    %v387 = vunpack.c.l.b16 %v80
    %v388 = vunpack.c.h.b16 %v80
    %v389 = vunpack.c.l.b16 %v81
    %v390 = vunpack.c.h.b16 %v81
    %v391 = vunpack.c.l.b16 %v82
    %v392 = vunpack.c.h.b16 %v82
    %v393 = vunpack.c.l.b16 %v83
    %v394 = vunpack.c.h.b16 %v83
    %v395 = vunpack.c.l.b16 %v84
    %v396 = vunpack.c.h.b16 %v84
    %v397 = vunpack.c.l.b16 %v85
    %v398 = vunpack.c.h.b16 %v85
    %v399 = vunpack.c.l.b16 %v86
    %v400 = vunpack.c.h.b16 %v86
    %v401 = vunpack.c.l.b16 %v87
    %v402 = vunpack.c.h.b16 %v87
    %v403 = vunpack.c.l.b16 %v88
    %v404 = vunpack.c.h.b16 %v88
    %v405 = vunpack.c.l.b16 %v89
    %v406 = vunpack.c.h.b16 %v89
    %v407 = vunpack.c.l.b16 %v90
    %v408 = vunpack.c.h.b16 %v90
    %v409 = vunpack.c.l.b16 %v91
    %v410 = vunpack.c.h.b16 %v91
    %v411 = vunpack.c.l.b16 %v92
    %v412 = vunpack.c.h.b16 %v92
    %v413 = vunpack.c.l.b16 %v93
    %v414 = vunpack.c.h.b16 %v93
    %v415 = vunpack.c.l.b16 %v94
    %v416 = vunpack.c.h.b16 %v94
    %v417 = vunpack.c.l.b16 %v95
    %v418 = vunpack.c.h.b16 %v95
    %v419 = vunpack.c.l.b16 %v96
    %v420 = vunpack.c.h.b16 %v96
    %v421 = vunpack.c.l.b16 %v97
    %v422 = vunpack.c.h.b16 %v97
    %v423 = vunpack.c.l.b16 %v98
    %v424 = vunpack.c.h.b16 %v98
    %v425 = vunpack.c.l.b16 %v99
    %v426 = vunpack.c.h.b16 %v99
    %v427 = vunpack.c.l.b16 %v100
    %v428 = vunpack.c.h.b16 %v100
    %v429 = vunpack.c.l.b16 %v101
    %v430 = vunpack.c.h.b16 %v101
    %v431 = vunpack.c.l.b16 %v102
    %v432 = vunpack.c.h.b16 %v102
    %v433 = vunpack.c.l.b16 %v103
    %v434 = vunpack.c.h.b16 %v103
    %v435 = vunpack.c.l.b16 %v104
    %v436 = vunpack.c.h.b16 %v104
    %v437 = vunpack.c.l.b16 %v105
    %v438 = vunpack.c.h.b16 %v105
    %v439 = vunpack.c.l.b16 %v106
    %v440 = vunpack.c.h.b16 %v106
    %v441 = vunpack.c.l.b16 %v107
    %v442 = vunpack.c.h.b16 %v107
    %v443 = vunpack.c.l.b16 %v108
    %v444 = vunpack.c.h.b16 %v108
    %v445 = vunpack.c.l.b16 %v109
    %v446 = vunpack.c.h.b16 %v109
    %v447 = vunpack.c.l.b16 %v110
    %v448 = vunpack.c.h.b16 %v110
    %v449 = vunpack.c.l.b16 %v111
    %v450 = vunpack.c.h.b16 %v111
    %v451 = vunpack.c.l.b16 %v112
    %v452 = vunpack.c.h.b16 %v112
    %v453 = vunpack.c.l.b16 %v113
    %v454 = vunpack.c.h.b16 %v113
    %v455 = vunpack.c.l.b16 %v114
    %v456 = vunpack.c.h.b16 %v114
    %v457 = vunpack.c.l.b16 %v115
    %v458 = vunpack.c.h.b16 %v115
    %v459 = vunpack.c.l.b16 %v116
    %v460 = vunpack.c.h.b16 %v116
    %v461 = vunpack.c.l.b16 %v117
    %v462 = vunpack.c.h.b16 %v117
    %v463 = vunpack.c.l.b16 %v118
    %v464 = vunpack.c.h.b16 %v118
    %v465 = vunpack.c.l.b16 %v119
    %v466 = vunpack.c.h.b16 %v119
    %v467 = vunpack.c.l.b16 %v120
    %v468 = vunpack.c.h.b16 %v120
    %v469 = vunpack.c.l.b16 %v121
    %v470 = vunpack.c.h.b16 %v121
    %v471 = vunpack.c.l.b16 %v122
    %v472 = vunpack.c.h.b16 %v122
    %v473 = vunpack.c.l.b16 %v123
    %v474 = vunpack.c.h.b16 %v123
    %v475 = vunpack.c.l.b16 %v124
    %v476 = vunpack.c.h.b16 %v124
    %v477 = vunpack.c.l.b16 %v125
    %v478 = vunpack.c.h.b16 %v125
    %v479 = vunpack.c.l.b16 %v126
    %v480 = vunpack.c.h.b16 %v126
    %v481 = vunpack.c.l.b16 %v127
    %v482 = vunpack.c.h.b16 %v127
    %v483 = vunpack.c.l.b16 %v128
    %v484 = vunpack.c.h.b16 %v128
    %v485 = vunpack.c.l.b16 %v129
    %v486 = vunpack.c.h.b16 %v129
    %v487 = vunpack.c.l.b16 %v130
    %v488 = vunpack.c.h.b16 %v130
    %v489 = vunpack.c.l.b16 %v131
    %v490 = vunpack.c.h.b16 %v131
    %v491 = vunpack.c.l.b16 %v132
    %v492 = vunpack.c.h.b16 %v132
    %v493 = vunpack.c.l.b16 %v133
    %v494 = vunpack.c.h.b16 %v133
    %v495 = vunpack.c.l.b16 %v134
    %v496 = vunpack.c.h.b16 %v134
    %v497 = vunpack.c.l.b16 %v135
    %v498 = vunpack.c.h.b16 %v135
    %v499 = vunpack.c.l.b16 %v136
    %v500 = vunpack.c.h.b16 %v136
    %v501 = vunpack.c.l.b16 %v137
    %v502 = vunpack.c.h.b16 %v137
    %v503 = vunpack.c.l.b16 %v138
    %v504 = vunpack.c.h.b16 %v138
    %v505 = vunpack.c.l.b16 %v139
    %v506 = vunpack.c.h.b16 %v139
    %v507 = vunpack.c.l.b16 %v140
    %v508 = vunpack.c.h.b16 %v140
    %v509 = vunpack.c.l.b16 %v141
    %v510 = vunpack.c.h.b16 %v141
    %v511 = vunpack.c.l.b16 %v142
    %v512 = vunpack.c.h.b16 %v142
    %v513 = vunpack.c.l.b16 %v143
    %v514 = vunpack.c.h.b16 %v143
    %v515 = vunpack.c.l.b16 %v144
    %v516 = vunpack.c.h.b16 %v144
    %v517 = vunpack.c.l.b16 %v145
    %v518 = vunpack.c.h.b16 %v145
    %v519 = vunpack.c.l.b16 %v146
    %v520 = vunpack.c.h.b16 %v146
    %v521 = vunpack.c.l.b16 %v147
    %v522 = vunpack.c.h.b16 %v147
    %v523 = vunpack.c.l.b16 %v148
    %v524 = vunpack.c.h.b16 %v148
    %v525 = vunpack.c.l.b16 %v149
    %v526 = vunpack.c.h.b16 %v149
    %v527 = vunpack.c.l.b16 %v150
    %v528 = vunpack.c.h.b16 %v150
    %v529 = vunpack.c.l.b16 %v151
    %v530 = vunpack.c.h.b16 %v151
    %v531 = vunpack.c.l.b16 %v152
    %v532 = vunpack.c.h.b16 %v152
    %v533 = vunpack.c.l.b16 %v153
    %v534 = vunpack.c.h.b16 %v153
    %v535 = vunpack.c.l.b16 %v154
    %v536 = vunpack.c.h.b16 %v154
    %v537 = vunpack.c.l.b16 %v155
    %v538 = vunpack.c.h.b16 %v155
    %v539 = vunpack.c.l.b16 %v156
    %v540 = vunpack.c.h.b16 %v156
    %v541 = vpack.c.b16 %v301, %v285
    %v542 = vpack.c.b16 %v302, %v286
    %v543 = vpack.c.b16 %v303, %v287
    %v544 = vpack.c.b16 %v304, %v288
    %v545 = vpack.c.b16 %v305, %v289
    %v546 = vpack.c.b16 %v306, %v290
    %v547 = vpack.c.b16 %v307, %v291
    %v548 = vpack.c.b16 %v308, %v292
    %v549 = vpack.c.b16 %v309, %v293
    %v550 = vpack.c.b16 %v310, %v294
    %v551 = vpack.c.b16 %v311, %v295
    %v552 = vpack.c.b16 %v312, %v296
    %v553 = vpack.c.b16 %v313, %v297
    %v554 = vpack.c.b16 %v314, %v298
    %v555 = vpack.c.b16 %v315, %v299
    %v556 = vpack.c.b16 %v316, %v300
    %v557 = vpack.c.b16 %v333, %v317
    %v558 = vpack.c.b16 %v334, %v318
    %v559 = vpack.c.b16 %v335, %v319
    %v560 = vpack.c.b16 %v336, %v320
    %v561 = vpack.c.b16 %v337, %v321
    %v562 = vpack.c.b16 %v338, %v322
    %v563 = vpack.c.b16 %v339, %v323
    %v564 = vpack.c.b16 %v340, %v324
    %v565 = vpack.c.b16 %v341, %v325
    %v566 = vpack.c.b16 %v342, %v326
    %v567 = vpack.c.b16 %v343, %v327
    %v568 = vpack.c.b16 %v344, %v328
    %v569 = vpack.c.b16 %v345, %v329
    %v570 = vpack.c.b16 %v346, %v330
    %v571 = vpack.c.b16 %v347, %v331
    %v572 = vpack.c.b16 %v348, %v332
    %v573 = vpack.c.b16 %v365, %v349
    %v574 = vpack.c.b16 %v366, %v350
    %v575 = vpack.c.b16 %v367, %v351
    %v576 = vpack.c.b16 %v368, %v352
    %v577 = vpack.c.b16 %v369, %v353
    %v578 = vpack.c.b16 %v370, %v354
    %v579 = vpack.c.b16 %v371, %v355
    %v580 = vpack.c.b16 %v372, %v356
    %v581 = vpack.c.b16 %v373, %v357
    %v582 = vpack.c.b16 %v374, %v358
    %v583 = vpack.c.b16 %v375, %v359
    %v584 = vpack.c.b16 %v376, %v360
    %v585 = vpack.c.b16 %v377, %v361
    %v586 = vpack.c.b16 %v378, %v362
    %v587 = vpack.c.b16 %v379, %v363
    %v588 = vpack.c.b16 %v380, %v364
    %v589 = vpack.c.b16 %v397, %v381
    %v590 = vpack.c.b16 %v398, %v382
    %v591 = vpack.c.b16 %v399, %v383
    %v592 = vpack.c.b16 %v400, %v384
    %v593 = vpack.c.b16 %v401, %v385
    %v594 = vpack.c.b16 %v402, %v386
    %v595 = vpack.c.b16 %v403, %v387
    %v596 = vpack.c.b16 %v404, %v388
    %v597 = vpack.c.b16 %v405, %v389
    %v598 = vpack.c.b16 %v406, %v390
    %v599 = vpack.c.b16 %v407, %v391
    %v600 = vpack.c.b16 %v408, %v392
    %v601 = vpack.c.b16 %v409, %v393
    %v602 = vpack.c.b16 %v410, %v394
    %v603 = vpack.c.b16 %v411, %v395
    %v604 = vpack.c.b16 %v412, %v396
    %v605 = vpack.c.b16 %v429, %v413
    %v606 = vpack.c.b16 %v430, %v414
    %v607 = vpack.c.b16 %v431, %v415
    %v608 = vpack.c.b16 %v432, %v416
    %v609 = vpack.c.b16 %v433, %v417
    %v610 = vpack.c.b16 %v434, %v418
    %v611 = vpack.c.b16 %v435, %v419
    %v612 = vpack.c.b16 %v436, %v420
    %v613 = vpack.c.b16 %v437, %v421
    %v614 = vpack.c.b16 %v438, %v422
    %v615 = vpack.c.b16 %v439, %v423
    %v616 = vpack.c.b16 %v440, %v424
    %v617 = vpack.c.b16 %v441, %v425
    %v618 = vpack.c.b16 %v442, %v426
    %v619 = vpack.c.b16 %v443, %v427
    %v620 = vpack.c.b16 %v444, %v428
    %v621 = vpack.c.b16 %v461, %v445
    %v622 = vpack.c.b16 %v462, %v446
    %v623 = vpack.c.b16 %v463, %v447
    %v624 = vpack.c.b16 %v464, %v448
    %v625 = vpack.c.b16 %v465, %v449
    %v626 = vpack.c.b16 %v466, %v450
    %v627 = vpack.c.b16 %v467, %v451
    %v628 = vpack.c.b16 %v468, %v452
    %v629 = vpack.c.b16 %v469, %v453
    %v630 = vpack.c.b16 %v470, %v454
    %v631 = vpack.c.b16 %v471, %v455
    %v632 = vpack.c.b16 %v472, %v456
    %v633 = vpack.c.b16 %v473, %v457
    %v634 = vpack.c.b16 %v474, %v458
    %v635 = vpack.c.b16 %v475, %v459
    %v636 = vpack.c.b16 %v476, %v460
    %v637 = vpack.c.b16 %v493, %v477
    %v638 = vpack.c.b16 %v494, %v478
    %v639 = vpack.c.b16 %v495, %v479
    %v640 = vpack.c.b16 %v496, %v480
    %v641 = vpack.c.b16 %v497, %v481
    %v642 = vpack.c.b16 %v498, %v482
    %v643 = vpack.c.b16 %v499, %v483
    %v644 = vpack.c.b16 %v500, %v484
    %v645 = vpack.c.b16 %v501, %v485
    %v646 = vpack.c.b16 %v502, %v486
    %v647 = vpack.c.b16 %v503, %v487
    %v648 = vpack.c.b16 %v504, %v488
    %v649 = vpack.c.b16 %v505, %v489
    %v650 = vpack.c.b16 %v506, %v490
    %v651 = vpack.c.b16 %v507, %v491
    %v652 = vpack.c.b16 %v508, %v492
    %v653 = vpack.c.b16 %v525, %v509
    %v654 = vpack.c.b16 %v526, %v510
    %v655 = vpack.c.b16 %v527, %v511
    %v656 = vpack.c.b16 %v528, %v512
    %v657 = vpack.c.b16 %v529, %v513
    %v658 = vpack.c.b16 %v530, %v514
    %v659 = vpack.c.b16 %v531, %v515
    %v660 = vpack.c.b16 %v532, %v516
    %v661 = vpack.c.b16 %v533, %v517
    %v662 = vpack.c.b16 %v534, %v518
    %v663 = vpack.c.b16 %v535, %v519
    %v664 = vpack.c.b16 %v536, %v520
    %v665 = vpack.c.b16 %v537, %v521
    %v666 = vpack.c.b16 %v538, %v522
    %v667 = vpack.c.b16 %v539, %v523
    %v668 = vpack.c.b16 %v540, %v524
    %797 = vmatpush.bf16.msra.mxu0 %v653
    %798 = vmatpush.bf16.msra.mxu0 %v637
    %799 = vmatpush.bf16.msra.mxu0 %v621
    %800 = vmatpush.bf16.msra.mxu0 %v605
    %801 = vmatpush.bf16.msra.mxu0 %v589
    %802 = vmatpush.bf16.msra.mxu0 %v573
    %803 = vmatpush.bf16.msra.mxu0 %v557
    %804 = vmatpush.bf16.msra.mxu0 %v541
    %805 = vmatmul.bf16.gmra.mxu0 %v28
    %v806 = vpop.f32.mrf.mxu0
    %v807 = vadd.f32 0.0, %v806
    %v808 = vpop.f32.mrf.mxu0
    %809 = vdwg.mxu0
    %810 = vmatpush.bf16.msra.mxu0 %v654
    %811 = vmatpush.bf16.msra.mxu0 %v638
    %812 = vmatpush.bf16.msra.mxu0 %v622
    %813 = vmatpush.bf16.msra.mxu0 %v606
    %814 = vmatpush.bf16.msra.mxu0 %v590
    %815 = vmatpush.bf16.msra.mxu0 %v574
    %816 = vmatpush.bf16.msra.mxu0 %v558
    %817 = vmatpush.bf16.msra.mxu0 %v542
    %818 = vmatmul.bf16.gmra.mxu0 %v28
    %v819 = vpop.f32.mrf.mxu0
    %v820 = vadd.f32 0.0, %v819
    %v821 = vpop.f32.mrf.mxu0
    %822 = vdwg.mxu0
    %823 = vmatpush.bf16.msra.mxu0 %v655
    %824 = vmatpush.bf16.msra.mxu0 %v639
    %825 = vmatpush.bf16.msra.mxu0 %v623
    %826 = vmatpush.bf16.msra.mxu0 %v607
    %827 = vmatpush.bf16.msra.mxu0 %v591
    %828 = vmatpush.bf16.msra.mxu0 %v575
    %829 = vmatpush.bf16.msra.mxu0 %v559
    %830 = vmatpush.bf16.msra.mxu0 %v543
    %831 = vmatmul.bf16.gmra.mxu0 %v28
    %v832 = vpop.f32.mrf.mxu0
    %v833 = vadd.f32 0.0, %v832
    %v834 = vpop.f32.mrf.mxu0
    %835 = vdwg.mxu0
    %836 = vmatpush.bf16.msra.mxu0 %v656
    %837 = vmatpush.bf16.msra.mxu0 %v640
    %838 = vmatpush.bf16.msra.mxu0 %v624
    %839 = vmatpush.bf16.msra.mxu0 %v608
    %840 = vmatpush.bf16.msra.mxu0 %v592
    %841 = vmatpush.bf16.msra.mxu0 %v576
    %842 = vmatpush.bf16.msra.mxu0 %v560
    %843 = vmatpush.bf16.msra.mxu0 %v544
    %844 = vmatmul.bf16.gmra.mxu0 %v28
    %v845 = vpop.f32.mrf.mxu0
    %v846 = vadd.f32 0.0, %v845
    %v847 = vpop.f32.mrf.mxu0
    %848 = vdwg.mxu0
    %849 = vmatpush.bf16.msra.mxu0 %v657
    %850 = vmatpush.bf16.msra.mxu0 %v641
    %851 = vmatpush.bf16.msra.mxu0 %v625
    %852 = vmatpush.bf16.msra.mxu0 %v609
    %853 = vmatpush.bf16.msra.mxu0 %v593
    %854 = vmatpush.bf16.msra.mxu0 %v577
    %855 = vmatpush.bf16.msra.mxu0 %v561
    %856 = vmatpush.bf16.msra.mxu0 %v545
    %857 = vmatmul.bf16.gmra.mxu0 %v28
    %v858 = vpop.f32.mrf.mxu0
    %v859 = vadd.f32 0.0, %v858
    %v860 = vpop.f32.mrf.mxu0
    %861 = vdwg.mxu0
    %862 = vmatpush.bf16.msra.mxu0 %v658
    %863 = vmatpush.bf16.msra.mxu0 %v642
    %864 = vmatpush.bf16.msra.mxu0 %v626
    %865 = vmatpush.bf16.msra.mxu0 %v610
    %866 = vmatpush.bf16.msra.mxu0 %v594
    %867 = vmatpush.bf16.msra.mxu0 %v578
    %868 = vmatpush.bf16.msra.mxu0 %v562
    %869 = vmatpush.bf16.msra.mxu0 %v546
    %870 = vmatmul.bf16.gmra.mxu0 %v28
    %v871 = vpop.f32.mrf.mxu0
    %v872 = vadd.f32 0.0, %v871
    %v873 = vpop.f32.mrf.mxu0
    %874 = vdwg.mxu0
    %875 = vmatpush.bf16.msra.mxu0 %v659
    %876 = vmatpush.bf16.msra.mxu0 %v643
    %877 = vmatpush.bf16.msra.mxu0 %v627
    %878 = vmatpush.bf16.msra.mxu0 %v611
    %879 = vmatpush.bf16.msra.mxu0 %v595
    %880 = vmatpush.bf16.msra.mxu0 %v579
    %881 = vmatpush.bf16.msra.mxu0 %v563
    %882 = vmatpush.bf16.msra.mxu0 %v547
    %883 = vmatmul.bf16.gmra.mxu0 %v28
    %v884 = vpop.f32.mrf.mxu0
    %v885 = vadd.f32 0.0, %v884
    %v886 = vpop.f32.mrf.mxu0
    %887 = vdwg.mxu0
    %888 = vmatpush.bf16.msra.mxu0 %v660
    %889 = vmatpush.bf16.msra.mxu0 %v644
    %890 = vmatpush.bf16.msra.mxu0 %v628
    %891 = vmatpush.bf16.msra.mxu0 %v612
    %892 = vmatpush.bf16.msra.mxu0 %v596
    %893 = vmatpush.bf16.msra.mxu0 %v580
    %894 = vmatpush.bf16.msra.mxu0 %v564
    %895 = vmatpush.bf16.msra.mxu0 %v548
    %896 = vmatmul.bf16.gmra.mxu0 %v28
    %v897 = vpop.f32.mrf.mxu0
    %v898 = vadd.f32 0.0, %v897
    %v899 = vpop.f32.mrf.mxu0
    %900 = vdwg.mxu0
    %901 = vmatpush.bf16.msra.mxu0 %v661
    %902 = vmatpush.bf16.msra.mxu0 %v645
    %903 = vmatpush.bf16.msra.mxu0 %v629
    %904 = vmatpush.bf16.msra.mxu0 %v613
    %905 = vmatpush.bf16.msra.mxu0 %v597
    %906 = vmatpush.bf16.msra.mxu0 %v581
    %907 = vmatpush.bf16.msra.mxu0 %v565
    %908 = vmatpush.bf16.msra.mxu0 %v549
    %909 = vmatmul.bf16.gmra.mxu0 %v28
    %v910 = vpop.f32.mrf.mxu0
    %v911 = vadd.f32 0.0, %v910
    %v912 = vpop.f32.mrf.mxu0
    %913 = vdwg.mxu0
    %914 = vmatpush.bf16.msra.mxu0 %v662
    %915 = vmatpush.bf16.msra.mxu0 %v646
    %916 = vmatpush.bf16.msra.mxu0 %v630
    %917 = vmatpush.bf16.msra.mxu0 %v614
    %918 = vmatpush.bf16.msra.mxu0 %v598
    %919 = vmatpush.bf16.msra.mxu0 %v582
    %920 = vmatpush.bf16.msra.mxu0 %v566
    %921 = vmatpush.bf16.msra.mxu0 %v550
    %922 = vmatmul.bf16.gmra.mxu0 %v28
    %v923 = vpop.f32.mrf.mxu0
    %v924 = vadd.f32 0.0, %v923
    %v925 = vpop.f32.mrf.mxu0
    %926 = vdwg.mxu0
    %927 = vmatpush.bf16.msra.mxu0 %v663
    %928 = vmatpush.bf16.msra.mxu0 %v647
    %929 = vmatpush.bf16.msra.mxu0 %v631
    %930 = vmatpush.bf16.msra.mxu0 %v615
    %931 = vmatpush.bf16.msra.mxu0 %v599
    %932 = vmatpush.bf16.msra.mxu0 %v583
    %933 = vmatpush.bf16.msra.mxu0 %v567
    %934 = vmatpush.bf16.msra.mxu0 %v551
    %935 = vmatmul.bf16.gmra.mxu0 %v28
    %v936 = vpop.f32.mrf.mxu0
    %v937 = vadd.f32 0.0, %v936
    %v938 = vpop.f32.mrf.mxu0
    %939 = vdwg.mxu0
    %940 = vmatpush.bf16.msra.mxu0 %v664
    %941 = vmatpush.bf16.msra.mxu0 %v648
    %942 = vmatpush.bf16.msra.mxu0 %v632
    %943 = vmatpush.bf16.msra.mxu0 %v616
    %944 = vmatpush.bf16.msra.mxu0 %v600
    %945 = vmatpush.bf16.msra.mxu0 %v584
    %946 = vmatpush.bf16.msra.mxu0 %v568
    %947 = vmatpush.bf16.msra.mxu0 %v552
    %948 = vmatmul.bf16.gmra.mxu0 %v28
    %v949 = vpop.f32.mrf.mxu0
    %v950 = vadd.f32 0.0, %v949
    %v951 = vpop.f32.mrf.mxu0
    %952 = vdwg.mxu0
    %953 = vmatpush.bf16.msra.mxu0 %v665
    %954 = vmatpush.bf16.msra.mxu0 %v649
    %955 = vmatpush.bf16.msra.mxu0 %v633
    %956 = vmatpush.bf16.msra.mxu0 %v617
    %957 = vmatpush.bf16.msra.mxu0 %v601
    %958 = vmatpush.bf16.msra.mxu0 %v585
    %959 = vmatpush.bf16.msra.mxu0 %v569
    %960 = vmatpush.bf16.msra.mxu0 %v553
    %961 = vmatmul.bf16.gmra.mxu0 %v28
    %v962 = vpop.f32.mrf.mxu0
    %v963 = vadd.f32 0.0, %v962
    %v964 = vpop.f32.mrf.mxu0
    %965 = vdwg.mxu0
    %966 = vmatpush.bf16.msra.mxu0 %v666
    %967 = vmatpush.bf16.msra.mxu0 %v650
    %968 = vmatpush.bf16.msra.mxu0 %v634
    %969 = vmatpush.bf16.msra.mxu0 %v618
    %970 = vmatpush.bf16.msra.mxu0 %v602
    %971 = vmatpush.bf16.msra.mxu0 %v586
    %972 = vmatpush.bf16.msra.mxu0 %v570
    %973 = vmatpush.bf16.msra.mxu0 %v554
    %974 = vmatmul.bf16.gmra.mxu0 %v28
    %v975 = vpop.f32.mrf.mxu0
    %v976 = vadd.f32 0.0, %v975
    %v977 = vpop.f32.mrf.mxu0
    %978 = vdwg.mxu0
    %979 = vmatpush.bf16.msra.mxu0 %v667
    %980 = vmatpush.bf16.msra.mxu0 %v651
    %981 = vmatpush.bf16.msra.mxu0 %v635
    %982 = vmatpush.bf16.msra.mxu0 %v619
    %983 = vmatpush.bf16.msra.mxu0 %v603
    %984 = vmatpush.bf16.msra.mxu0 %v587
    %985 = vmatpush.bf16.msra.mxu0 %v571
    %986 = vmatpush.bf16.msra.mxu0 %v555
    %987 = vmatmul.bf16.gmra.mxu0 %v28
    %v988 = vpop.f32.mrf.mxu0
    %v989 = vadd.f32 0.0, %v988
    %v990 = vpop.f32.mrf.mxu0
    %991 = vdwg.mxu0
    %992 = vmatpush.bf16.msra.mxu0 %v668
    %993 = vmatpush.bf16.msra.mxu0 %v652
    %994 = vmatpush.bf16.msra.mxu0 %v636
    %995 = vmatpush.bf16.msra.mxu0 %v620
    %996 = vmatpush.bf16.msra.mxu0 %v604
    %997 = vmatpush.bf16.msra.mxu0 %v588
    %998 = vmatpush.bf16.msra.mxu0 %v572
    %999 = vmatpush.bf16.msra.mxu0 %v556
    %1000 = vmatmul.bf16.gmra.mxu0 %v28
    %v1001 = vpop.f32.mrf.mxu0
    %v1002 = vadd.f32 0.0, %v1001
    %v1003 = vpop.f32.mrf.mxu0
    %1004 = vdwg.mxu0
    %v1005 = vpack.c.bf16 %v820, %v807
    %v1006 = vpack.c.bf16 %v846, %v833
    %v1007 = vpack.c.bf16 %v872, %v859
    %v1008 = vpack.c.bf16 %v898, %v885
    %v1009 = vpack.c.bf16 %v924, %v911
    %v1010 = vpack.c.bf16 %v950, %v937
    %v1011 = vpack.c.bf16 %v976, %v963
    %v1012 = vpack.c.bf16 %v1002, %v989
    %1013 = vst [vmem:[%s2] sm:$0xff] %v1005
    %1014 = vst [vmem:[%s2 + $0x8] sm:$0xff] %v1006
    %1015 = vst [vmem:[%s2 + $0x10] sm:$0xff] %v1007
    %1016 = vst [vmem:[%s2 + $0x18] sm:$0xff] %v1008
    %1017 = vst [vmem:[%s2 + $0x20] sm:$0xff] %v1009
    %1018 = vst [vmem:[%s2 + $0x28] sm:$0xff] %v1010
    %1019 = vst [vmem:[%s2 + $0x30] sm:$0xff] %v1011
    %1020 = vst [vmem:[%s2 + $0x38] sm:$0xff] %v1012
    // Predicated region
    $region14: #{net_generator_forward.6} parent=1 // pred_check
      _
    $region15: #{net_generator_forward.6} parent=1 // pred_check_branch
      %1022 = sbr.rel (0) target = $region17
    $region16: #{net_generator_forward.6} parent=1 // pred_region
      _
    $region17: #{net_generator_forward.6} parent=1 // pred_fallthru
      _
    // Predicated region
    $region18: #{net_generator_forward.6} parent=1 // pred_check
      _
    $region19: #{net_generator_forward.6} parent=1 // pred_check_branch
      %1024 = sbr.rel (0) target = $region21
    $region20: #{net_generator_forward.6} parent=1 // pred_region
      _
    $region21: #{net_generator_forward.6} parent=1 // pred_fallthru
      _
    %1025 = vsyncpa [#allocation3], 1

// kernel: net_generator_forward.8
$region0: #{net_generator_forward.8}
  #allocation0 [shape = 'u32[]', space=smem, size = 0x4, offset = 0x4, fixed_abs, tag = 'smem constant byte address 0x4 - core index']
  #allocation1 [shape = 'u32[72,128]{1,0:T(1,128)}', space=vmem, size = 0x9000, scoped, tag = 'internal scratch']
  %s0 = inlined_call_operand.vmem [shape: bf16[128,64], index: 0, kind: input, shape index: {}]
  %s1 = inlined_call_operand.hbm [shape: bf16[64,512], index: 1, kind: input, shape index: {}]
  %s2 = inlined_call_operand.hbm [shape: f32[1,64], index: 2, kind: input, shape index: {}]
  %s3 = inlined_call_operand.vmem [shape: bf16[128,512], index: 3, kind: output, shape index: {}]
  %s4 = sld [smem:[#allocation0]]
  $region53: #{net_generator_forward.8} parent=0
    _
  %s6 = ssub.s32 1, %s4
  %s7 = scalar_select 0, %s6, %s4
  $region1: #{net_generator_forward.8} parent=0
    #allocation2 [shape = 'u8[65536]{0}', space=vmem, size = 0x10000, scoped, tag = 'input window, operand 1, single buffered']
    #allocation3 [shape = 's32[2]{0}', space=sflag, size = 0x8, scoped, tag = 'scoped memory for net_generator_forward.8']
    #allocation4 [shape = 'u8[512]{0}', space=vmem, size = 0x400, scoped, tag = 'input window, operand 2, single buffered']
    #allocation5 [shape = 's32[1]{0}', space=sflag, size = 0x4, scoped, tag = 'scoped memory for net_generator_forward.8']
    %8 = vsyncpa [#allocation3], 0
    %9 = vsyncpa [#allocation5], 0
    loop: start=0, step=1, limit=4
    $region2: #{net_generator_forward.8} parent=1 // loop_pre_header
      _
    $region3: #{net_generator_forward.8} parent=1 // loop_header
      %s11 = sphi 0, %s15
      %p12 = scmp.ge.s32.totalorder %s11, 4
      %s21 = sphi 0, %s23
      %s24 = sphi 0, %s21
      %s25 = sphi 0, %s24
      %s41 = sphi 0, %s25
      %s45 = sphi 0, %s45
      %s47 = sphi 0, %s45
      %s48 = sphi 0, %s47
      %s62 = sphi 0, %s48
      %s66 = sphi 0, %s66
      %s68 = sphi 0, %s66
      %s69 = sphi 0, %s68
      %s83 = sphi 0, %s69
      %s89 = sphi 0, %s91
      %s92 = sphi 0, %s89
      %s93 = sphi 0, %s92
      %s109 = sphi 0, %s93
    $region4: #{net_generator_forward.8} parent=1 // loop_header_branch
      %14 = sbr.rel (%p12) target = $region8
    $region5: #{net_generator_forward.8} parent=1 // loop_body
      %s16 = ssub.s32 %s11, 1
      %s17 = ssub.s32 %s11, 2
      %s18 = sadd.s32 %s11, 1
      %s19 = ssub.s32 %s11, %s18
      %p20 = scmp.eq.s32.totalorder %s19, 0
      %s22 = sadd.s32 %s21, 1
      %s23 = scalar_select %p20, %s21, %s22
      %p26 = pneg %p20
      %p27 = scmp.eq.s32.totalorder %s11, 1
      %p28 = por %p26, %p27
      %p29 = scmp.ne.s32.totalorder %s21, %s24
      %p30 = scmp.eq.s32.totalorder %s11, 0
      %p31 = por %p29, %p30
      %p32 = scmp.ne.s32.totalorder %s21, %s24
      %p33 = scmp.eq.s32.totalorder %s16, 1
      %p34 = por %p32, %p33
      %p35 = scmp.ne.s32.totalorder %s24, %s25
      %p36 = scmp.eq.s32.totalorder %s16, 0
      %p37 = por %p35, %p36
      %p38 = scmp.ne.s32.totalorder %s24, %s25
      %p39 = scmp.eq.s32.totalorder %s17, 1
      %p40 = por %p38, %p39
      %p42 = scmp.ne.s32.totalorder %s25, %s41
      %p43 = scmp.eq.s32.totalorder %s17, 0
      %p44 = por %p42, %p43
      %s46 = sadd.s32 %s45, 1
      %p49 = scmp.eq.s32.totalorder %s11, 1
      %p50 = scmp.ne.s32.totalorder %s45, %s47
      %p51 = scmp.eq.s32.totalorder %s11, 0
      %p52 = por %p50, %p51
      %p53 = scmp.ne.s32.totalorder %s45, %s47
      %p54 = scmp.eq.s32.totalorder %s16, 1
      %p55 = por %p53, %p54
      %p56 = scmp.ne.s32.totalorder %s47, %s48
      %p57 = scmp.eq.s32.totalorder %s16, 0
      %p58 = por %p56, %p57
      %p59 = scmp.ne.s32.totalorder %s47, %s48
      %p60 = scmp.eq.s32.totalorder %s17, 1
      %p61 = por %p59, %p60
      %p63 = scmp.ne.s32.totalorder %s48, %s62
      %p64 = scmp.eq.s32.totalorder %s17, 0
      %p65 = por %p63, %p64
      %s67 = sadd.s32 %s66, 1
      %p70 = scmp.eq.s32.totalorder %s11, 1
      %p71 = scmp.ne.s32.totalorder %s66, %s68
      %p72 = scmp.eq.s32.totalorder %s11, 0
      %p73 = por %p71, %p72
      %p74 = scmp.ne.s32.totalorder %s66, %s68
      %p75 = scmp.eq.s32.totalorder %s16, 1
      %p76 = por %p74, %p75
      %p77 = scmp.ne.s32.totalorder %s68, %s69
      %p78 = scmp.eq.s32.totalorder %s16, 0
      %p79 = por %p77, %p78
      %p80 = scmp.ne.s32.totalorder %s68, %s69
      %p81 = scmp.eq.s32.totalorder %s17, 1
      %p82 = por %p80, %p81
      %p84 = scmp.ne.s32.totalorder %s69, %s83
      %p85 = scmp.eq.s32.totalorder %s17, 0
      %p86 = por %p84, %p85
      %s87 = ssub.s32 %s11, %s18
      %p88 = scmp.eq.s32.totalorder %s87, 0
      %s90 = sadd.s32 %s89, 1
      %s91 = scalar_select %p88, %s89, %s90
      %p94 = pneg %p88
      %p95 = scmp.eq.s32.totalorder %s11, 1
      %p96 = por %p94, %p95
      %p97 = scmp.ne.s32.totalorder %s89, %s92
      %p98 = scmp.eq.s32.totalorder %s11, 0
      %p99 = por %p97, %p98
      %p100 = scmp.ne.s32.totalorder %s89, %s92
      %p101 = scmp.eq.s32.totalorder %s16, 1
      %p102 = por %p100, %p101
      %p103 = scmp.ne.s32.totalorder %s92, %s93
      %p104 = scmp.eq.s32.totalorder %s16, 0
      %p105 = por %p103, %p104
      %p106 = scmp.ne.s32.totalorder %s92, %s93
      %p107 = scmp.eq.s32.totalorder %s17, 1
      %p108 = por %p106, %p107
      %p110 = scmp.ne.s32.totalorder %s93, %s109
      %p111 = scmp.eq.s32.totalorder %s17, 0
      %p112 = por %p110, %p111
      %p113 = scmp.le.s32.totalorder 1, %s11
      %p114 = scmp.lt.s32.totalorder %s11, 3
      %p115 = pnand %p113, %p114
      %p116 = pneg %p115
      // Predicated region
      $region9: #{net_generator_forward.8} parent=5 // pred_check
        _
      $region10: #{net_generator_forward.8} parent=5 // pred_check_branch
        %118 = sbr.rel (%p115) target = $region12
      $region11: #{net_generator_forward.8} parent=5 // pred_region
        %s119 = ssub.s32 %s11, 1
        // Predicated region
        $region13: #{net_generator_forward.8} parent=11 // pred_check
          %p120 = pneg %p58
        $region14: #{net_generator_forward.8} parent=11 // pred_check_branch
          %122 = sbr.rel (%p120) target = $region16
        $region15: #{net_generator_forward.8} parent=11 // pred_region
          %124 = vsyncadd [#allocation3], 0
          %s125 = sshll.u32 %s1, 4
          %s126 = int_to_ptr.hbm [resolvable:$true] %s125
          %s127 = sshll.u32 [#allocation2], 4
          %s128 = int_to_ptr.vmem [resolvable:$true] %s127
          %133 = dma.hbm_to_vmem [thread:$0]  %s126, 2048, %s128, [#allocation3], 256, 256, 16
        $region16: #{net_generator_forward.8} parent=11 // pred_fallthru
          _
        // Predicated region
        $region17: #{net_generator_forward.8} parent=11 // pred_check
          %p134 = pneg %p79
        $region18: #{net_generator_forward.8} parent=11 // pred_check_branch
          %136 = sbr.rel (%p134) target = $region20
        $region19: #{net_generator_forward.8} parent=11 // pred_region
          %138 = vsyncadd [#allocation5], 0
          %s140 = sshll.u32 %s2, 4
          %s141 = int_to_ptr.hbm [resolvable:$true] %s140
          %s142 = sshll.u32 [#allocation4], 4
          %s143 = int_to_ptr.vmem [resolvable:$true] %s142
          %145 = dma.hbm_to_vmem [thread:$0]  %s141, 16, %s143, [#allocation5]
        $region20: #{net_generator_forward.8} parent=11 // pred_fallthru
          _
      $region12: #{net_generator_forward.8} parent=5 // pred_fallthru
        _
      %p146 = scmp.lt.s32.totalorder %s11, 2
      // Predicated region
      $region21: #{net_generator_forward.8} parent=5 // pred_check
        %p147 = pneg %p146
      $region22: #{net_generator_forward.8} parent=5 // pred_check_branch
        %149 = sbr.rel (%p147) target = $region24
      $region23: #{net_generator_forward.8} parent=5 // pred_region
        // Predicated region
        $region25: #{net_generator_forward.8} parent=23 // pred_check
          %p150 = pneg %p31
        $region26: #{net_generator_forward.8} parent=23 // pred_check_branch
          %152 = sbr.rel (%p150) target = $region28
        $region27: #{net_generator_forward.8} parent=23 // pred_region
          %s153 = smul.u32 8, %s11
          %p154 = scmp.lt.s32.totalorder %s153, 15
          %s155 = scalar_select %p154, %s153, 15
          %s156 = smul.addr %s155, 4
          %s157 = scalar_lea.vmem %s0, %s156
          %s158 = smul.u32 8, %s11
        $region28: #{net_generator_forward.8} parent=23 // pred_fallthru
          _
      $region24: #{net_generator_forward.8} parent=5 // pred_fallthru
        _
      %p159 = scmp.le.s32.totalorder 1, %s11
      %p160 = scmp.lt.s32.totalorder %s11, 3
      %p161 = pnand %p159, %p160
      %p162 = pneg %p161
      // Predicated region
      $region29: #{net_generator_forward.8} parent=5 // pred_check
        _
      $region30: #{net_generator_forward.8} parent=5 // pred_check_branch
        %164 = sbr.rel (%p161) target = $region32
      $region31: #{net_generator_forward.8} parent=5 // pred_region
        %s165 = ssub.s32 %s11, 1
        // Predicated region
        $region33: #{net_generator_forward.8} parent=31 // pred_check
          %p166 = pneg %p58
        $region34: #{net_generator_forward.8} parent=31 // pred_check_branch
          %168 = sbr.rel (%p166) target = $region36
        $region35: #{net_generator_forward.8} parent=31 // pred_region
          %170 = dma.done [#allocation3], 2048
        $region36: #{net_generator_forward.8} parent=31 // pred_fallthru
          _
        // Predicated region
        $region37: #{net_generator_forward.8} parent=31 // pred_check
          %p171 = pneg %p79
        $region38: #{net_generator_forward.8} parent=31 // pred_check_branch
          %173 = sbr.rel (%p171) target = $region40
        $region39: #{net_generator_forward.8} parent=31 // pred_region
          %175 = dma.done [#allocation5], 16
        $region40: #{net_generator_forward.8} parent=31 // pred_fallthru
          _
        %s176 = smul.u32 8, %s16
        %p177 = scmp.lt.s32.totalorder %s176, 15
        %s178 = scalar_select %p177, %s176, 15
        %s179 = smul.addr %s178, 4
        %s180 = scalar_lea.vmem %s0, %s179
        %p181 = pneg %p37
        %p182 = pneg %p34
        %p183 = pneg %p58
        %p184 = pneg %p55
        %p185 = pneg %p79
        %p186 = pneg %p76
        %p187 = pneg %p105
        %p188 = pneg %p102
        %s189 = smul.u32 8, %s16
        %p190 = scmp.lt.s32.totalorder %s189, 15
        %s191 = scalar_select %p190, %s189, 15
        %s192 = smul.addr %s191, 4
        %s193 = smul.addr %s192, 4
        %s194 = scalar_lea.vmem %s3, %s193
        %s195 = smul.u32 8, %s16
        %p196 = scmp.lt.s32.totalorder %s195, 15
        %s197 = scalar_select %p196, %s195, 15
        %s198 = smul.addr %s197, 4
        %s199 = scalar_lea.vmem %s0, %s198
        %s200 = smul.u32 8, %s16
        %s201 = smul.u32 8, %s16
        %p202 = scmp.lt.s32.totalorder %s201, 15
        %s203 = scalar_select %p202, %s201, 15
        %s204 = smul.addr %s203, 4
        %s205 = smul.addr %s204, 4
        %s206 = scalar_lea.vmem %s3, %s205
        %s207 = smul.u32 8, %s16
        %v209 = vld [vmem:[%s199] sm:$0xf]
        %v210 = vld [vmem:[%s199 + $0x4] sm:$0xf]
        %v211 = vld [vmem:[%s199 + $0x8] sm:$0xf]
        %v212 = vld [vmem:[%s199 + $0xc] sm:$0xf]
        %v213 = vld [vmem:[%s199 + $0x10] sm:$0xf]
        %v214 = vld [vmem:[%s199 + $0x14] sm:$0xf]
        %v215 = vld [vmem:[%s199 + $0x18] sm:$0xf]
        %v216 = vld [vmem:[%s199 + $0x1c] sm:$0xf]
        %v217 = vunpack.c.l.bf16 %v209
        %v218 = vunpack.c.l.bf16 %v210
        %v219 = vunpack.c.l.bf16 %v211
        %v220 = vunpack.c.l.bf16 %v212
        %v221 = vunpack.c.l.bf16 %v213
        %v222 = vunpack.c.l.bf16 %v214
        %v223 = vunpack.c.l.bf16 %v215
        %v224 = vunpack.c.l.bf16 %v216
        %v225 = vld [vmem:[#allocation4] sm:$0x1]
        %v227 = vperm.slane %v225, 0
        %v229 = vadd.f32 %v217, %v227
        %v230 = vadd.f32 %v218, %v227
        %v231 = vadd.f32 %v219, %v227
        %v232 = vadd.f32 %v220, %v227
        %v233 = vadd.f32 %v221, %v227
        %v234 = vadd.f32 %v222, %v227
        %v235 = vadd.f32 %v223, %v227
        %v236 = vadd.f32 %v224, %v227
        %v237 = vmax.f32 %v229, 0.0
        %v238 = vmax.f32 %v230, 0.0
        %v239 = vmax.f32 %v231, 0.0
        %v240 = vmax.f32 %v232, 0.0
        %v241 = vmax.f32 %v233, 0.0
        %v242 = vmax.f32 %v234, 0.0
        %v243 = vmax.f32 %v235, 0.0
        %v244 = vmax.f32 %v236, 0.0
        %v245 = vpack.c.bf16 %v238, %v237
        %v246 = vpack.c.bf16 %v240, %v239
        %v247 = vpack.c.bf16 %v242, %v241
        %v248 = vpack.c.bf16 %v244, %v243
        %v249 = vld [vmem:[#allocation2] sm:$0xff]
        %v250 = vld [vmem:[#allocation2 + $0x8] sm:$0xff]
        %v251 = vld [vmem:[#allocation2 + $0x10] sm:$0xff]
        %v252 = vld [vmem:[#allocation2 + $0x18] sm:$0xff]
        %v253 = vld [vmem:[#allocation2 + $0x20] sm:$0xff]
        %v254 = vld [vmem:[#allocation2 + $0x28] sm:$0xff]
        %v255 = vld [vmem:[#allocation2 + $0x30] sm:$0xff]
        %v256 = vld [vmem:[#allocation2 + $0x38] sm:$0xff]
        %v257 = vld [vmem:[#allocation2 + $0x40] sm:$0xff]
        %v258 = vld [vmem:[#allocation2 + $0x48] sm:$0xff]
        %v259 = vld [vmem:[#allocation2 + $0x50] sm:$0xff]
        %v260 = vld [vmem:[#allocation2 + $0x58] sm:$0xff]
        %v261 = vld [vmem:[#allocation2 + $0x60] sm:$0xff]
        %v262 = vld [vmem:[#allocation2 + $0x68] sm:$0xff]
        %v263 = vld [vmem:[#allocation2 + $0x70] sm:$0xff]
        %v264 = vld [vmem:[#allocation2 + $0x78] sm:$0xff]
        %v281 = vunpack.c.l.b16 %v249
        %v282 = vunpack.c.h.b16 %v249
        %v283 = vunpack.c.l.b16 %v250
        %v284 = vunpack.c.h.b16 %v250
        %v285 = vunpack.c.l.b16 %v251
        %v286 = vunpack.c.h.b16 %v251
        %v287 = vunpack.c.l.b16 %v252
        %v288 = vunpack.c.h.b16 %v252
        %v289 = vunpack.c.l.b16 %v253
        %v290 = vunpack.c.h.b16 %v253
        %v291 = vunpack.c.l.b16 %v254
        %v292 = vunpack.c.h.b16 %v254
        %v293 = vunpack.c.l.b16 %v255
        %v294 = vunpack.c.h.b16 %v255
        %v295 = vunpack.c.l.b16 %v256
        %v296 = vunpack.c.h.b16 %v256
        %v297 = vunpack.c.l.b16 %v257
        %v298 = vunpack.c.h.b16 %v257
        %v299 = vunpack.c.l.b16 %v258
        %v300 = vunpack.c.h.b16 %v258
        %v301 = vunpack.c.l.b16 %v259
        %v302 = vunpack.c.h.b16 %v259
        %v303 = vunpack.c.l.b16 %v260
        %v304 = vunpack.c.h.b16 %v260
        %v305 = vunpack.c.l.b16 %v261
        %v306 = vunpack.c.h.b16 %v261
        %v307 = vunpack.c.l.b16 %v262
        %v308 = vunpack.c.h.b16 %v262
        %v309 = vunpack.c.l.b16 %v263
        %v310 = vunpack.c.h.b16 %v263
        %v311 = vunpack.c.l.b16 %v264
        %v312 = vunpack.c.h.b16 %v264
        %v313 = vpack.c.b16 %v285, %v281
        %v314 = vpack.c.b16 %v286, %v282
        %v315 = vpack.c.b16 %v287, %v283
        %v316 = vpack.c.b16 %v288, %v284
        %v317 = vpack.c.b16 %v293, %v289
        %v318 = vpack.c.b16 %v294, %v290
        %v319 = vpack.c.b16 %v295, %v291
        %v320 = vpack.c.b16 %v296, %v292
        %v321 = vpack.c.b16 %v301, %v297
        %v322 = vpack.c.b16 %v302, %v298
        %v323 = vpack.c.b16 %v303, %v299
        %v324 = vpack.c.b16 %v304, %v300
        %v325 = vpack.c.b16 %v309, %v305
        %v326 = vpack.c.b16 %v310, %v306
        %v327 = vpack.c.b16 %v311, %v307
        %v328 = vpack.c.b16 %v312, %v308
        %vm345 = vcmask 523264
        %v347 = vsel %vm345, %v245, 0
        %v350 = vsel %vm345, %v246, 0
        %v353 = vsel %vm345, %v247, 0
        %v356 = vsel %vm345, %v248, 0
        %358 = vmatpush.bf16.msra.mxu0 0
        %359 = vmatpush.bf16.msra.mxu0 0
        %360 = vmatpush.bf16.msra.mxu0 0
        %361 = vmatpush.bf16.msra.mxu0 0
        %362 = vmatpush.bf16.msra.mxu0 %v325
        %363 = vmatpush.bf16.msra.mxu0 %v321
        %364 = vmatpush.bf16.msra.mxu0 %v317
        %365 = vmatpush.bf16.msra.mxu0 %v313
        %366 = vmatmul.bf16.gmra.mxu0 %v347
        %v367 = vpop.f32.mrf.mxu0
        %v368 = vadd.f32 0.0, %v367
        %v369 = vpop.f32.mrf.mxu0
        %v370 = vadd.f32 0.0, %v369
        %371 = vmatmul.bf16.gmra.mxu0 %v350
        %v372 = vpop.f32.mrf.mxu0
        %v373 = vadd.f32 0.0, %v372
        %v374 = vpop.f32.mrf.mxu0
        %v375 = vadd.f32 0.0, %v374
        %376 = vmatmul.bf16.gmra.mxu0 %v353
        %v377 = vpop.f32.mrf.mxu0
        %v378 = vadd.f32 0.0, %v377
        %v379 = vpop.f32.mrf.mxu0
        %v380 = vadd.f32 0.0, %v379
        %381 = vmatmul.bf16.gmra.mxu0 %v356
        %v382 = vpop.f32.mrf.mxu0
        %v383 = vadd.f32 0.0, %v382
        %v384 = vpop.f32.mrf.mxu0
        %v385 = vadd.f32 0.0, %v384
        %386 = vdwg.mxu0
        %387 = vmatpush.bf16.msra.mxu0 0
        %388 = vmatpush.bf16.msra.mxu0 0
        %389 = vmatpush.bf16.msra.mxu0 0
        %390 = vmatpush.bf16.msra.mxu0 0
        %391 = vmatpush.bf16.msra.mxu0 %v326
        %392 = vmatpush.bf16.msra.mxu0 %v322
        %393 = vmatpush.bf16.msra.mxu0 %v318
        %394 = vmatpush.bf16.msra.mxu0 %v314
        %395 = vmatmul.bf16.gmra.mxu0 %v347
        %v396 = vpop.f32.mrf.mxu0
        %v397 = vadd.f32 0.0, %v396
        %v398 = vpop.f32.mrf.mxu0
        %v399 = vadd.f32 0.0, %v398
        %400 = vmatmul.bf16.gmra.mxu0 %v350
        %v401 = vpop.f32.mrf.mxu0
        %v402 = vadd.f32 0.0, %v401
        %v403 = vpop.f32.mrf.mxu0
        %v404 = vadd.f32 0.0, %v403
        %405 = vmatmul.bf16.gmra.mxu0 %v353
        %v406 = vpop.f32.mrf.mxu0
        %v407 = vadd.f32 0.0, %v406
        %v408 = vpop.f32.mrf.mxu0
        %v409 = vadd.f32 0.0, %v408
        %410 = vmatmul.bf16.gmra.mxu0 %v356
        %v411 = vpop.f32.mrf.mxu0
        %v412 = vadd.f32 0.0, %v411
        %v413 = vpop.f32.mrf.mxu0
        %v414 = vadd.f32 0.0, %v413
        %415 = vdwg.mxu0
        %416 = vmatpush.bf16.msra.mxu0 0
        %417 = vmatpush.bf16.msra.mxu0 0
        %418 = vmatpush.bf16.msra.mxu0 0
        %419 = vmatpush.bf16.msra.mxu0 0
        %420 = vmatpush.bf16.msra.mxu0 %v327
        %421 = vmatpush.bf16.msra.mxu0 %v323
        %422 = vmatpush.bf16.msra.mxu0 %v319
        %423 = vmatpush.bf16.msra.mxu0 %v315
        %424 = vmatmul.bf16.gmra.mxu0 %v347
        %v425 = vpop.f32.mrf.mxu0
        %v426 = vadd.f32 0.0, %v425
        %v427 = vpop.f32.mrf.mxu0
        %v428 = vadd.f32 0.0, %v427
        %429 = vmatmul.bf16.gmra.mxu0 %v350
        %v430 = vpop.f32.mrf.mxu0
        %v431 = vadd.f32 0.0, %v430
        %v432 = vpop.f32.mrf.mxu0
        %v433 = vadd.f32 0.0, %v432
        %434 = vmatmul.bf16.gmra.mxu0 %v353
        %v435 = vpop.f32.mrf.mxu0
        %v436 = vadd.f32 0.0, %v435
        %v437 = vpop.f32.mrf.mxu0
        %v438 = vadd.f32 0.0, %v437
        %439 = vmatmul.bf16.gmra.mxu0 %v356
        %v440 = vpop.f32.mrf.mxu0
        %v441 = vadd.f32 0.0, %v440
        %v442 = vpop.f32.mrf.mxu0
        %v443 = vadd.f32 0.0, %v442
        %444 = vdwg.mxu0
        %445 = vmatpush.bf16.msra.mxu0 0
        %446 = vmatpush.bf16.msra.mxu0 0
        %447 = vmatpush.bf16.msra.mxu0 0
        %448 = vmatpush.bf16.msra.mxu0 0
        %449 = vmatpush.bf16.msra.mxu0 %v328
        %450 = vmatpush.bf16.msra.mxu0 %v324
        %451 = vmatpush.bf16.msra.mxu0 %v320
        %452 = vmatpush.bf16.msra.mxu0 %v316
        %453 = vmatmul.bf16.gmra.mxu0 %v347
        %v454 = vpop.f32.mrf.mxu0
        %v455 = vadd.f32 0.0, %v454
        %v456 = vpop.f32.mrf.mxu0
        %v457 = vadd.f32 0.0, %v456
        %458 = vmatmul.bf16.gmra.mxu0 %v350
        %v459 = vpop.f32.mrf.mxu0
        %v460 = vadd.f32 0.0, %v459
        %v461 = vpop.f32.mrf.mxu0
        %v462 = vadd.f32 0.0, %v461
        %463 = vmatmul.bf16.gmra.mxu0 %v353
        %v464 = vpop.f32.mrf.mxu0
        %v465 = vadd.f32 0.0, %v464
        %v466 = vpop.f32.mrf.mxu0
        %v467 = vadd.f32 0.0, %v466
        %468 = vmatmul.bf16.gmra.mxu0 %v356
        %v469 = vpop.f32.mrf.mxu0
        %v470 = vadd.f32 0.0, %v469
        %v471 = vpop.f32.mrf.mxu0
        %v472 = vadd.f32 0.0, %v471
        %473 = vdwg.mxu0
        %v474 = vpack.c.bf16 %v397, %v368
        %v475 = vpack.c.bf16 %v455, %v426
        %v476 = vpack.c.bf16 %v399, %v370
        %v477 = vpack.c.bf16 %v457, %v428
        %v478 = vpack.c.bf16 %v402, %v373
        %v479 = vpack.c.bf16 %v460, %v431
        %v480 = vpack.c.bf16 %v404, %v375
        %v481 = vpack.c.bf16 %v462, %v433
        %v482 = vpack.c.bf16 %v407, %v378
        %v483 = vpack.c.bf16 %v465, %v436
        %v484 = vpack.c.bf16 %v409, %v380
        %v485 = vpack.c.bf16 %v467, %v438
        %v486 = vpack.c.bf16 %v412, %v383
        %v487 = vpack.c.bf16 %v470, %v441
        %v488 = vpack.c.bf16 %v414, %v385
        %v489 = vpack.c.bf16 %v472, %v443
        %490 = vst [vmem:[%s206] sm:$0xff] %v474
        %491 = vst [vmem:[%s206 + $0x8] sm:$0xff] %v475
        %492 = vst [vmem:[%s206 + $0x10] sm:$0xff] %v476
        %493 = vst [vmem:[%s206 + $0x18] sm:$0xff] %v477
        %494 = vst [vmem:[%s206 + $0x20] sm:$0xff] %v478
        %495 = vst [vmem:[%s206 + $0x28] sm:$0xff] %v479
        %496 = vst [vmem:[%s206 + $0x30] sm:$0xff] %v480
        %497 = vst [vmem:[%s206 + $0x38] sm:$0xff] %v481
        %498 = vst [vmem:[%s206 + $0x40] sm:$0xff] %v482
        %499 = vst [vmem:[%s206 + $0x48] sm:$0xff] %v483
        %500 = vst [vmem:[%s206 + $0x50] sm:$0xff] %v484
        %501 = vst [vmem:[%s206 + $0x58] sm:$0xff] %v485
        %502 = vst [vmem:[%s206 + $0x60] sm:$0xff] %v486
        %503 = vst [vmem:[%s206 + $0x68] sm:$0xff] %v487
        %504 = vst [vmem:[%s206 + $0x70] sm:$0xff] %v488
        %505 = vst [vmem:[%s206 + $0x78] sm:$0xff] %v489
        %s506 = smul.u32 8, %s16
        %p507 = scmp.lt.s32.totalorder %s506, 15
        %s508 = scalar_select %p507, %s506, 15
        %s509 = smul.addr %s508, 4
        %s510 = smul.addr %s509, 4
        %s511 = scalar_lea.vmem %s3, %s510
        // Predicated region
        $region41: #{net_generator_forward.8} parent=31 // pred_check
          %p512 = pneg %p102
        $region42: #{net_generator_forward.8} parent=31 // pred_check_branch
          %514 = sbr.rel (%p512) target = $region44
        $region43: #{net_generator_forward.8} parent=31 // pred_region
          %s515 = smul.u32 8, %s16
        $region44: #{net_generator_forward.8} parent=31 // pred_fallthru
          _
      $region32: #{net_generator_forward.8} parent=5 // pred_fallthru
        _
      %p516 = scmp.le.s32.totalorder 2, %s11
      // Predicated region
      $region45: #{net_generator_forward.8} parent=5 // pred_check
        %p517 = pneg %p516
      $region46: #{net_generator_forward.8} parent=5 // pred_check_branch
        %519 = sbr.rel (%p517) target = $region48
      $region47: #{net_generator_forward.8} parent=5 // pred_region
        %s520 = ssub.s32 %s11, 2
        // Predicated region
        $region49: #{net_generator_forward.8} parent=47 // pred_check
          %p521 = pneg %p108
        $region50: #{net_generator_forward.8} parent=47 // pred_check_branch
          %523 = sbr.rel (%p521) target = $region52
        $region51: #{net_generator_forward.8} parent=47 // pred_region
          %s524 = smul.u32 8, %s17
          %p525 = scmp.lt.s32.totalorder %s524, 15
          %s526 = scalar_select %p525, %s524, 15
          %s527 = smul.addr %s526, 4
          %s528 = smul.addr %s527, 4
          %s529 = scalar_lea.vmem %s3, %s528
        $region52: #{net_generator_forward.8} parent=47 // pred_fallthru
          _
      $region48: #{net_generator_forward.8} parent=5 // pred_fallthru
        _
    $region6: #{net_generator_forward.8} parent=1 // loop_footer
      %s15 = sadd.s32 1, %s11
    $region7: #{net_generator_forward.8} parent=1 // loop_footer_branch
      %10 = sbr.rel target = $region3
    $region8: #{net_generator_forward.8} parent=1 // loop_exit
      _
    %530 = vsyncpa [#allocation3], 1
    %s531 = scalar_lea.sflag [#allocation3], 1
    %532 = vsyncpa %s531, 1
    %533 = vsyncpa [#allocation5], 1

// kernel: net_generator_forward.9
$region0: #{net_generator_forward.9}
  #allocation0 [shape = 'u32[]', space=smem, size = 0x4, offset = 0x4, fixed_abs, tag = 'smem constant byte address 0x4 - core index']
  #allocation1 [shape = 'u32[72,128]{1,0:T(1,128)}', space=vmem, size = 0x9000, scoped, tag = 'internal scratch']
  %s0 = inlined_call_operand.vmem [shape: bf16[512,32], index: 0, kind: input, shape index: {}]
  %s1 = inlined_call_operand.vmem [shape: bf16[32,256], index: 1, kind: input, shape index: {}]
  %s2 = inlined_call_operand.vmem [shape: f32[1,32], index: 2, kind: input, shape index: {}]
  %s3 = inlined_call_operand.vmem [shape: bf16[512,256], index: 3, kind: output, shape index: {}]
  %s4 = sld [smem:[#allocation0]]
  $region45: #{net_generator_forward.9} parent=0
    _
  %s6 = ssub.s32 1, %s4
  %s7 = scalar_select 0, %s6, %s4
  loop: start=0, step=1, limit=4
  $region2: #{net_generator_forward.9} parent=0 // loop_pre_header
    _
  $region3: #{net_generator_forward.9} parent=0 // loop_header
    %s9 = sphi 0, %s13
    %p10 = scmp.ge.s32.totalorder %s9, 4
    %s19 = sphi 0, %s21
    %s22 = sphi 0, %s19
    %s23 = sphi 0, %s22
    %s39 = sphi 0, %s23
    %s43 = sphi 0, %s43
    %s45 = sphi 0, %s43
    %s46 = sphi 0, %s45
    %s60 = sphi 0, %s46
    %s64 = sphi 0, %s64
    %s66 = sphi 0, %s64
    %s67 = sphi 0, %s66
    %s81 = sphi 0, %s67
    %s87 = sphi 0, %s89
    %s90 = sphi 0, %s87
    %s91 = sphi 0, %s90
    %s107 = sphi 0, %s91
  $region4: #{net_generator_forward.9} parent=0 // loop_header_branch
    %12 = sbr.rel (%p10) target = $region8
  $region5: #{net_generator_forward.9} parent=0 // loop_body
    %s14 = ssub.s32 %s9, 1
    %s15 = ssub.s32 %s9, 2
    %s16 = sadd.s32 %s9, 1
    %s17 = ssub.s32 %s9, %s16
    %p18 = scmp.eq.s32.totalorder %s17, 0
    %s20 = sadd.s32 %s19, 1
    %s21 = scalar_select %p18, %s19, %s20
    %p24 = pneg %p18
    %p25 = scmp.eq.s32.totalorder %s9, 1
    %p26 = por %p24, %p25
    %p27 = scmp.ne.s32.totalorder %s19, %s22
    %p28 = scmp.eq.s32.totalorder %s9, 0
    %p29 = por %p27, %p28
    %p30 = scmp.ne.s32.totalorder %s19, %s22
    %p31 = scmp.eq.s32.totalorder %s14, 1
    %p32 = por %p30, %p31
    %p33 = scmp.ne.s32.totalorder %s22, %s23
    %p34 = scmp.eq.s32.totalorder %s14, 0
    %p35 = por %p33, %p34
    %p36 = scmp.ne.s32.totalorder %s22, %s23
    %p37 = scmp.eq.s32.totalorder %s15, 1
    %p38 = por %p36, %p37
    %p40 = scmp.ne.s32.totalorder %s23, %s39
    %p41 = scmp.eq.s32.totalorder %s15, 0
    %p42 = por %p40, %p41
    %s44 = sadd.s32 %s43, 1
    %p47 = scmp.eq.s32.totalorder %s9, 1
    %p48 = scmp.ne.s32.totalorder %s43, %s45
    %p49 = scmp.eq.s32.totalorder %s9, 0
    %p50 = por %p48, %p49
    %p51 = scmp.ne.s32.totalorder %s43, %s45
    %p52 = scmp.eq.s32.totalorder %s14, 1
    %p53 = por %p51, %p52
    %p54 = scmp.ne.s32.totalorder %s45, %s46
    %p55 = scmp.eq.s32.totalorder %s14, 0
    %p56 = por %p54, %p55
    %p57 = scmp.ne.s32.totalorder %s45, %s46
    %p58 = scmp.eq.s32.totalorder %s15, 1
    %p59 = por %p57, %p58
    %p61 = scmp.ne.s32.totalorder %s46, %s60
    %p62 = scmp.eq.s32.totalorder %s15, 0
    %p63 = por %p61, %p62
    %s65 = sadd.s32 %s64, 1
    %p68 = scmp.eq.s32.totalorder %s9, 1
    %p69 = scmp.ne.s32.totalorder %s64, %s66
    %p70 = scmp.eq.s32.totalorder %s9, 0
    %p71 = por %p69, %p70
    %p72 = scmp.ne.s32.totalorder %s64, %s66
    %p73 = scmp.eq.s32.totalorder %s14, 1
    %p74 = por %p72, %p73
    %p75 = scmp.ne.s32.totalorder %s66, %s67
    %p76 = scmp.eq.s32.totalorder %s14, 0
    %p77 = por %p75, %p76
    %p78 = scmp.ne.s32.totalorder %s66, %s67
    %p79 = scmp.eq.s32.totalorder %s15, 1
    %p80 = por %p78, %p79
    %p82 = scmp.ne.s32.totalorder %s67, %s81
    %p83 = scmp.eq.s32.totalorder %s15, 0
    %p84 = por %p82, %p83
    %s85 = ssub.s32 %s9, %s16
    %p86 = scmp.eq.s32.totalorder %s85, 0
    %s88 = sadd.s32 %s87, 1
    %s89 = scalar_select %p86, %s87, %s88
    %p92 = pneg %p86
    %p93 = scmp.eq.s32.totalorder %s9, 1
    %p94 = por %p92, %p93
    %p95 = scmp.ne.s32.totalorder %s87, %s90
    %p96 = scmp.eq.s32.totalorder %s9, 0
    %p97 = por %p95, %p96
    %p98 = scmp.ne.s32.totalorder %s87, %s90
    %p99 = scmp.eq.s32.totalorder %s14, 1
    %p100 = por %p98, %p99
    %p101 = scmp.ne.s32.totalorder %s90, %s91
    %p102 = scmp.eq.s32.totalorder %s14, 0
    %p103 = por %p101, %p102
    %p104 = scmp.ne.s32.totalorder %s90, %s91
    %p105 = scmp.eq.s32.totalorder %s15, 1
    %p106 = por %p104, %p105
    %p108 = scmp.ne.s32.totalorder %s91, %s107
    %p109 = scmp.eq.s32.totalorder %s15, 0
    %p110 = por %p108, %p109
    %p111 = scmp.le.s32.totalorder 1, %s9
    %p112 = scmp.lt.s32.totalorder %s9, 3
    %p113 = pnand %p111, %p112
    %p114 = pneg %p113
    // Predicated region
    $region9: #{net_generator_forward.9} parent=5 // pred_check
      _
    $region10: #{net_generator_forward.9} parent=5 // pred_check_branch
      %116 = sbr.rel (%p113) target = $region12
    $region11: #{net_generator_forward.9} parent=5 // pred_region
      %s117 = ssub.s32 %s9, 1
      // Predicated region
      $region13: #{net_generator_forward.9} parent=11 // pred_check
        %p118 = pneg %p56
      $region14: #{net_generator_forward.9} parent=11 // pred_check_branch
        %120 = sbr.rel (%p118) target = $region16
      $region15: #{net_generator_forward.9} parent=11 // pred_region
        _
      $region16: #{net_generator_forward.9} parent=11 // pred_fallthru
        _
      // Predicated region
      $region17: #{net_generator_forward.9} parent=11 // pred_check
        %p121 = pneg %p77
      $region18: #{net_generator_forward.9} parent=11 // pred_check_branch
        %123 = sbr.rel (%p121) target = $region20
      $region19: #{net_generator_forward.9} parent=11 // pred_region
        _
      $region20: #{net_generator_forward.9} parent=11 // pred_fallthru
        _
    $region12: #{net_generator_forward.9} parent=5 // pred_fallthru
      _
    %p124 = scmp.lt.s32.totalorder %s9, 2
    // Predicated region
    $region21: #{net_generator_forward.9} parent=5 // pred_check
      %p125 = pneg %p124
    $region22: #{net_generator_forward.9} parent=5 // pred_check_branch
      %127 = sbr.rel (%p125) target = $region24
    $region23: #{net_generator_forward.9} parent=5 // pred_region
      // Predicated region
      $region25: #{net_generator_forward.9} parent=23 // pred_check
        %p128 = pneg %p29
      $region26: #{net_generator_forward.9} parent=23 // pred_check_branch
        %130 = sbr.rel (%p128) target = $region28
      $region27: #{net_generator_forward.9} parent=23 // pred_region
        %s131 = smul.u32 32, %s9
        %p132 = scmp.lt.s32.totalorder %s131, 63
        %s133 = scalar_select %p132, %s131, 63
        %s134 = smul.addr %s133, 4
        %s135 = scalar_lea.vmem %s0, %s134
        %s136 = smul.u32 32, %s9
      $region28: #{net_generator_forward.9} parent=23 // pred_fallthru
        _
    $region24: #{net_generator_forward.9} parent=5 // pred_fallthru
      _
    %p137 = scmp.le.s32.totalorder 1, %s9
    %p138 = scmp.lt.s32.totalorder %s9, 3
    %p139 = pnand %p137, %p138
    %p140 = pneg %p139
    // Predicated region
    $region29: #{net_generator_forward.9} parent=5 // pred_check
      _
    $region30: #{net_generator_forward.9} parent=5 // pred_check_branch
      %142 = sbr.rel (%p139) target = $region32
    $region31: #{net_generator_forward.9} parent=5 // pred_region
      %s143 = ssub.s32 %s9, 1
      %s144 = smul.u32 32, %s14
      %p145 = scmp.lt.s32.totalorder %s144, 63
      %s146 = scalar_select %p145, %s144, 63
      %s147 = smul.addr %s146, 4
      %s148 = scalar_lea.vmem %s0, %s147
      %p149 = pneg %p35
      %p150 = pneg %p32
      %p151 = pneg %p56
      %p152 = pneg %p53
      %p153 = pneg %p77
      %p154 = pneg %p74
      %p155 = pneg %p103
      %p156 = pneg %p100
      %s157 = smul.u32 32, %s14
      %p158 = scmp.lt.s32.totalorder %s157, 63
      %s159 = scalar_select %p158, %s157, 63
      %s160 = smul.addr %s159, 2
      %s161 = smul.addr %s160, 4
      %s162 = scalar_lea.vmem %s3, %s161
      %s163 = smul.u32 32, %s14
      %p164 = scmp.lt.s32.totalorder %s163, 63
      %s165 = scalar_select %p164, %s163, 63
      %s166 = smul.addr %s165, 4
      %s167 = scalar_lea.vmem %s0, %s166
      %s168 = smul.u32 32, %s14
      %s169 = smul.u32 32, %s14
      %p170 = scmp.lt.s32.totalorder %s169, 63
      %s171 = scalar_select %p170, %s169, 63
      %s172 = smul.addr %s171, 2
      %s173 = smul.addr %s172, 4
      %s174 = scalar_lea.vmem %s3, %s173
      %s175 = smul.u32 32, %s14
      %v177 = vld [vmem:[%s167] sm:$0xf]
      %v178 = vld [vmem:[%s167 + $0x4] sm:$0xf]
      %v179 = vld [vmem:[%s167 + $0x8] sm:$0xf]
      %v180 = vld [vmem:[%s167 + $0xc] sm:$0xf]
      %v181 = vld [vmem:[%s167 + $0x10] sm:$0xf]
      %v182 = vld [vmem:[%s167 + $0x14] sm:$0xf]
      %v183 = vld [vmem:[%s167 + $0x18] sm:$0xf]
      %v184 = vld [vmem:[%s167 + $0x1c] sm:$0xf]
      %v185 = vld [vmem:[%s167 + $0x20] sm:$0xf]
      %v186 = vld [vmem:[%s167 + $0x24] sm:$0xf]
      %v187 = vld [vmem:[%s167 + $0x28] sm:$0xf]
      %v188 = vld [vmem:[%s167 + $0x2c] sm:$0xf]
      %v189 = vld [vmem:[%s167 + $0x30] sm:$0xf]
      %v190 = vld [vmem:[%s167 + $0x34] sm:$0xf]
      %v191 = vld [vmem:[%s167 + $0x38] sm:$0xf]
      %v192 = vld [vmem:[%s167 + $0x3c] sm:$0xf]
      %v193 = vld [vmem:[%s167 + $0x40] sm:$0xf]
      %v194 = vld [vmem:[%s167 + $0x44] sm:$0xf]
      %v195 = vld [vmem:[%s167 + $0x48] sm:$0xf]
      %v196 = vld [vmem:[%s167 + $0x4c] sm:$0xf]
      %v197 = vld [vmem:[%s167 + $0x50] sm:$0xf]
      %v198 = vld [vmem:[%s167 + $0x54] sm:$0xf]
      %v199 = vld [vmem:[%s167 + $0x58] sm:$0xf]
      %v200 = vld [vmem:[%s167 + $0x5c] sm:$0xf]
      %v201 = vld [vmem:[%s167 + $0x60] sm:$0xf]
      %v202 = vld [vmem:[%s167 + $0x64] sm:$0xf]
      %v203 = vld [vmem:[%s167 + $0x68] sm:$0xf]
      %v204 = vld [vmem:[%s167 + $0x6c] sm:$0xf]
      %v205 = vld [vmem:[%s167 + $0x70] sm:$0xf]
      %v206 = vld [vmem:[%s167 + $0x74] sm:$0xf]
      %v207 = vld [vmem:[%s167 + $0x78] sm:$0xf]
      %v208 = vld [vmem:[%s167 + $0x7c] sm:$0xf]
      %v209 = vunpack.c.l.bf16 %v177
      %v210 = vunpack.c.l.bf16 %v178
      %v211 = vunpack.c.l.bf16 %v179
      %v212 = vunpack.c.l.bf16 %v180
      %v213 = vunpack.c.l.bf16 %v181
      %v214 = vunpack.c.l.bf16 %v182
      %v215 = vunpack.c.l.bf16 %v183
      %v216 = vunpack.c.l.bf16 %v184
      %v217 = vunpack.c.l.bf16 %v185
      %v218 = vunpack.c.l.bf16 %v186
      %v219 = vunpack.c.l.bf16 %v187
      %v220 = vunpack.c.l.bf16 %v188
      %v221 = vunpack.c.l.bf16 %v189
      %v222 = vunpack.c.l.bf16 %v190
      %v223 = vunpack.c.l.bf16 %v191
      %v224 = vunpack.c.l.bf16 %v192
      %v225 = vunpack.c.l.bf16 %v193
      %v226 = vunpack.c.l.bf16 %v194
      %v227 = vunpack.c.l.bf16 %v195
      %v228 = vunpack.c.l.bf16 %v196
      %v229 = vunpack.c.l.bf16 %v197
      %v230 = vunpack.c.l.bf16 %v198
      %v231 = vunpack.c.l.bf16 %v199
      %v232 = vunpack.c.l.bf16 %v200
      %v233 = vunpack.c.l.bf16 %v201
      %v234 = vunpack.c.l.bf16 %v202
      %v235 = vunpack.c.l.bf16 %v203
      %v236 = vunpack.c.l.bf16 %v204
      %v237 = vunpack.c.l.bf16 %v205
      %v238 = vunpack.c.l.bf16 %v206
      %v239 = vunpack.c.l.bf16 %v207
      %v240 = vunpack.c.l.bf16 %v208
      %v241 = vld [vmem:[%s2] sm:$0x1]
      %v243 = vperm.slane %v241, 0
      %v245 = vadd.f32 %v209, %v243
      %v246 = vadd.f32 %v210, %v243
      %v247 = vadd.f32 %v211, %v243
      %v248 = vadd.f32 %v212, %v243
      %v249 = vadd.f32 %v213, %v243
      %v250 = vadd.f32 %v214, %v243
      %v251 = vadd.f32 %v215, %v243
      %v252 = vadd.f32 %v216, %v243
      %v253 = vadd.f32 %v217, %v243
      %v254 = vadd.f32 %v218, %v243
      %v255 = vadd.f32 %v219, %v243
      %v256 = vadd.f32 %v220, %v243
      %v257 = vadd.f32 %v221, %v243
      %v258 = vadd.f32 %v222, %v243
      %v259 = vadd.f32 %v223, %v243
      %v260 = vadd.f32 %v224, %v243
      %v261 = vadd.f32 %v225, %v243
      %v262 = vadd.f32 %v226, %v243
      %v263 = vadd.f32 %v227, %v243
      %v264 = vadd.f32 %v228, %v243
      %v265 = vadd.f32 %v229, %v243
      %v266 = vadd.f32 %v230, %v243
      %v267 = vadd.f32 %v231, %v243
      %v268 = vadd.f32 %v232, %v243
      %v269 = vadd.f32 %v233, %v243
      %v270 = vadd.f32 %v234, %v243
      %v271 = vadd.f32 %v235, %v243
      %v272 = vadd.f32 %v236, %v243
      %v273 = vadd.f32 %v237, %v243
      %v274 = vadd.f32 %v238, %v243
      %v275 = vadd.f32 %v239, %v243
      %v276 = vadd.f32 %v240, %v243
      %v277 = vmax.f32 %v245, 0.0
      %v278 = vmax.f32 %v246, 0.0
      %v279 = vmax.f32 %v247, 0.0
      %v280 = vmax.f32 %v248, 0.0
      %v281 = vmax.f32 %v249, 0.0
      %v282 = vmax.f32 %v250, 0.0
      %v283 = vmax.f32 %v251, 0.0
      %v284 = vmax.f32 %v252, 0.0
      %v285 = vmax.f32 %v253, 0.0
      %v286 = vmax.f32 %v254, 0.0
      %v287 = vmax.f32 %v255, 0.0
      %v288 = vmax.f32 %v256, 0.0
      %v289 = vmax.f32 %v257, 0.0
      %v290 = vmax.f32 %v258, 0.0
      %v291 = vmax.f32 %v259, 0.0
      %v292 = vmax.f32 %v260, 0.0
      %v293 = vmax.f32 %v261, 0.0
      %v294 = vmax.f32 %v262, 0.0
      %v295 = vmax.f32 %v263, 0.0
      %v296 = vmax.f32 %v264, 0.0
      %v297 = vmax.f32 %v265, 0.0
      %v298 = vmax.f32 %v266, 0.0
      %v299 = vmax.f32 %v267, 0.0
      %v300 = vmax.f32 %v268, 0.0
      %v301 = vmax.f32 %v269, 0.0
      %v302 = vmax.f32 %v270, 0.0
      %v303 = vmax.f32 %v271, 0.0
      %v304 = vmax.f32 %v272, 0.0
      %v305 = vmax.f32 %v273, 0.0
      %v306 = vmax.f32 %v274, 0.0
      %v307 = vmax.f32 %v275, 0.0
      %v308 = vmax.f32 %v276, 0.0
      %v309 = vpack.c.bf16 %v278, %v277
      %v310 = vpack.c.bf16 %v280, %v279
      %v311 = vpack.c.bf16 %v282, %v281
      %v312 = vpack.c.bf16 %v284, %v283
      %v313 = vpack.c.bf16 %v286, %v285
      %v314 = vpack.c.bf16 %v288, %v287
      %v315 = vpack.c.bf16 %v290, %v289
      %v316 = vpack.c.bf16 %v292, %v291
      %v317 = vpack.c.bf16 %v294, %v293
      %v318 = vpack.c.bf16 %v296, %v295
      %v319 = vpack.c.bf16 %v298, %v297
      %v320 = vpack.c.bf16 %v300, %v299
      %v321 = vpack.c.bf16 %v302, %v301
      %v322 = vpack.c.bf16 %v304, %v303
      %v323 = vpack.c.bf16 %v306, %v305
      %v324 = vpack.c.bf16 %v308, %v307
      %v325 = vld [vmem:[%s1] sm:$0xff]
      %v326 = vld [vmem:[%s1 + $0x8] sm:$0xff]
      %v327 = vld [vmem:[%s1 + $0x10] sm:$0xff]
      %v328 = vld [vmem:[%s1 + $0x18] sm:$0xff]
      %v333 = vunpack.c.l.b16 %v325
      %v334 = vunpack.c.h.b16 %v325
      %v335 = vunpack.c.l.b16 %v326
      %v336 = vunpack.c.h.b16 %v326
      %v337 = vunpack.c.l.b16 %v327
      %v338 = vunpack.c.h.b16 %v327
      %v339 = vunpack.c.l.b16 %v328
      %v340 = vunpack.c.h.b16 %v328
      %v341 = vpack.c.b16 %v335, %v333
      %v342 = vpack.c.b16 %v336, %v334
      %v343 = vpack.c.b16 %v339, %v337
      %v344 = vpack.c.b16 %v340, %v338
      %vm349 = vcmask 261120
      %v351 = vsel %vm349, %v309, 0
      %v354 = vsel %vm349, %v310, 0
      %v357 = vsel %vm349, %v311, 0
      %v360 = vsel %vm349, %v312, 0
      %v363 = vsel %vm349, %v313, 0
      %v366 = vsel %vm349, %v314, 0
      %v369 = vsel %vm349, %v315, 0
      %v372 = vsel %vm349, %v316, 0
      %v375 = vsel %vm349, %v317, 0
      %v378 = vsel %vm349, %v318, 0
      %v381 = vsel %vm349, %v319, 0
      %v384 = vsel %vm349, %v320, 0
      %v387 = vsel %vm349, %v321, 0
      %v390 = vsel %vm349, %v322, 0
      %v393 = vsel %vm349, %v323, 0
      %v396 = vsel %vm349, %v324, 0
      %398 = vmatpush.bf16.msra.mxu0 0
      %399 = vmatpush.bf16.msra.mxu0 0
      %400 = vmatpush.bf16.msra.mxu0 0
      %401 = vmatpush.bf16.msra.mxu0 0
      %402 = vmatpush.bf16.msra.mxu0 0
      %403 = vmatpush.bf16.msra.mxu0 0
      %404 = vmatpush.bf16.msra.mxu0 %v343
      %405 = vmatpush.bf16.msra.mxu0 %v341
      %406 = vmatmul.bf16.gmra.mxu0 %v351
      %v407 = vpop.f32.mrf.mxu0
      %v408 = vadd.f32 0.0, %v407
      %v409 = vpop.f32.mrf.mxu0
      %v410 = vadd.f32 0.0, %v409
      %411 = vmatmul.bf16.gmra.mxu0 %v354
      %v412 = vpop.f32.mrf.mxu0
      %v413 = vadd.f32 0.0, %v412
      %v414 = vpop.f32.mrf.mxu0
      %v415 = vadd.f32 0.0, %v414
      %416 = vmatmul.bf16.gmra.mxu0 %v357
      %v417 = vpop.f32.mrf.mxu0
      %v418 = vadd.f32 0.0, %v417
      %v419 = vpop.f32.mrf.mxu0
      %v420 = vadd.f32 0.0, %v419
      %421 = vmatmul.bf16.gmra.mxu0 %v360
      %v422 = vpop.f32.mrf.mxu0
      %v423 = vadd.f32 0.0, %v422
      %v424 = vpop.f32.mrf.mxu0
      %v425 = vadd.f32 0.0, %v424
      %426 = vmatmul.bf16.gmra.mxu0 %v363
      %v427 = vpop.f32.mrf.mxu0
      %v428 = vadd.f32 0.0, %v427
      %v429 = vpop.f32.mrf.mxu0
      %v430 = vadd.f32 0.0, %v429
      %431 = vmatmul.bf16.gmra.mxu0 %v366
      %v432 = vpop.f32.mrf.mxu0
      %v433 = vadd.f32 0.0, %v432
      %v434 = vpop.f32.mrf.mxu0
      %v435 = vadd.f32 0.0, %v434
      %436 = vmatmul.bf16.gmra.mxu0 %v369
      %v437 = vpop.f32.mrf.mxu0
      %v438 = vadd.f32 0.0, %v437
      %v439 = vpop.f32.mrf.mxu0
      %v440 = vadd.f32 0.0, %v439
      %441 = vmatmul.bf16.gmra.mxu0 %v372
      %v442 = vpop.f32.mrf.mxu0
      %v443 = vadd.f32 0.0, %v442
      %v444 = vpop.f32.mrf.mxu0
      %v445 = vadd.f32 0.0, %v444
      %446 = vmatmul.bf16.gmra.mxu0 %v375
      %v447 = vpop.f32.mrf.mxu0
      %v448 = vadd.f32 0.0, %v447
      %v449 = vpop.f32.mrf.mxu0
      %v450 = vadd.f32 0.0, %v449
      %451 = vmatmul.bf16.gmra.mxu0 %v378
      %v452 = vpop.f32.mrf.mxu0
      %v453 = vadd.f32 0.0, %v452
      %v454 = vpop.f32.mrf.mxu0
      %v455 = vadd.f32 0.0, %v454
      %456 = vmatmul.bf16.gmra.mxu0 %v381
      %v457 = vpop.f32.mrf.mxu0
      %v458 = vadd.f32 0.0, %v457
      %v459 = vpop.f32.mrf.mxu0
      %v460 = vadd.f32 0.0, %v459
      %461 = vmatmul.bf16.gmra.mxu0 %v384
      %v462 = vpop.f32.mrf.mxu0
      %v463 = vadd.f32 0.0, %v462
      %v464 = vpop.f32.mrf.mxu0
      %v465 = vadd.f32 0.0, %v464
      %466 = vmatmul.bf16.gmra.mxu0 %v387
      %v467 = vpop.f32.mrf.mxu0
      %v468 = vadd.f32 0.0, %v467
      %v469 = vpop.f32.mrf.mxu0
      %v470 = vadd.f32 0.0, %v469
      %471 = vmatmul.bf16.gmra.mxu0 %v390
      %v472 = vpop.f32.mrf.mxu0
      %v473 = vadd.f32 0.0, %v472
      %v474 = vpop.f32.mrf.mxu0
      %v475 = vadd.f32 0.0, %v474
      %476 = vmatmul.bf16.gmra.mxu0 %v393
      %v477 = vpop.f32.mrf.mxu0
      %v478 = vadd.f32 0.0, %v477
      %v479 = vpop.f32.mrf.mxu0
      %v480 = vadd.f32 0.0, %v479
      %481 = vmatmul.bf16.gmra.mxu0 %v396
      %v482 = vpop.f32.mrf.mxu0
      %v483 = vadd.f32 0.0, %v482
      %v484 = vpop.f32.mrf.mxu0
      %v485 = vadd.f32 0.0, %v484
      %486 = vdwg.mxu0
      %487 = vmatpush.bf16.msra.mxu0 0
      %488 = vmatpush.bf16.msra.mxu0 0
      %489 = vmatpush.bf16.msra.mxu0 0
      %490 = vmatpush.bf16.msra.mxu0 0
      %491 = vmatpush.bf16.msra.mxu0 0
      %492 = vmatpush.bf16.msra.mxu0 0
      %493 = vmatpush.bf16.msra.mxu0 %v344
      %494 = vmatpush.bf16.msra.mxu0 %v342
      %495 = vmatmul.bf16.gmra.mxu0 %v351
      %v496 = vpop.f32.mrf.mxu0
      %v497 = vadd.f32 0.0, %v496
      %v498 = vpop.f32.mrf.mxu0
      %v499 = vadd.f32 0.0, %v498
      %500 = vmatmul.bf16.gmra.mxu0 %v354
      %v501 = vpop.f32.mrf.mxu0
      %v502 = vadd.f32 0.0, %v501
      %v503 = vpop.f32.mrf.mxu0
      %v504 = vadd.f32 0.0, %v503
      %505 = vmatmul.bf16.gmra.mxu0 %v357
      %v506 = vpop.f32.mrf.mxu0
      %v507 = vadd.f32 0.0, %v506
      %v508 = vpop.f32.mrf.mxu0
      %v509 = vadd.f32 0.0, %v508
      %510 = vmatmul.bf16.gmra.mxu0 %v360
      %v511 = vpop.f32.mrf.mxu0
      %v512 = vadd.f32 0.0, %v511
      %v513 = vpop.f32.mrf.mxu0
      %v514 = vadd.f32 0.0, %v513
      %515 = vmatmul.bf16.gmra.mxu0 %v363
      %v516 = vpop.f32.mrf.mxu0
      %v517 = vadd.f32 0.0, %v516
      %v518 = vpop.f32.mrf.mxu0
      %v519 = vadd.f32 0.0, %v518
      %520 = vmatmul.bf16.gmra.mxu0 %v366
      %v521 = vpop.f32.mrf.mxu0
      %v522 = vadd.f32 0.0, %v521
      %v523 = vpop.f32.mrf.mxu0
      %v524 = vadd.f32 0.0, %v523
      %525 = vmatmul.bf16.gmra.mxu0 %v369
      %v526 = vpop.f32.mrf.mxu0
      %v527 = vadd.f32 0.0, %v526
      %v528 = vpop.f32.mrf.mxu0
      %v529 = vadd.f32 0.0, %v528
      %530 = vmatmul.bf16.gmra.mxu0 %v372
      %v531 = vpop.f32.mrf.mxu0
      %v532 = vadd.f32 0.0, %v531
      %v533 = vpop.f32.mrf.mxu0
      %v534 = vadd.f32 0.0, %v533
      %535 = vmatmul.bf16.gmra.mxu0 %v375
      %v536 = vpop.f32.mrf.mxu0
      %v537 = vadd.f32 0.0, %v536
      %v538 = vpop.f32.mrf.mxu0
      %v539 = vadd.f32 0.0, %v538
      %540 = vmatmul.bf16.gmra.mxu0 %v378
      %v541 = vpop.f32.mrf.mxu0
      %v542 = vadd.f32 0.0, %v541
      %v543 = vpop.f32.mrf.mxu0
      %v544 = vadd.f32 0.0, %v543
      %545 = vmatmul.bf16.gmra.mxu0 %v381
      %v546 = vpop.f32.mrf.mxu0
      %v547 = vadd.f32 0.0, %v546
      %v548 = vpop.f32.mrf.mxu0
      %v549 = vadd.f32 0.0, %v548
      %550 = vmatmul.bf16.gmra.mxu0 %v384
      %v551 = vpop.f32.mrf.mxu0
      %v552 = vadd.f32 0.0, %v551
      %v553 = vpop.f32.mrf.mxu0
      %v554 = vadd.f32 0.0, %v553
      %555 = vmatmul.bf16.gmra.mxu0 %v387
      %v556 = vpop.f32.mrf.mxu0
      %v557 = vadd.f32 0.0, %v556
      %v558 = vpop.f32.mrf.mxu0
      %v559 = vadd.f32 0.0, %v558
      %560 = vmatmul.bf16.gmra.mxu0 %v390
      %v561 = vpop.f32.mrf.mxu0
      %v562 = vadd.f32 0.0, %v561
      %v563 = vpop.f32.mrf.mxu0
      %v564 = vadd.f32 0.0, %v563
      %565 = vmatmul.bf16.gmra.mxu0 %v393
      %v566 = vpop.f32.mrf.mxu0
      %v567 = vadd.f32 0.0, %v566
      %v568 = vpop.f32.mrf.mxu0
      %v569 = vadd.f32 0.0, %v568
      %570 = vmatmul.bf16.gmra.mxu0 %v396
      %v571 = vpop.f32.mrf.mxu0
      %v572 = vadd.f32 0.0, %v571
      %v573 = vpop.f32.mrf.mxu0
      %v574 = vadd.f32 0.0, %v573
      %575 = vdwg.mxu0
      %v576 = vpack.c.bf16 %v497, %v408
      %v577 = vpack.c.bf16 %v499, %v410
      %v578 = vpack.c.bf16 %v502, %v413
      %v579 = vpack.c.bf16 %v504, %v415
      %v580 = vpack.c.bf16 %v507, %v418
      %v581 = vpack.c.bf16 %v509, %v420
      %v582 = vpack.c.bf16 %v512, %v423
      %v583 = vpack.c.bf16 %v514, %v425
      %v584 = vpack.c.bf16 %v517, %v428
      %v585 = vpack.c.bf16 %v519, %v430
      %v586 = vpack.c.bf16 %v522, %v433
      %v587 = vpack.c.bf16 %v524, %v435
      %v588 = vpack.c.bf16 %v527, %v438
      %v589 = vpack.c.bf16 %v529, %v440
      %v590 = vpack.c.bf16 %v532, %v443
      %v591 = vpack.c.bf16 %v534, %v445
      %v592 = vpack.c.bf16 %v537, %v448
      %v593 = vpack.c.bf16 %v539, %v450
      %v594 = vpack.c.bf16 %v542, %v453
      %v595 = vpack.c.bf16 %v544, %v455
      %v596 = vpack.c.bf16 %v547, %v458
      %v597 = vpack.c.bf16 %v549, %v460
      %v598 = vpack.c.bf16 %v552, %v463
      %v599 = vpack.c.bf16 %v554, %v465
      %v600 = vpack.c.bf16 %v557, %v468
      %v601 = vpack.c.bf16 %v559, %v470
      %v602 = vpack.c.bf16 %v562, %v473
      %v603 = vpack.c.bf16 %v564, %v475
      %v604 = vpack.c.bf16 %v567, %v478
      %v605 = vpack.c.bf16 %v569, %v480
      %v606 = vpack.c.bf16 %v572, %v483
      %v607 = vpack.c.bf16 %v574, %v485
      %608 = vst [vmem:[%s174] sm:$0xff] %v576
      %609 = vst [vmem:[%s174 + $0x8] sm:$0xff] %v577
      %610 = vst [vmem:[%s174 + $0x10] sm:$0xff] %v578
      %611 = vst [vmem:[%s174 + $0x18] sm:$0xff] %v579
      %612 = vst [vmem:[%s174 + $0x20] sm:$0xff] %v580
      %613 = vst [vmem:[%s174 + $0x28] sm:$0xff] %v581
      %614 = vst [vmem:[%s174 + $0x30] sm:$0xff] %v582
      %615 = vst [vmem:[%s174 + $0x38] sm:$0xff] %v583
      %616 = vst [vmem:[%s174 + $0x40] sm:$0xff] %v584
      %617 = vst [vmem:[%s174 + $0x48] sm:$0xff] %v585
      %618 = vst [vmem:[%s174 + $0x50] sm:$0xff] %v586
      %619 = vst [vmem:[%s174 + $0x58] sm:$0xff] %v587
      %620 = vst [vmem:[%s174 + $0x60] sm:$0xff] %v588
      %621 = vst [vmem:[%s174 + $0x68] sm:$0xff] %v589
      %622 = vst [vmem:[%s174 + $0x70] sm:$0xff] %v590
      %623 = vst [vmem:[%s174 + $0x78] sm:$0xff] %v591
      %624 = vst [vmem:[%s174 + $0x80] sm:$0xff] %v592
      %625 = vst [vmem:[%s174 + $0x88] sm:$0xff] %v593
      %626 = vst [vmem:[%s174 + $0x90] sm:$0xff] %v594
      %627 = vst [vmem:[%s174 + $0x98] sm:$0xff] %v595
      %628 = vst [vmem:[%s174 + $0xa0] sm:$0xff] %v596
      %629 = vst [vmem:[%s174 + $0xa8] sm:$0xff] %v597
      %630 = vst [vmem:[%s174 + $0xb0] sm:$0xff] %v598
      %631 = vst [vmem:[%s174 + $0xb8] sm:$0xff] %v599
      %632 = vst [vmem:[%s174 + $0xc0] sm:$0xff] %v600
      %633 = vst [vmem:[%s174 + $0xc8] sm:$0xff] %v601
      %634 = vst [vmem:[%s174 + $0xd0] sm:$0xff] %v602
      %635 = vst [vmem:[%s174 + $0xd8] sm:$0xff] %v603
      %636 = vst [vmem:[%s174 + $0xe0] sm:$0xff] %v604
      %637 = vst [vmem:[%s174 + $0xe8] sm:$0xff] %v605
      %638 = vst [vmem:[%s174 + $0xf0] sm:$0xff] %v606
      %639 = vst [vmem:[%s174 + $0xf8] sm:$0xff] %v607
      %s640 = smul.u32 32, %s14
      %p641 = scmp.lt.s32.totalorder %s640, 63
      %s642 = scalar_select %p641, %s640, 63
      %s643 = smul.addr %s642, 2
      %s644 = smul.addr %s643, 4
      %s645 = scalar_lea.vmem %s3, %s644
      // Predicated region
      $region33: #{net_generator_forward.9} parent=31 // pred_check
        %p646 = pneg %p100
      $region34: #{net_generator_forward.9} parent=31 // pred_check_branch
        %648 = sbr.rel (%p646) target = $region36
      $region35: #{net_generator_forward.9} parent=31 // pred_region
        %s649 = smul.u32 32, %s14
      $region36: #{net_generator_forward.9} parent=31 // pred_fallthru
        _
    $region32: #{net_generator_forward.9} parent=5 // pred_fallthru
      _
    %p650 = scmp.le.s32.totalorder 2, %s9
    // Predicated region
    $region37: #{net_generator_forward.9} parent=5 // pred_check
      %p651 = pneg %p650
    $region38: #{net_generator_forward.9} parent=5 // pred_check_branch
      %653 = sbr.rel (%p651) target = $region40
    $region39: #{net_generator_forward.9} parent=5 // pred_region
      %s654 = ssub.s32 %s9, 2
      // Predicated region
      $region41: #{net_generator_forward.9} parent=39 // pred_check
        %p655 = pneg %p106
      $region42: #{net_generator_forward.9} parent=39 // pred_check_branch
        %657 = sbr.rel (%p655) target = $region44
      $region43: #{net_generator_forward.9} parent=39 // pred_region
        %s658 = smul.u32 32, %s15
        %p659 = scmp.lt.s32.totalorder %s658, 63
        %s660 = scalar_select %p659, %s658, 63
        %s661 = smul.addr %s660, 2
        %s662 = smul.addr %s661, 4
        %s663 = scalar_lea.vmem %s3, %s662
      $region44: #{net_generator_forward.9} parent=39 // pred_fallthru
        _
    $region40: #{net_generator_forward.9} parent=5 // pred_fallthru
      _
  $region6: #{net_generator_forward.9} parent=0 // loop_footer
    %s13 = sadd.s32 1, %s9
  $region7: #{net_generator_forward.9} parent=0 // loop_footer_branch
    %8 = sbr.rel target = $region3
  $region8: #{net_generator_forward.9} parent=0 // loop_exit
    _

// kernel: net_generator_forward.10
$region0: #{net_generator_forward.10}
  #allocation0 [shape = 'u32[]', space=smem, size = 0x4, offset = 0x4, fixed_abs, tag = 'smem constant byte address 0x4 - core index']
  #allocation1 [shape = 'u32[72,128]{1,0:T(1,128)}', space=vmem, size = 0x9000, scoped, tag = 'internal scratch']
  %s0 = inlined_call_operand.vmem [shape: bf16[2048,16], index: 0, kind: input, shape index: {}]
  %s1 = inlined_call_operand.vmem [shape: bf16[16,128], index: 1, kind: input, shape index: {}]
  %s2 = inlined_call_operand.vmem [shape: f32[1,16], index: 2, kind: input, shape index: {}]
  %s3 = inlined_call_operand.vmem [shape: f32[2048,128], index: 3, kind: output, shape index: {}]
  %s4 = sld [smem:[#allocation0]]
  $region45: #{net_generator_forward.10} parent=0
    _
  %s6 = ssub.s32 1, %s4
  %s7 = scalar_select 0, %s6, %s4
  loop: start=0, step=1, limit=4
  $region2: #{net_generator_forward.10} parent=0 // loop_pre_header
    _
  $region3: #{net_generator_forward.10} parent=0 // loop_header
    %s9 = sphi 0, %s13
    %p10 = scmp.ge.s32.totalorder %s9, 4
    %s19 = sphi 0, %s21
    %s22 = sphi 0, %s19
    %s23 = sphi 0, %s22
    %s39 = sphi 0, %s23
    %s43 = sphi 0, %s43
    %s45 = sphi 0, %s43
    %s46 = sphi 0, %s45
    %s60 = sphi 0, %s46
    %s64 = sphi 0, %s64
    %s66 = sphi 0, %s64
    %s67 = sphi 0, %s66
    %s81 = sphi 0, %s67
    %s87 = sphi 0, %s89
    %s90 = sphi 0, %s87
    %s91 = sphi 0, %s90
    %s107 = sphi 0, %s91
  $region4: #{net_generator_forward.10} parent=0 // loop_header_branch
    %12 = sbr.rel (%p10) target = $region8
  $region5: #{net_generator_forward.10} parent=0 // loop_body
    %s14 = ssub.s32 %s9, 1
    %s15 = ssub.s32 %s9, 2
    %s16 = sadd.s32 %s9, 1
    %s17 = ssub.s32 %s9, %s16
    %p18 = scmp.eq.s32.totalorder %s17, 0
    %s20 = sadd.s32 %s19, 1
    %s21 = scalar_select %p18, %s19, %s20
    %p24 = pneg %p18
    %p25 = scmp.eq.s32.totalorder %s9, 1
    %p26 = por %p24, %p25
    %p27 = scmp.ne.s32.totalorder %s19, %s22
    %p28 = scmp.eq.s32.totalorder %s9, 0
    %p29 = por %p27, %p28
    %p30 = scmp.ne.s32.totalorder %s19, %s22
    %p31 = scmp.eq.s32.totalorder %s14, 1
    %p32 = por %p30, %p31
    %p33 = scmp.ne.s32.totalorder %s22, %s23
    %p34 = scmp.eq.s32.totalorder %s14, 0
    %p35 = por %p33, %p34
    %p36 = scmp.ne.s32.totalorder %s22, %s23
    %p37 = scmp.eq.s32.totalorder %s15, 1
    %p38 = por %p36, %p37
    %p40 = scmp.ne.s32.totalorder %s23, %s39
    %p41 = scmp.eq.s32.totalorder %s15, 0
    %p42 = por %p40, %p41
    %s44 = sadd.s32 %s43, 1
    %p47 = scmp.eq.s32.totalorder %s9, 1
    %p48 = scmp.ne.s32.totalorder %s43, %s45
    %p49 = scmp.eq.s32.totalorder %s9, 0
    %p50 = por %p48, %p49
    %p51 = scmp.ne.s32.totalorder %s43, %s45
    %p52 = scmp.eq.s32.totalorder %s14, 1
    %p53 = por %p51, %p52
    %p54 = scmp.ne.s32.totalorder %s45, %s46
    %p55 = scmp.eq.s32.totalorder %s14, 0
    %p56 = por %p54, %p55
    %p57 = scmp.ne.s32.totalorder %s45, %s46
    %p58 = scmp.eq.s32.totalorder %s15, 1
    %p59 = por %p57, %p58
    %p61 = scmp.ne.s32.totalorder %s46, %s60
    %p62 = scmp.eq.s32.totalorder %s15, 0
    %p63 = por %p61, %p62
    %s65 = sadd.s32 %s64, 1
    %p68 = scmp.eq.s32.totalorder %s9, 1
    %p69 = scmp.ne.s32.totalorder %s64, %s66
    %p70 = scmp.eq.s32.totalorder %s9, 0
    %p71 = por %p69, %p70
    %p72 = scmp.ne.s32.totalorder %s64, %s66
    %p73 = scmp.eq.s32.totalorder %s14, 1
    %p74 = por %p72, %p73
    %p75 = scmp.ne.s32.totalorder %s66, %s67
    %p76 = scmp.eq.s32.totalorder %s14, 0
    %p77 = por %p75, %p76
    %p78 = scmp.ne.s32.totalorder %s66, %s67
    %p79 = scmp.eq.s32.totalorder %s15, 1
    %p80 = por %p78, %p79
    %p82 = scmp.ne.s32.totalorder %s67, %s81
    %p83 = scmp.eq.s32.totalorder %s15, 0
    %p84 = por %p82, %p83
    %s85 = ssub.s32 %s9, %s16
    %p86 = scmp.eq.s32.totalorder %s85, 0
    %s88 = sadd.s32 %s87, 1
    %s89 = scalar_select %p86, %s87, %s88
    %p92 = pneg %p86
    %p93 = scmp.eq.s32.totalorder %s9, 1
    %p94 = por %p92, %p93
    %p95 = scmp.ne.s32.totalorder %s87, %s90
    %p96 = scmp.eq.s32.totalorder %s9, 0
    %p97 = por %p95, %p96
    %p98 = scmp.ne.s32.totalorder %s87, %s90
    %p99 = scmp.eq.s32.totalorder %s14, 1
    %p100 = por %p98, %p99
    %p101 = scmp.ne.s32.totalorder %s90, %s91
    %p102 = scmp.eq.s32.totalorder %s14, 0
    %p103 = por %p101, %p102
    %p104 = scmp.ne.s32.totalorder %s90, %s91
    %p105 = scmp.eq.s32.totalorder %s15, 1
    %p106 = por %p104, %p105
    %p108 = scmp.ne.s32.totalorder %s91, %s107
    %p109 = scmp.eq.s32.totalorder %s15, 0
    %p110 = por %p108, %p109
    %p111 = scmp.le.s32.totalorder 1, %s9
    %p112 = scmp.lt.s32.totalorder %s9, 3
    %p113 = pnand %p111, %p112
    %p114 = pneg %p113
    // Predicated region
    $region9: #{net_generator_forward.10} parent=5 // pred_check
      _
    $region10: #{net_generator_forward.10} parent=5 // pred_check_branch
      %116 = sbr.rel (%p113) target = $region12
    $region11: #{net_generator_forward.10} parent=5 // pred_region
      %s117 = ssub.s32 %s9, 1
      // Predicated region
      $region13: #{net_generator_forward.10} parent=11 // pred_check
        %p118 = pneg %p56
      $region14: #{net_generator_forward.10} parent=11 // pred_check_branch
        %120 = sbr.rel (%p118) target = $region16
      $region15: #{net_generator_forward.10} parent=11 // pred_region
        _
      $region16: #{net_generator_forward.10} parent=11 // pred_fallthru
        _
      // Predicated region
      $region17: #{net_generator_forward.10} parent=11 // pred_check
        %p121 = pneg %p77
      $region18: #{net_generator_forward.10} parent=11 // pred_check_branch
        %123 = sbr.rel (%p121) target = $region20
      $region19: #{net_generator_forward.10} parent=11 // pred_region
        _
      $region20: #{net_generator_forward.10} parent=11 // pred_fallthru
        _
    $region12: #{net_generator_forward.10} parent=5 // pred_fallthru
      _
    %p124 = scmp.lt.s32.totalorder %s9, 2
    // Predicated region
    $region21: #{net_generator_forward.10} parent=5 // pred_check
      %p125 = pneg %p124
    $region22: #{net_generator_forward.10} parent=5 // pred_check_branch
      %127 = sbr.rel (%p125) target = $region24
    $region23: #{net_generator_forward.10} parent=5 // pred_region
      // Predicated region
      $region25: #{net_generator_forward.10} parent=23 // pred_check
        %p128 = pneg %p29
      $region26: #{net_generator_forward.10} parent=23 // pred_check_branch
        %130 = sbr.rel (%p128) target = $region28
      $region27: #{net_generator_forward.10} parent=23 // pred_region
        %s131 = smul.u32 128, %s9
        %p132 = scmp.lt.s32.totalorder %s131, 255
        %s133 = scalar_select %p132, %s131, 255
        %s134 = smul.addr %s133, 4
        %s135 = scalar_lea.vmem %s0, %s134
        %s136 = smul.u32 128, %s9
      $region28: #{net_generator_forward.10} parent=23 // pred_fallthru
        _
    $region24: #{net_generator_forward.10} parent=5 // pred_fallthru
      _
    %p137 = scmp.le.s32.totalorder 1, %s9
    %p138 = scmp.lt.s32.totalorder %s9, 3
    %p139 = pnand %p137, %p138
    %p140 = pneg %p139
    // Predicated region
    $region29: #{net_generator_forward.10} parent=5 // pred_check
      _
    $region30: #{net_generator_forward.10} parent=5 // pred_check_branch
      %142 = sbr.rel (%p139) target = $region32
    $region31: #{net_generator_forward.10} parent=5 // pred_region
      %s143 = ssub.s32 %s9, 1
      %s144 = smul.u32 128, %s14
      %p145 = scmp.lt.s32.totalorder %s144, 255
      %s146 = scalar_select %p145, %s144, 255
      %s147 = smul.addr %s146, 4
      %s148 = scalar_lea.vmem %s0, %s147
      %p149 = pneg %p35
      %p150 = pneg %p32
      %p151 = pneg %p56
      %p152 = pneg %p53
      %p153 = pneg %p77
      %p154 = pneg %p74
      %p155 = pneg %p103
      %p156 = pneg %p100
      %s157 = smul.u32 128, %s14
      %p158 = scmp.lt.s32.totalorder %s157, 255
      %s159 = scalar_select %p158, %s157, 255
      %s160 = smul.addr %s159, 8
      %s161 = scalar_lea.vmem %s3, %s160
      %s162 = smul.u32 128, %s14
      %p163 = scmp.lt.s32.totalorder %s162, 255
      %s164 = scalar_select %p163, %s162, 255
      %s165 = smul.addr %s164, 4
      %s166 = scalar_lea.vmem %s0, %s165
      %s167 = smul.u32 128, %s14
      %s168 = smul.u32 128, %s14
      %p169 = scmp.lt.s32.totalorder %s168, 255
      %s170 = scalar_select %p169, %s168, 255
      %s171 = smul.addr %s170, 8
      %s172 = scalar_lea.vmem %s3, %s171
      %s173 = smul.u32 128, %s14
      %v175 = vld [vmem:[%s166] sm:$0xf]
      %v176 = vld [vmem:[%s166 + $0x4] sm:$0xf]
      %v177 = vld [vmem:[%s166 + $0x8] sm:$0xf]
      %v178 = vld [vmem:[%s166 + $0xc] sm:$0xf]
      %v179 = vld [vmem:[%s166 + $0x10] sm:$0xf]
      %v180 = vld [vmem:[%s166 + $0x14] sm:$0xf]
      %v181 = vld [vmem:[%s166 + $0x18] sm:$0xf]
      %v182 = vld [vmem:[%s166 + $0x1c] sm:$0xf]
      %v183 = vld [vmem:[%s166 + $0x20] sm:$0xf]
      %v184 = vld [vmem:[%s166 + $0x24] sm:$0xf]
      %v185 = vld [vmem:[%s166 + $0x28] sm:$0xf]
      %v186 = vld [vmem:[%s166 + $0x2c] sm:$0xf]
      %v187 = vld [vmem:[%s166 + $0x30] sm:$0xf]
      %v188 = vld [vmem:[%s166 + $0x34] sm:$0xf]
      %v189 = vld [vmem:[%s166 + $0x38] sm:$0xf]
      %v190 = vld [vmem:[%s166 + $0x3c] sm:$0xf]
      %v191 = vld [vmem:[%s166 + $0x40] sm:$0xf]
      %v192 = vld [vmem:[%s166 + $0x44] sm:$0xf]
      %v193 = vld [vmem:[%s166 + $0x48] sm:$0xf]
      %v194 = vld [vmem:[%s166 + $0x4c] sm:$0xf]
      %v195 = vld [vmem:[%s166 + $0x50] sm:$0xf]
      %v196 = vld [vmem:[%s166 + $0x54] sm:$0xf]
      %v197 = vld [vmem:[%s166 + $0x58] sm:$0xf]
      %v198 = vld [vmem:[%s166 + $0x5c] sm:$0xf]
      %v199 = vld [vmem:[%s166 + $0x60] sm:$0xf]
      %v200 = vld [vmem:[%s166 + $0x64] sm:$0xf]
      %v201 = vld [vmem:[%s166 + $0x68] sm:$0xf]
      %v202 = vld [vmem:[%s166 + $0x6c] sm:$0xf]
      %v203 = vld [vmem:[%s166 + $0x70] sm:$0xf]
      %v204 = vld [vmem:[%s166 + $0x74] sm:$0xf]
      %v205 = vld [vmem:[%s166 + $0x78] sm:$0xf]
      %v206 = vld [vmem:[%s166 + $0x7c] sm:$0xf]
      %v207 = vld [vmem:[%s166 + $0x80] sm:$0xf]
      %v208 = vld [vmem:[%s166 + $0x84] sm:$0xf]
      %v209 = vld [vmem:[%s166 + $0x88] sm:$0xf]
      %v210 = vld [vmem:[%s166 + $0x8c] sm:$0xf]
      %v211 = vld [vmem:[%s166 + $0x90] sm:$0xf]
      %v212 = vld [vmem:[%s166 + $0x94] sm:$0xf]
      %v213 = vld [vmem:[%s166 + $0x98] sm:$0xf]
      %v214 = vld [vmem:[%s166 + $0x9c] sm:$0xf]
      %v215 = vld [vmem:[%s166 + $0xa0] sm:$0xf]
      %v216 = vld [vmem:[%s166 + $0xa4] sm:$0xf]
      %v217 = vld [vmem:[%s166 + $0xa8] sm:$0xf]
      %v218 = vld [vmem:[%s166 + $0xac] sm:$0xf]
      %v219 = vld [vmem:[%s166 + $0xb0] sm:$0xf]
      %v220 = vld [vmem:[%s166 + $0xb4] sm:$0xf]
      %v221 = vld [vmem:[%s166 + $0xb8] sm:$0xf]
      %v222 = vld [vmem:[%s166 + $0xbc] sm:$0xf]
      %v223 = vld [vmem:[%s166 + $0xc0] sm:$0xf]
      %v224 = vld [vmem:[%s166 + $0xc4] sm:$0xf]
      %v225 = vld [vmem:[%s166 + $0xc8] sm:$0xf]
      %v226 = vld [vmem:[%s166 + $0xcc] sm:$0xf]
      %v227 = vld [vmem:[%s166 + $0xd0] sm:$0xf]
      %v228 = vld [vmem:[%s166 + $0xd4] sm:$0xf]
      %v229 = vld [vmem:[%s166 + $0xd8] sm:$0xf]
      %v230 = vld [vmem:[%s166 + $0xdc] sm:$0xf]
      %v231 = vld [vmem:[%s166 + $0xe0] sm:$0xf]
      %v232 = vld [vmem:[%s166 + $0xe4] sm:$0xf]
      %v233 = vld [vmem:[%s166 + $0xe8] sm:$0xf]
      %v234 = vld [vmem:[%s166 + $0xec] sm:$0xf]
      %v235 = vld [vmem:[%s166 + $0xf0] sm:$0xf]
      %v236 = vld [vmem:[%s166 + $0xf4] sm:$0xf]
      %v237 = vld [vmem:[%s166 + $0xf8] sm:$0xf]
      %v238 = vld [vmem:[%s166 + $0xfc] sm:$0xf]
      %v239 = vld [vmem:[%s166 + $0x100] sm:$0xf]
      %v240 = vld [vmem:[%s166 + $0x104] sm:$0xf]
      %v241 = vld [vmem:[%s166 + $0x108] sm:$0xf]
      %v242 = vld [vmem:[%s166 + $0x10c] sm:$0xf]
      %v243 = vld [vmem:[%s166 + $0x110] sm:$0xf]
      %v244 = vld [vmem:[%s166 + $0x114] sm:$0xf]
      %v245 = vld [vmem:[%s166 + $0x118] sm:$0xf]
      %v246 = vld [vmem:[%s166 + $0x11c] sm:$0xf]
      %v247 = vld [vmem:[%s166 + $0x120] sm:$0xf]
      %v248 = vld [vmem:[%s166 + $0x124] sm:$0xf]
      %v249 = vld [vmem:[%s166 + $0x128] sm:$0xf]
      %v250 = vld [vmem:[%s166 + $0x12c] sm:$0xf]
      %v251 = vld [vmem:[%s166 + $0x130] sm:$0xf]
      %v252 = vld [vmem:[%s166 + $0x134] sm:$0xf]
      %v253 = vld [vmem:[%s166 + $0x138] sm:$0xf]
      %v254 = vld [vmem:[%s166 + $0x13c] sm:$0xf]
      %v255 = vld [vmem:[%s166 + $0x140] sm:$0xf]
      %v256 = vld [vmem:[%s166 + $0x144] sm:$0xf]
      %v257 = vld [vmem:[%s166 + $0x148] sm:$0xf]
      %v258 = vld [vmem:[%s166 + $0x14c] sm:$0xf]
      %v259 = vld [vmem:[%s166 + $0x150] sm:$0xf]
      %v260 = vld [vmem:[%s166 + $0x154] sm:$0xf]
      %v261 = vld [vmem:[%s166 + $0x158] sm:$0xf]
      %v262 = vld [vmem:[%s166 + $0x15c] sm:$0xf]
      %v263 = vld [vmem:[%s166 + $0x160] sm:$0xf]
      %v264 = vld [vmem:[%s166 + $0x164] sm:$0xf]
      %v265 = vld [vmem:[%s166 + $0x168] sm:$0xf]
      %v266 = vld [vmem:[%s166 + $0x16c] sm:$0xf]
      %v267 = vld [vmem:[%s166 + $0x170] sm:$0xf]
      %v268 = vld [vmem:[%s166 + $0x174] sm:$0xf]
      %v269 = vld [vmem:[%s166 + $0x178] sm:$0xf]
      %v270 = vld [vmem:[%s166 + $0x17c] sm:$0xf]
      %v271 = vld [vmem:[%s166 + $0x180] sm:$0xf]
      %v272 = vld [vmem:[%s166 + $0x184] sm:$0xf]
      %v273 = vld [vmem:[%s166 + $0x188] sm:$0xf]
      %v274 = vld [vmem:[%s166 + $0x18c] sm:$0xf]
      %v275 = vld [vmem:[%s166 + $0x190] sm:$0xf]
      %v276 = vld [vmem:[%s166 + $0x194] sm:$0xf]
      %v277 = vld [vmem:[%s166 + $0x198] sm:$0xf]
      %v278 = vld [vmem:[%s166 + $0x19c] sm:$0xf]
      %v279 = vld [vmem:[%s166 + $0x1a0] sm:$0xf]
      %v280 = vld [vmem:[%s166 + $0x1a4] sm:$0xf]
      %v281 = vld [vmem:[%s166 + $0x1a8] sm:$0xf]
      %v282 = vld [vmem:[%s166 + $0x1ac] sm:$0xf]
      %v283 = vld [vmem:[%s166 + $0x1b0] sm:$0xf]
      %v284 = vld [vmem:[%s166 + $0x1b4] sm:$0xf]
      %v285 = vld [vmem:[%s166 + $0x1b8] sm:$0xf]
      %v286 = vld [vmem:[%s166 + $0x1bc] sm:$0xf]
      %v287 = vld [vmem:[%s166 + $0x1c0] sm:$0xf]
      %v288 = vld [vmem:[%s166 + $0x1c4] sm:$0xf]
      %v289 = vld [vmem:[%s166 + $0x1c8] sm:$0xf]
      %v290 = vld [vmem:[%s166 + $0x1cc] sm:$0xf]
      %v291 = vld [vmem:[%s166 + $0x1d0] sm:$0xf]
      %v292 = vld [vmem:[%s166 + $0x1d4] sm:$0xf]
      %v293 = vld [vmem:[%s166 + $0x1d8] sm:$0xf]
      %v294 = vld [vmem:[%s166 + $0x1dc] sm:$0xf]
      %v295 = vld [vmem:[%s166 + $0x1e0] sm:$0xf]
      %v296 = vld [vmem:[%s166 + $0x1e4] sm:$0xf]
      %v297 = vld [vmem:[%s166 + $0x1e8] sm:$0xf]
      %v298 = vld [vmem:[%s166 + $0x1ec] sm:$0xf]
      %v299 = vld [vmem:[%s166 + $0x1f0] sm:$0xf]
      %v300 = vld [vmem:[%s166 + $0x1f4] sm:$0xf]
      %v301 = vld [vmem:[%s166 + $0x1f8] sm:$0xf]
      %v302 = vld [vmem:[%s166 + $0x1fc] sm:$0xf]
      %v303 = vunpack.c.l.bf16 %v175
      %v304 = vunpack.c.l.bf16 %v176
      %v305 = vunpack.c.l.bf16 %v177
      %v306 = vunpack.c.l.bf16 %v178
      %v307 = vunpack.c.l.bf16 %v179
      %v308 = vunpack.c.l.bf16 %v180
      %v309 = vunpack.c.l.bf16 %v181
      %v310 = vunpack.c.l.bf16 %v182
      %v311 = vunpack.c.l.bf16 %v183
      %v312 = vunpack.c.l.bf16 %v184
      %v313 = vunpack.c.l.bf16 %v185
      %v314 = vunpack.c.l.bf16 %v186
      %v315 = vunpack.c.l.bf16 %v187
      %v316 = vunpack.c.l.bf16 %v188
      %v317 = vunpack.c.l.bf16 %v189
      %v318 = vunpack.c.l.bf16 %v190
      %v319 = vunpack.c.l.bf16 %v191
      %v320 = vunpack.c.l.bf16 %v192
      %v321 = vunpack.c.l.bf16 %v193
      %v322 = vunpack.c.l.bf16 %v194
      %v323 = vunpack.c.l.bf16 %v195
      %v324 = vunpack.c.l.bf16 %v196
      %v325 = vunpack.c.l.bf16 %v197
      %v326 = vunpack.c.l.bf16 %v198
      %v327 = vunpack.c.l.bf16 %v199
      %v328 = vunpack.c.l.bf16 %v200
      %v329 = vunpack.c.l.bf16 %v201
      %v330 = vunpack.c.l.bf16 %v202
      %v331 = vunpack.c.l.bf16 %v203
      %v332 = vunpack.c.l.bf16 %v204
      %v333 = vunpack.c.l.bf16 %v205
      %v334 = vunpack.c.l.bf16 %v206
      %v335 = vunpack.c.l.bf16 %v207
      %v336 = vunpack.c.l.bf16 %v208
      %v337 = vunpack.c.l.bf16 %v209
      %v338 = vunpack.c.l.bf16 %v210
      %v339 = vunpack.c.l.bf16 %v211
      %v340 = vunpack.c.l.bf16 %v212
      %v341 = vunpack.c.l.bf16 %v213
      %v342 = vunpack.c.l.bf16 %v214
      %v343 = vunpack.c.l.bf16 %v215
      %v344 = vunpack.c.l.bf16 %v216
      %v345 = vunpack.c.l.bf16 %v217
      %v346 = vunpack.c.l.bf16 %v218
      %v347 = vunpack.c.l.bf16 %v219
      %v348 = vunpack.c.l.bf16 %v220
      %v349 = vunpack.c.l.bf16 %v221
      %v350 = vunpack.c.l.bf16 %v222
      %v351 = vunpack.c.l.bf16 %v223
      %v352 = vunpack.c.l.bf16 %v224
      %v353 = vunpack.c.l.bf16 %v225
      %v354 = vunpack.c.l.bf16 %v226
      %v355 = vunpack.c.l.bf16 %v227
      %v356 = vunpack.c.l.bf16 %v228
      %v357 = vunpack.c.l.bf16 %v229
      %v358 = vunpack.c.l.bf16 %v230
      %v359 = vunpack.c.l.bf16 %v231
      %v360 = vunpack.c.l.bf16 %v232
      %v361 = vunpack.c.l.bf16 %v233
      %v362 = vunpack.c.l.bf16 %v234
      %v363 = vunpack.c.l.bf16 %v235
      %v364 = vunpack.c.l.bf16 %v236
      %v365 = vunpack.c.l.bf16 %v237
      %v366 = vunpack.c.l.bf16 %v238
      %v367 = vunpack.c.l.bf16 %v239
      %v368 = vunpack.c.l.bf16 %v240
      %v369 = vunpack.c.l.bf16 %v241
      %v370 = vunpack.c.l.bf16 %v242
      %v371 = vunpack.c.l.bf16 %v243
      %v372 = vunpack.c.l.bf16 %v244
      %v373 = vunpack.c.l.bf16 %v245
      %v374 = vunpack.c.l.bf16 %v246
      %v375 = vunpack.c.l.bf16 %v247
      %v376 = vunpack.c.l.bf16 %v248
      %v377 = vunpack.c.l.bf16 %v249
      %v378 = vunpack.c.l.bf16 %v250
      %v379 = vunpack.c.l.bf16 %v251
      %v380 = vunpack.c.l.bf16 %v252
      %v381 = vunpack.c.l.bf16 %v253
      %v382 = vunpack.c.l.bf16 %v254
      %v383 = vunpack.c.l.bf16 %v255
      %v384 = vunpack.c.l.bf16 %v256
      %v385 = vunpack.c.l.bf16 %v257
      %v386 = vunpack.c.l.bf16 %v258
      %v387 = vunpack.c.l.bf16 %v259
      %v388 = vunpack.c.l.bf16 %v260
      %v389 = vunpack.c.l.bf16 %v261
      %v390 = vunpack.c.l.bf16 %v262
      %v391 = vunpack.c.l.bf16 %v263
      %v392 = vunpack.c.l.bf16 %v264
      %v393 = vunpack.c.l.bf16 %v265
      %v394 = vunpack.c.l.bf16 %v266
      %v395 = vunpack.c.l.bf16 %v267
      %v396 = vunpack.c.l.bf16 %v268
      %v397 = vunpack.c.l.bf16 %v269
      %v398 = vunpack.c.l.bf16 %v270
      %v399 = vunpack.c.l.bf16 %v271
      %v400 = vunpack.c.l.bf16 %v272
      %v401 = vunpack.c.l.bf16 %v273
      %v402 = vunpack.c.l.bf16 %v274
      %v403 = vunpack.c.l.bf16 %v275
      %v404 = vunpack.c.l.bf16 %v276
      %v405 = vunpack.c.l.bf16 %v277
      %v406 = vunpack.c.l.bf16 %v278
      %v407 = vunpack.c.l.bf16 %v279
      %v408 = vunpack.c.l.bf16 %v280
      %v409 = vunpack.c.l.bf16 %v281
      %v410 = vunpack.c.l.bf16 %v282
      %v411 = vunpack.c.l.bf16 %v283
      %v412 = vunpack.c.l.bf16 %v284
      %v413 = vunpack.c.l.bf16 %v285
      %v414 = vunpack.c.l.bf16 %v286
      %v415 = vunpack.c.l.bf16 %v287
      %v416 = vunpack.c.l.bf16 %v288
      %v417 = vunpack.c.l.bf16 %v289
      %v418 = vunpack.c.l.bf16 %v290
      %v419 = vunpack.c.l.bf16 %v291
      %v420 = vunpack.c.l.bf16 %v292
      %v421 = vunpack.c.l.bf16 %v293
      %v422 = vunpack.c.l.bf16 %v294
      %v423 = vunpack.c.l.bf16 %v295
      %v424 = vunpack.c.l.bf16 %v296
      %v425 = vunpack.c.l.bf16 %v297
      %v426 = vunpack.c.l.bf16 %v298
      %v427 = vunpack.c.l.bf16 %v299
      %v428 = vunpack.c.l.bf16 %v300
      %v429 = vunpack.c.l.bf16 %v301
      %v430 = vunpack.c.l.bf16 %v302
      %v431 = vld [vmem:[%s2] sm:$0x1]
      %v433 = vperm.slane %v431, 0
      %v435 = vadd.f32 %v303, %v433
      %v436 = vadd.f32 %v304, %v433
      %v437 = vadd.f32 %v305, %v433
      %v438 = vadd.f32 %v306, %v433
      %v439 = vadd.f32 %v307, %v433
      %v440 = vadd.f32 %v308, %v433
      %v441 = vadd.f32 %v309, %v433
      %v442 = vadd.f32 %v310, %v433
      %v443 = vadd.f32 %v311, %v433
      %v444 = vadd.f32 %v312, %v433
      %v445 = vadd.f32 %v313, %v433
      %v446 = vadd.f32 %v314, %v433
      %v447 = vadd.f32 %v315, %v433
      %v448 = vadd.f32 %v316, %v433
      %v449 = vadd.f32 %v317, %v433
      %v450 = vadd.f32 %v318, %v433
      %v451 = vadd.f32 %v319, %v433
      %v452 = vadd.f32 %v320, %v433
      %v453 = vadd.f32 %v321, %v433
      %v454 = vadd.f32 %v322, %v433
      %v455 = vadd.f32 %v323, %v433
      %v456 = vadd.f32 %v324, %v433
      %v457 = vadd.f32 %v325, %v433
      %v458 = vadd.f32 %v326, %v433
      %v459 = vadd.f32 %v327, %v433
      %v460 = vadd.f32 %v328, %v433
      %v461 = vadd.f32 %v329, %v433
      %v462 = vadd.f32 %v330, %v433
      %v463 = vadd.f32 %v331, %v433
      %v464 = vadd.f32 %v332, %v433
      %v465 = vadd.f32 %v333, %v433
      %v466 = vadd.f32 %v334, %v433
      %v467 = vadd.f32 %v335, %v433
      %v468 = vadd.f32 %v336, %v433
      %v469 = vadd.f32 %v337, %v433
      %v470 = vadd.f32 %v338, %v433
      %v471 = vadd.f32 %v339, %v433
      %v472 = vadd.f32 %v340, %v433
      %v473 = vadd.f32 %v341, %v433
      %v474 = vadd.f32 %v342, %v433
      %v475 = vadd.f32 %v343, %v433
      %v476 = vadd.f32 %v344, %v433
      %v477 = vadd.f32 %v345, %v433
      %v478 = vadd.f32 %v346, %v433
      %v479 = vadd.f32 %v347, %v433
      %v480 = vadd.f32 %v348, %v433
      %v481 = vadd.f32 %v349, %v433
      %v482 = vadd.f32 %v350, %v433
      %v483 = vadd.f32 %v351, %v433
      %v484 = vadd.f32 %v352, %v433
      %v485 = vadd.f32 %v353, %v433
      %v486 = vadd.f32 %v354, %v433
      %v487 = vadd.f32 %v355, %v433
      %v488 = vadd.f32 %v356, %v433
      %v489 = vadd.f32 %v357, %v433
      %v490 = vadd.f32 %v358, %v433
      %v491 = vadd.f32 %v359, %v433
      %v492 = vadd.f32 %v360, %v433
      %v493 = vadd.f32 %v361, %v433
      %v494 = vadd.f32 %v362, %v433
      %v495 = vadd.f32 %v363, %v433
      %v496 = vadd.f32 %v364, %v433
      %v497 = vadd.f32 %v365, %v433
      %v498 = vadd.f32 %v366, %v433
      %v499 = vadd.f32 %v367, %v433
      %v500 = vadd.f32 %v368, %v433
      %v501 = vadd.f32 %v369, %v433
      %v502 = vadd.f32 %v370, %v433
      %v503 = vadd.f32 %v371, %v433
      %v504 = vadd.f32 %v372, %v433
      %v505 = vadd.f32 %v373, %v433
      %v506 = vadd.f32 %v374, %v433
      %v507 = vadd.f32 %v375, %v433
      %v508 = vadd.f32 %v376, %v433
      %v509 = vadd.f32 %v377, %v433
      %v510 = vadd.f32 %v378, %v433
      %v511 = vadd.f32 %v379, %v433
      %v512 = vadd.f32 %v380, %v433
      %v513 = vadd.f32 %v381, %v433
      %v514 = vadd.f32 %v382, %v433
      %v515 = vadd.f32 %v383, %v433
      %v516 = vadd.f32 %v384, %v433
      %v517 = vadd.f32 %v385, %v433
      %v518 = vadd.f32 %v386, %v433
      %v519 = vadd.f32 %v387, %v433
      %v520 = vadd.f32 %v388, %v433
      %v521 = vadd.f32 %v389, %v433
      %v522 = vadd.f32 %v390, %v433
      %v523 = vadd.f32 %v391, %v433
      %v524 = vadd.f32 %v392, %v433
      %v525 = vadd.f32 %v393, %v433
      %v526 = vadd.f32 %v394, %v433
      %v527 = vadd.f32 %v395, %v433
      %v528 = vadd.f32 %v396, %v433
      %v529 = vadd.f32 %v397, %v433
      %v530 = vadd.f32 %v398, %v433
      %v531 = vadd.f32 %v399, %v433
      %v532 = vadd.f32 %v400, %v433
      %v533 = vadd.f32 %v401, %v433
      %v534 = vadd.f32 %v402, %v433
      %v535 = vadd.f32 %v403, %v433
      %v536 = vadd.f32 %v404, %v433
      %v537 = vadd.f32 %v405, %v433
      %v538 = vadd.f32 %v406, %v433
      %v539 = vadd.f32 %v407, %v433
      %v540 = vadd.f32 %v408, %v433
      %v541 = vadd.f32 %v409, %v433
      %v542 = vadd.f32 %v410, %v433
      %v543 = vadd.f32 %v411, %v433
      %v544 = vadd.f32 %v412, %v433
      %v545 = vadd.f32 %v413, %v433
      %v546 = vadd.f32 %v414, %v433
      %v547 = vadd.f32 %v415, %v433
      %v548 = vadd.f32 %v416, %v433
      %v549 = vadd.f32 %v417, %v433
      %v550 = vadd.f32 %v418, %v433
      %v551 = vadd.f32 %v419, %v433
      %v552 = vadd.f32 %v420, %v433
      %v553 = vadd.f32 %v421, %v433
      %v554 = vadd.f32 %v422, %v433
      %v555 = vadd.f32 %v423, %v433
      %v556 = vadd.f32 %v424, %v433
      %v557 = vadd.f32 %v425, %v433
      %v558 = vadd.f32 %v426, %v433
      %v559 = vadd.f32 %v427, %v433
      %v560 = vadd.f32 %v428, %v433
      %v561 = vadd.f32 %v429, %v433
      %v562 = vadd.f32 %v430, %v433
      %v563 = vmax.f32 %v435, 0.0
      %v564 = vmax.f32 %v436, 0.0
      %v565 = vmax.f32 %v437, 0.0
      %v566 = vmax.f32 %v438, 0.0
      %v567 = vmax.f32 %v439, 0.0
      %v568 = vmax.f32 %v440, 0.0
      %v569 = vmax.f32 %v441, 0.0
      %v570 = vmax.f32 %v442, 0.0
      %v571 = vmax.f32 %v443, 0.0
      %v572 = vmax.f32 %v444, 0.0
      %v573 = vmax.f32 %v445, 0.0
      %v574 = vmax.f32 %v446, 0.0
      %v575 = vmax.f32 %v447, 0.0
      %v576 = vmax.f32 %v448, 0.0
      %v577 = vmax.f32 %v449, 0.0
      %v578 = vmax.f32 %v450, 0.0
      %v579 = vmax.f32 %v451, 0.0
      %v580 = vmax.f32 %v452, 0.0
      %v581 = vmax.f32 %v453, 0.0
      %v582 = vmax.f32 %v454, 0.0
      %v583 = vmax.f32 %v455, 0.0
      %v584 = vmax.f32 %v456, 0.0
      %v585 = vmax.f32 %v457, 0.0
      %v586 = vmax.f32 %v458, 0.0
      %v587 = vmax.f32 %v459, 0.0
      %v588 = vmax.f32 %v460, 0.0
      %v589 = vmax.f32 %v461, 0.0
      %v590 = vmax.f32 %v462, 0.0
      %v591 = vmax.f32 %v463, 0.0
      %v592 = vmax.f32 %v464, 0.0
      %v593 = vmax.f32 %v465, 0.0
      %v594 = vmax.f32 %v466, 0.0
      %v595 = vmax.f32 %v467, 0.0
      %v596 = vmax.f32 %v468, 0.0
      %v597 = vmax.f32 %v469, 0.0
      %v598 = vmax.f32 %v470, 0.0
      %v599 = vmax.f32 %v471, 0.0
      %v600 = vmax.f32 %v472, 0.0
      %v601 = vmax.f32 %v473, 0.0
      %v602 = vmax.f32 %v474, 0.0
      %v603 = vmax.f32 %v475, 0.0
      %v604 = vmax.f32 %v476, 0.0
      %v605 = vmax.f32 %v477, 0.0
      %v606 = vmax.f32 %v478, 0.0
      %v607 = vmax.f32 %v479, 0.0
      %v608 = vmax.f32 %v480, 0.0
      %v609 = vmax.f32 %v481, 0.0
      %v610 = vmax.f32 %v482, 0.0
      %v611 = vmax.f32 %v483, 0.0
      %v612 = vmax.f32 %v484, 0.0
      %v613 = vmax.f32 %v485, 0.0
      %v614 = vmax.f32 %v486, 0.0
      %v615 = vmax.f32 %v487, 0.0
      %v616 = vmax.f32 %v488, 0.0
      %v617 = vmax.f32 %v489, 0.0
      %v618 = vmax.f32 %v490, 0.0
      %v619 = vmax.f32 %v491, 0.0
      %v620 = vmax.f32 %v492, 0.0
      %v621 = vmax.f32 %v493, 0.0
      %v622 = vmax.f32 %v494, 0.0
      %v623 = vmax.f32 %v495, 0.0
      %v624 = vmax.f32 %v496, 0.0
      %v625 = vmax.f32 %v497, 0.0
      %v626 = vmax.f32 %v498, 0.0
      %v627 = vmax.f32 %v499, 0.0
      %v628 = vmax.f32 %v500, 0.0
      %v629 = vmax.f32 %v501, 0.0
      %v630 = vmax.f32 %v502, 0.0
      %v631 = vmax.f32 %v503, 0.0
      %v632 = vmax.f32 %v504, 0.0
      %v633 = vmax.f32 %v505, 0.0
      %v634 = vmax.f32 %v506, 0.0
      %v635 = vmax.f32 %v507, 0.0
      %v636 = vmax.f32 %v508, 0.0
      %v637 = vmax.f32 %v509, 0.0
      %v638 = vmax.f32 %v510, 0.0
      %v639 = vmax.f32 %v511, 0.0
      %v640 = vmax.f32 %v512, 0.0
      %v641 = vmax.f32 %v513, 0.0
      %v642 = vmax.f32 %v514, 0.0
      %v643 = vmax.f32 %v515, 0.0
      %v644 = vmax.f32 %v516, 0.0
      %v645 = vmax.f32 %v517, 0.0
      %v646 = vmax.f32 %v518, 0.0
      %v647 = vmax.f32 %v519, 0.0
      %v648 = vmax.f32 %v520, 0.0
      %v649 = vmax.f32 %v521, 0.0
      %v650 = vmax.f32 %v522, 0.0
      %v651 = vmax.f32 %v523, 0.0
      %v652 = vmax.f32 %v524, 0.0
      %v653 = vmax.f32 %v525, 0.0
      %v654 = vmax.f32 %v526, 0.0
      %v655 = vmax.f32 %v527, 0.0
      %v656 = vmax.f32 %v528, 0.0
      %v657 = vmax.f32 %v529, 0.0
      %v658 = vmax.f32 %v530, 0.0
      %v659 = vmax.f32 %v531, 0.0
      %v660 = vmax.f32 %v532, 0.0
      %v661 = vmax.f32 %v533, 0.0
      %v662 = vmax.f32 %v534, 0.0
      %v663 = vmax.f32 %v535, 0.0
      %v664 = vmax.f32 %v536, 0.0
      %v665 = vmax.f32 %v537, 0.0
      %v666 = vmax.f32 %v538, 0.0
      %v667 = vmax.f32 %v539, 0.0
      %v668 = vmax.f32 %v540, 0.0
      %v669 = vmax.f32 %v541, 0.0
      %v670 = vmax.f32 %v542, 0.0
      %v671 = vmax.f32 %v543, 0.0
      %v672 = vmax.f32 %v544, 0.0
      %v673 = vmax.f32 %v545, 0.0
      %v674 = vmax.f32 %v546, 0.0
      %v675 = vmax.f32 %v547, 0.0
      %v676 = vmax.f32 %v548, 0.0
      %v677 = vmax.f32 %v549, 0.0
      %v678 = vmax.f32 %v550, 0.0
      %v679 = vmax.f32 %v551, 0.0
      %v680 = vmax.f32 %v552, 0.0
      %v681 = vmax.f32 %v553, 0.0
      %v682 = vmax.f32 %v554, 0.0
      %v683 = vmax.f32 %v555, 0.0
      %v684 = vmax.f32 %v556, 0.0
      %v685 = vmax.f32 %v557, 0.0
      %v686 = vmax.f32 %v558, 0.0
      %v687 = vmax.f32 %v559, 0.0
      %v688 = vmax.f32 %v560, 0.0
      %v689 = vmax.f32 %v561, 0.0
      %v690 = vmax.f32 %v562, 0.0
      %v691 = vpack.c.bf16 %v564, %v563
      %v692 = vpack.c.bf16 %v566, %v565
      %v693 = vpack.c.bf16 %v568, %v567
      %v694 = vpack.c.bf16 %v570, %v569
      %v695 = vpack.c.bf16 %v572, %v571
      %v696 = vpack.c.bf16 %v574, %v573
      %v697 = vpack.c.bf16 %v576, %v575
      %v698 = vpack.c.bf16 %v578, %v577
      %v699 = vpack.c.bf16 %v580, %v579
      %v700 = vpack.c.bf16 %v582, %v581
      %v701 = vpack.c.bf16 %v584, %v583
      %v702 = vpack.c.bf16 %v586, %v585
      %v703 = vpack.c.bf16 %v588, %v587
      %v704 = vpack.c.bf16 %v590, %v589
      %v705 = vpack.c.bf16 %v592, %v591
      %v706 = vpack.c.bf16 %v594, %v593
      %v707 = vpack.c.bf16 %v596, %v595
      %v708 = vpack.c.bf16 %v598, %v597
      %v709 = vpack.c.bf16 %v600, %v599
      %v710 = vpack.c.bf16 %v602, %v601
      %v711 = vpack.c.bf16 %v604, %v603
      %v712 = vpack.c.bf16 %v606, %v605
      %v713 = vpack.c.bf16 %v608, %v607
      %v714 = vpack.c.bf16 %v610, %v609
      %v715 = vpack.c.bf16 %v612, %v611
      %v716 = vpack.c.bf16 %v614, %v613
      %v717 = vpack.c.bf16 %v616, %v615
      %v718 = vpack.c.bf16 %v618, %v617
      %v719 = vpack.c.bf16 %v620, %v619
      %v720 = vpack.c.bf16 %v622, %v621
      %v721 = vpack.c.bf16 %v624, %v623
      %v722 = vpack.c.bf16 %v626, %v625
      %v723 = vpack.c.bf16 %v628, %v627
      %v724 = vpack.c.bf16 %v630, %v629
      %v725 = vpack.c.bf16 %v632, %v631
      %v726 = vpack.c.bf16 %v634, %v633
      %v727 = vpack.c.bf16 %v636, %v635
      %v728 = vpack.c.bf16 %v638, %v637
      %v729 = vpack.c.bf16 %v640, %v639
      %v730 = vpack.c.bf16 %v642, %v641
      %v731 = vpack.c.bf16 %v644, %v643
      %v732 = vpack.c.bf16 %v646, %v645
      %v733 = vpack.c.bf16 %v648, %v647
      %v734 = vpack.c.bf16 %v650, %v649
      %v735 = vpack.c.bf16 %v652, %v651
      %v736 = vpack.c.bf16 %v654, %v653
      %v737 = vpack.c.bf16 %v656, %v655
      %v738 = vpack.c.bf16 %v658, %v657
      %v739 = vpack.c.bf16 %v660, %v659
      %v740 = vpack.c.bf16 %v662, %v661
      %v741 = vpack.c.bf16 %v664, %v663
      %v742 = vpack.c.bf16 %v666, %v665
      %v743 = vpack.c.bf16 %v668, %v667
      %v744 = vpack.c.bf16 %v670, %v669
      %v745 = vpack.c.bf16 %v672, %v671
      %v746 = vpack.c.bf16 %v674, %v673
      %v747 = vpack.c.bf16 %v676, %v675
      %v748 = vpack.c.bf16 %v678, %v677
      %v749 = vpack.c.bf16 %v680, %v679
      %v750 = vpack.c.bf16 %v682, %v681
      %v751 = vpack.c.bf16 %v684, %v683
      %v752 = vpack.c.bf16 %v686, %v685
      %v753 = vpack.c.bf16 %v688, %v687
      %v754 = vpack.c.bf16 %v690, %v689
      %v755 = vld [vmem:[%s1] sm:$0xf]
      %v756 = vld [vmem:[%s1 + $0x4] sm:$0xf]
      %v759 = vunpack.c.l.b16 %v755
      %v760 = vunpack.c.l.b16 %v756
      %v761 = vpack.c.b16 %v760, %v759
      %vm763 = vcmask 130048
      %v765 = vsel %vm763, %v691, 0
      %v768 = vsel %vm763, %v692, 0
      %v771 = vsel %vm763, %v693, 0
      %v774 = vsel %vm763, %v694, 0
      %v777 = vsel %vm763, %v695, 0
      %v780 = vsel %vm763, %v696, 0
      %v783 = vsel %vm763, %v697, 0
      %v786 = vsel %vm763, %v698, 0
      %v789 = vsel %vm763, %v699, 0
      %v792 = vsel %vm763, %v700, 0
      %v795 = vsel %vm763, %v701, 0
      %v798 = vsel %vm763, %v702, 0
      %v801 = vsel %vm763, %v703, 0
      %v804 = vsel %vm763, %v704, 0
      %v807 = vsel %vm763, %v705, 0
      %v810 = vsel %vm763, %v706, 0
      %v813 = vsel %vm763, %v707, 0
      %v816 = vsel %vm763, %v708, 0
      %v819 = vsel %vm763, %v709, 0
      %v822 = vsel %vm763, %v710, 0
      %v825 = vsel %vm763, %v711, 0
      %v828 = vsel %vm763, %v712, 0
      %v831 = vsel %vm763, %v713, 0
      %v834 = vsel %vm763, %v714, 0
      %v837 = vsel %vm763, %v715, 0
      %v840 = vsel %vm763, %v716, 0
      %v843 = vsel %vm763, %v717, 0
      %v846 = vsel %vm763, %v718, 0
      %v849 = vsel %vm763, %v719, 0
      %v852 = vsel %vm763, %v720, 0
      %v855 = vsel %vm763, %v721, 0
      %v858 = vsel %vm763, %v722, 0
      %v861 = vsel %vm763, %v723, 0
      %v864 = vsel %vm763, %v724, 0
      %v867 = vsel %vm763, %v725, 0
      %v870 = vsel %vm763, %v726, 0
      %v873 = vsel %vm763, %v727, 0
      %v876 = vsel %vm763, %v728, 0
      %v879 = vsel %vm763, %v729, 0
      %v882 = vsel %vm763, %v730, 0
      %v885 = vsel %vm763, %v731, 0
      %v888 = vsel %vm763, %v732, 0
      %v891 = vsel %vm763, %v733, 0
      %v894 = vsel %vm763, %v734, 0
      %v897 = vsel %vm763, %v735, 0
      %v900 = vsel %vm763, %v736, 0
      %v903 = vsel %vm763, %v737, 0
      %v906 = vsel %vm763, %v738, 0
      %v909 = vsel %vm763, %v739, 0
      %v912 = vsel %vm763, %v740, 0
      %v915 = vsel %vm763, %v741, 0
      %v918 = vsel %vm763, %v742, 0
      %v921 = vsel %vm763, %v743, 0
      %v924 = vsel %vm763, %v744, 0
      %v927 = vsel %vm763, %v745, 0
      %v930 = vsel %vm763, %v746, 0
      %v933 = vsel %vm763, %v747, 0
      %v936 = vsel %vm763, %v748, 0
      %v939 = vsel %vm763, %v749, 0
      %v942 = vsel %vm763, %v750, 0
      %v945 = vsel %vm763, %v751, 0
      %v948 = vsel %vm763, %v752, 0
      %v951 = vsel %vm763, %v753, 0
      %v954 = vsel %vm763, %v754, 0
      %956 = vmatpush.bf16.msra.mxu0 0
      %957 = vmatpush.bf16.msra.mxu0 0
      %958 = vmatpush.bf16.msra.mxu0 0
      %959 = vmatpush.bf16.msra.mxu0 0
      %960 = vmatpush.bf16.msra.mxu0 0
      %961 = vmatpush.bf16.msra.mxu0 0
      %962 = vmatpush.bf16.msra.mxu0 0
      %963 = vmatpush.bf16.msra.mxu0 %v761
      %964 = vmatmul.bf16.gmra.mxu0 %v765
      %v965 = vpop.f32.mrf.mxu0
      %v966 = vadd.f32 0.0, %v965
      %v967 = vpop.f32.mrf.mxu0
      %v968 = vadd.f32 0.0, %v967
      %969 = vmatmul.bf16.gmra.mxu0 %v768
      %v970 = vpop.f32.mrf.mxu0
      %v971 = vadd.f32 0.0, %v970
      %v972 = vpop.f32.mrf.mxu0
      %v973 = vadd.f32 0.0, %v972
      %974 = vmatmul.bf16.gmra.mxu0 %v771
      %v975 = vpop.f32.mrf.mxu0
      %v976 = vadd.f32 0.0, %v975
      %v977 = vpop.f32.mrf.mxu0
      %v978 = vadd.f32 0.0, %v977
      %979 = vmatmul.bf16.gmra.mxu0 %v774
      %v980 = vpop.f32.mrf.mxu0
      %v981 = vadd.f32 0.0, %v980
      %v982 = vpop.f32.mrf.mxu0
      %v983 = vadd.f32 0.0, %v982
      %984 = vmatmul.bf16.gmra.mxu0 %v777
      %v985 = vpop.f32.mrf.mxu0
      %v986 = vadd.f32 0.0, %v985
      %v987 = vpop.f32.mrf.mxu0
      %v988 = vadd.f32 0.0, %v987
      %989 = vmatmul.bf16.gmra.mxu0 %v780
      %v990 = vpop.f32.mrf.mxu0
      %v991 = vadd.f32 0.0, %v990
      %v992 = vpop.f32.mrf.mxu0
      %v993 = vadd.f32 0.0, %v992
      %994 = vmatmul.bf16.gmra.mxu0 %v783
      %v995 = vpop.f32.mrf.mxu0
      %v996 = vadd.f32 0.0, %v995
      %v997 = vpop.f32.mrf.mxu0
      %v998 = vadd.f32 0.0, %v997
      %999 = vmatmul.bf16.gmra.mxu0 %v786
      %v1000 = vpop.f32.mrf.mxu0
      %v1001 = vadd.f32 0.0, %v1000
      %v1002 = vpop.f32.mrf.mxu0
      %v1003 = vadd.f32 0.0, %v1002
      %1004 = vmatmul.bf16.gmra.mxu0 %v789
      %v1005 = vpop.f32.mrf.mxu0
      %v1006 = vadd.f32 0.0, %v1005
      %v1007 = vpop.f32.mrf.mxu0
      %v1008 = vadd.f32 0.0, %v1007
      %1009 = vmatmul.bf16.gmra.mxu0 %v792
      %v1010 = vpop.f32.mrf.mxu0
      %v1011 = vadd.f32 0.0, %v1010
      %v1012 = vpop.f32.mrf.mxu0
      %v1013 = vadd.f32 0.0, %v1012
      %1014 = vmatmul.bf16.gmra.mxu0 %v795
      %v1015 = vpop.f32.mrf.mxu0
      %v1016 = vadd.f32 0.0, %v1015
      %v1017 = vpop.f32.mrf.mxu0
      %v1018 = vadd.f32 0.0, %v1017
      %1019 = vmatmul.bf16.gmra.mxu0 %v798
      %v1020 = vpop.f32.mrf.mxu0
      %v1021 = vadd.f32 0.0, %v1020
      %v1022 = vpop.f32.mrf.mxu0
      %v1023 = vadd.f32 0.0, %v1022
      %1024 = vmatmul.bf16.gmra.mxu0 %v801
      %v1025 = vpop.f32.mrf.mxu0
      %v1026 = vadd.f32 0.0, %v1025
      %v1027 = vpop.f32.mrf.mxu0
      %v1028 = vadd.f32 0.0, %v1027
      %1029 = vmatmul.bf16.gmra.mxu0 %v804
      %v1030 = vpop.f32.mrf.mxu0
      %v1031 = vadd.f32 0.0, %v1030
      %v1032 = vpop.f32.mrf.mxu0
      %v1033 = vadd.f32 0.0, %v1032
      %1034 = vmatmul.bf16.gmra.mxu0 %v807
      %v1035 = vpop.f32.mrf.mxu0
      %v1036 = vadd.f32 0.0, %v1035
      %v1037 = vpop.f32.mrf.mxu0
      %v1038 = vadd.f32 0.0, %v1037
      %1039 = vmatmul.bf16.gmra.mxu0 %v810
      %v1040 = vpop.f32.mrf.mxu0
      %v1041 = vadd.f32 0.0, %v1040
      %v1042 = vpop.f32.mrf.mxu0
      %v1043 = vadd.f32 0.0, %v1042
      %1044 = vmatmul.bf16.gmra.mxu0 %v813
      %v1045 = vpop.f32.mrf.mxu0
      %v1046 = vadd.f32 0.0, %v1045
      %v1047 = vpop.f32.mrf.mxu0
      %v1048 = vadd.f32 0.0, %v1047
      %1049 = vmatmul.bf16.gmra.mxu0 %v816
      %v1050 = vpop.f32.mrf.mxu0
      %v1051 = vadd.f32 0.0, %v1050
      %v1052 = vpop.f32.mrf.mxu0
      %v1053 = vadd.f32 0.0, %v1052
      %1054 = vmatmul.bf16.gmra.mxu0 %v819
      %v1055 = vpop.f32.mrf.mxu0
      %v1056 = vadd.f32 0.0, %v1055
      %v1057 = vpop.f32.mrf.mxu0
      %v1058 = vadd.f32 0.0, %v1057
      %1059 = vmatmul.bf16.gmra.mxu0 %v822
      %v1060 = vpop.f32.mrf.mxu0
      %v1061 = vadd.f32 0.0, %v1060
      %v1062 = vpop.f32.mrf.mxu0
      %v1063 = vadd.f32 0.0, %v1062
      %1064 = vmatmul.bf16.gmra.mxu0 %v825
      %v1065 = vpop.f32.mrf.mxu0
      %v1066 = vadd.f32 0.0, %v1065
      %v1067 = vpop.f32.mrf.mxu0
      %v1068 = vadd.f32 0.0, %v1067
      %1069 = vmatmul.bf16.gmra.mxu0 %v828
      %v1070 = vpop.f32.mrf.mxu0
      %v1071 = vadd.f32 0.0, %v1070
      %v1072 = vpop.f32.mrf.mxu0
      %v1073 = vadd.f32 0.0, %v1072
      %1074 = vmatmul.bf16.gmra.mxu0 %v831
      %v1075 = vpop.f32.mrf.mxu0
      %v1076 = vadd.f32 0.0, %v1075
      %v1077 = vpop.f32.mrf.mxu0
      %v1078 = vadd.f32 0.0, %v1077
      %1079 = vmatmul.bf16.gmra.mxu0 %v834
      %v1080 = vpop.f32.mrf.mxu0
      %v1081 = vadd.f32 0.0, %v1080
      %v1082 = vpop.f32.mrf.mxu0
      %v1083 = vadd.f32 0.0, %v1082
      %1084 = vmatmul.bf16.gmra.mxu0 %v837
      %v1085 = vpop.f32.mrf.mxu0
      %v1086 = vadd.f32 0.0, %v1085
      %v1087 = vpop.f32.mrf.mxu0
      %v1088 = vadd.f32 0.0, %v1087
      %1089 = vmatmul.bf16.gmra.mxu0 %v840
      %v1090 = vpop.f32.mrf.mxu0
      %v1091 = vadd.f32 0.0, %v1090
      %v1092 = vpop.f32.mrf.mxu0
      %v1093 = vadd.f32 0.0, %v1092
      %1094 = vmatmul.bf16.gmra.mxu0 %v843
      %v1095 = vpop.f32.mrf.mxu0
      %v1096 = vadd.f32 0.0, %v1095
      %v1097 = vpop.f32.mrf.mxu0
      %v1098 = vadd.f32 0.0, %v1097
      %1099 = vmatmul.bf16.gmra.mxu0 %v846
      %v1100 = vpop.f32.mrf.mxu0
      %v1101 = vadd.f32 0.0, %v1100
      %v1102 = vpop.f32.mrf.mxu0
      %v1103 = vadd.f32 0.0, %v1102
      %1104 = vmatmul.bf16.gmra.mxu0 %v849
      %v1105 = vpop.f32.mrf.mxu0
      %v1106 = vadd.f32 0.0, %v1105
      %v1107 = vpop.f32.mrf.mxu0
      %v1108 = vadd.f32 0.0, %v1107
      %1109 = vmatmul.bf16.gmra.mxu0 %v852
      %v1110 = vpop.f32.mrf.mxu0
      %v1111 = vadd.f32 0.0, %v1110
      %v1112 = vpop.f32.mrf.mxu0
      %v1113 = vadd.f32 0.0, %v1112
      %1114 = vmatmul.bf16.gmra.mxu0 %v855
      %v1115 = vpop.f32.mrf.mxu0
      %v1116 = vadd.f32 0.0, %v1115
      %v1117 = vpop.f32.mrf.mxu0
      %v1118 = vadd.f32 0.0, %v1117
      %1119 = vmatmul.bf16.gmra.mxu0 %v858
      %v1120 = vpop.f32.mrf.mxu0
      %v1121 = vadd.f32 0.0, %v1120
      %v1122 = vpop.f32.mrf.mxu0
      %v1123 = vadd.f32 0.0, %v1122
      %1124 = vmatmul.bf16.gmra.mxu0 %v861
      %v1125 = vpop.f32.mrf.mxu0
      %v1126 = vadd.f32 0.0, %v1125
      %v1127 = vpop.f32.mrf.mxu0
      %v1128 = vadd.f32 0.0, %v1127
      %1129 = vmatmul.bf16.gmra.mxu0 %v864
      %v1130 = vpop.f32.mrf.mxu0
      %v1131 = vadd.f32 0.0, %v1130
      %v1132 = vpop.f32.mrf.mxu0
      %v1133 = vadd.f32 0.0, %v1132
      %1134 = vmatmul.bf16.gmra.mxu0 %v867
      %v1135 = vpop.f32.mrf.mxu0
      %v1136 = vadd.f32 0.0, %v1135
      %v1137 = vpop.f32.mrf.mxu0
      %v1138 = vadd.f32 0.0, %v1137
      %1139 = vmatmul.bf16.gmra.mxu0 %v870
      %v1140 = vpop.f32.mrf.mxu0
      %v1141 = vadd.f32 0.0, %v1140
      %v1142 = vpop.f32.mrf.mxu0
      %v1143 = vadd.f32 0.0, %v1142
      %1144 = vmatmul.bf16.gmra.mxu0 %v873
      %v1145 = vpop.f32.mrf.mxu0
      %v1146 = vadd.f32 0.0, %v1145
      %v1147 = vpop.f32.mrf.mxu0
      %v1148 = vadd.f32 0.0, %v1147
      %1149 = vmatmul.bf16.gmra.mxu0 %v876
      %v1150 = vpop.f32.mrf.mxu0
      %v1151 = vadd.f32 0.0, %v1150
      %v1152 = vpop.f32.mrf.mxu0
      %v1153 = vadd.f32 0.0, %v1152
      %1154 = vmatmul.bf16.gmra.mxu0 %v879
      %v1155 = vpop.f32.mrf.mxu0
      %v1156 = vadd.f32 0.0, %v1155
      %v1157 = vpop.f32.mrf.mxu0
      %v1158 = vadd.f32 0.0, %v1157
      %1159 = vmatmul.bf16.gmra.mxu0 %v882
      %v1160 = vpop.f32.mrf.mxu0
      %v1161 = vadd.f32 0.0, %v1160
      %v1162 = vpop.f32.mrf.mxu0
      %v1163 = vadd.f32 0.0, %v1162
      %1164 = vmatmul.bf16.gmra.mxu0 %v885
      %v1165 = vpop.f32.mrf.mxu0
      %v1166 = vadd.f32 0.0, %v1165
      %v1167 = vpop.f32.mrf.mxu0
      %v1168 = vadd.f32 0.0, %v1167
      %1169 = vmatmul.bf16.gmra.mxu0 %v888
      %v1170 = vpop.f32.mrf.mxu0
      %v1171 = vadd.f32 0.0, %v1170
      %v1172 = vpop.f32.mrf.mxu0
      %v1173 = vadd.f32 0.0, %v1172
      %1174 = vmatmul.bf16.gmra.mxu0 %v891
      %v1175 = vpop.f32.mrf.mxu0
      %v1176 = vadd.f32 0.0, %v1175
      %v1177 = vpop.f32.mrf.mxu0
      %v1178 = vadd.f32 0.0, %v1177
      %1179 = vmatmul.bf16.gmra.mxu0 %v894
      %v1180 = vpop.f32.mrf.mxu0
      %v1181 = vadd.f32 0.0, %v1180
      %v1182 = vpop.f32.mrf.mxu0
      %v1183 = vadd.f32 0.0, %v1182
      %1184 = vmatmul.bf16.gmra.mxu0 %v897
      %v1185 = vpop.f32.mrf.mxu0
      %v1186 = vadd.f32 0.0, %v1185
      %v1187 = vpop.f32.mrf.mxu0
      %v1188 = vadd.f32 0.0, %v1187
      %1189 = vmatmul.bf16.gmra.mxu0 %v900
      %v1190 = vpop.f32.mrf.mxu0
      %v1191 = vadd.f32 0.0, %v1190
      %v1192 = vpop.f32.mrf.mxu0
      %v1193 = vadd.f32 0.0, %v1192
      %1194 = vmatmul.bf16.gmra.mxu0 %v903
      %v1195 = vpop.f32.mrf.mxu0
      %v1196 = vadd.f32 0.0, %v1195
      %v1197 = vpop.f32.mrf.mxu0
      %v1198 = vadd.f32 0.0, %v1197
      %1199 = vmatmul.bf16.gmra.mxu0 %v906
      %v1200 = vpop.f32.mrf.mxu0
      %v1201 = vadd.f32 0.0, %v1200
      %v1202 = vpop.f32.mrf.mxu0
      %v1203 = vadd.f32 0.0, %v1202
      %1204 = vmatmul.bf16.gmra.mxu0 %v909
      %v1205 = vpop.f32.mrf.mxu0
      %v1206 = vadd.f32 0.0, %v1205
      %v1207 = vpop.f32.mrf.mxu0
      %v1208 = vadd.f32 0.0, %v1207
      %1209 = vmatmul.bf16.gmra.mxu0 %v912
      %v1210 = vpop.f32.mrf.mxu0
      %v1211 = vadd.f32 0.0, %v1210
      %v1212 = vpop.f32.mrf.mxu0
      %v1213 = vadd.f32 0.0, %v1212
      %1214 = vmatmul.bf16.gmra.mxu0 %v915
      %v1215 = vpop.f32.mrf.mxu0
      %v1216 = vadd.f32 0.0, %v1215
      %v1217 = vpop.f32.mrf.mxu0
      %v1218 = vadd.f32 0.0, %v1217
      %1219 = vmatmul.bf16.gmra.mxu0 %v918
      %v1220 = vpop.f32.mrf.mxu0
      %v1221 = vadd.f32 0.0, %v1220
      %v1222 = vpop.f32.mrf.mxu0
      %v1223 = vadd.f32 0.0, %v1222
      %1224 = vmatmul.bf16.gmra.mxu0 %v921
      %v1225 = vpop.f32.mrf.mxu0
      %v1226 = vadd.f32 0.0, %v1225
      %v1227 = vpop.f32.mrf.mxu0
      %v1228 = vadd.f32 0.0, %v1227
      %1229 = vmatmul.bf16.gmra.mxu0 %v924
      %v1230 = vpop.f32.mrf.mxu0
      %v1231 = vadd.f32 0.0, %v1230
      %v1232 = vpop.f32.mrf.mxu0
      %v1233 = vadd.f32 0.0, %v1232
      %1234 = vmatmul.bf16.gmra.mxu0 %v927
      %v1235 = vpop.f32.mrf.mxu0
      %v1236 = vadd.f32 0.0, %v1235
      %v1237 = vpop.f32.mrf.mxu0
      %v1238 = vadd.f32 0.0, %v1237
      %1239 = vmatmul.bf16.gmra.mxu0 %v930
      %v1240 = vpop.f32.mrf.mxu0
      %v1241 = vadd.f32 0.0, %v1240
      %v1242 = vpop.f32.mrf.mxu0
      %v1243 = vadd.f32 0.0, %v1242
      %1244 = vmatmul.bf16.gmra.mxu0 %v933
      %v1245 = vpop.f32.mrf.mxu0
      %v1246 = vadd.f32 0.0, %v1245
      %v1247 = vpop.f32.mrf.mxu0
      %v1248 = vadd.f32 0.0, %v1247
      %1249 = vmatmul.bf16.gmra.mxu0 %v936
      %v1250 = vpop.f32.mrf.mxu0
      %v1251 = vadd.f32 0.0, %v1250
      %v1252 = vpop.f32.mrf.mxu0
      %v1253 = vadd.f32 0.0, %v1252
      %1254 = vmatmul.bf16.gmra.mxu0 %v939
      %v1255 = vpop.f32.mrf.mxu0
      %v1256 = vadd.f32 0.0, %v1255
      %v1257 = vpop.f32.mrf.mxu0
      %v1258 = vadd.f32 0.0, %v1257
      %1259 = vmatmul.bf16.gmra.mxu0 %v942
      %v1260 = vpop.f32.mrf.mxu0
      %v1261 = vadd.f32 0.0, %v1260
      %v1262 = vpop.f32.mrf.mxu0
      %v1263 = vadd.f32 0.0, %v1262
      %1264 = vmatmul.bf16.gmra.mxu0 %v945
      %v1265 = vpop.f32.mrf.mxu0
      %v1266 = vadd.f32 0.0, %v1265
      %v1267 = vpop.f32.mrf.mxu0
      %v1268 = vadd.f32 0.0, %v1267
      %1269 = vmatmul.bf16.gmra.mxu0 %v948
      %v1270 = vpop.f32.mrf.mxu0
      %v1271 = vadd.f32 0.0, %v1270
      %v1272 = vpop.f32.mrf.mxu0
      %v1273 = vadd.f32 0.0, %v1272
      %1274 = vmatmul.bf16.gmra.mxu0 %v951
      %v1275 = vpop.f32.mrf.mxu0
      %v1276 = vadd.f32 0.0, %v1275
      %v1277 = vpop.f32.mrf.mxu0
      %v1278 = vadd.f32 0.0, %v1277
      %1279 = vmatmul.bf16.gmra.mxu0 %v954
      %v1280 = vpop.f32.mrf.mxu0
      %v1281 = vadd.f32 0.0, %v1280
      %v1282 = vpop.f32.mrf.mxu0
      %v1283 = vadd.f32 0.0, %v1282
      %1284 = vdwg.mxu0
      %1285 = vst [vmem:[%s172] sm:$0xff] %v966
      %1286 = vst [vmem:[%s172 + $0x8] sm:$0xff] %v968
      %1287 = vst [vmem:[%s172 + $0x10] sm:$0xff] %v971
      %1288 = vst [vmem:[%s172 + $0x18] sm:$0xff] %v973
      %1289 = vst [vmem:[%s172 + $0x20] sm:$0xff] %v976
      %1290 = vst [vmem:[%s172 + $0x28] sm:$0xff] %v978
      %1291 = vst [vmem:[%s172 + $0x30] sm:$0xff] %v981
      %1292 = vst [vmem:[%s172 + $0x38] sm:$0xff] %v983
      %1293 = vst [vmem:[%s172 + $0x40] sm:$0xff] %v986
      %1294 = vst [vmem:[%s172 + $0x48] sm:$0xff] %v988
      %1295 = vst [vmem:[%s172 + $0x50] sm:$0xff] %v991
      %1296 = vst [vmem:[%s172 + $0x58] sm:$0xff] %v993
      %1297 = vst [vmem:[%s172 + $0x60] sm:$0xff] %v996
      %1298 = vst [vmem:[%s172 + $0x68] sm:$0xff] %v998
      %1299 = vst [vmem:[%s172 + $0x70] sm:$0xff] %v1001
      %1300 = vst [vmem:[%s172 + $0x78] sm:$0xff] %v1003
      %1301 = vst [vmem:[%s172 + $0x80] sm:$0xff] %v1006
      %1302 = vst [vmem:[%s172 + $0x88] sm:$0xff] %v1008
      %1303 = vst [vmem:[%s172 + $0x90] sm:$0xff] %v1011
      %1304 = vst [vmem:[%s172 + $0x98] sm:$0xff] %v1013
      %1305 = vst [vmem:[%s172 + $0xa0] sm:$0xff] %v1016
      %1306 = vst [vmem:[%s172 + $0xa8] sm:$0xff] %v1018
      %1307 = vst [vmem:[%s172 + $0xb0] sm:$0xff] %v1021
      %1308 = vst [vmem:[%s172 + $0xb8] sm:$0xff] %v1023
      %1309 = vst [vmem:[%s172 + $0xc0] sm:$0xff] %v1026
      %1310 = vst [vmem:[%s172 + $0xc8] sm:$0xff] %v1028
      %1311 = vst [vmem:[%s172 + $0xd0] sm:$0xff] %v1031
      %1312 = vst [vmem:[%s172 + $0xd8] sm:$0xff] %v1033
      %1313 = vst [vmem:[%s172 + $0xe0] sm:$0xff] %v1036
      %1314 = vst [vmem:[%s172 + $0xe8] sm:$0xff] %v1038
      %1315 = vst [vmem:[%s172 + $0xf0] sm:$0xff] %v1041
      %1316 = vst [vmem:[%s172 + $0xf8] sm:$0xff] %v1043
      %1317 = vst [vmem:[%s172 + $0x100] sm:$0xff] %v1046
      %1318 = vst [vmem:[%s172 + $0x108] sm:$0xff] %v1048
      %1319 = vst [vmem:[%s172 + $0x110] sm:$0xff] %v1051
      %1320 = vst [vmem:[%s172 + $0x118] sm:$0xff] %v1053
      %1321 = vst [vmem:[%s172 + $0x120] sm:$0xff] %v1056
      %1322 = vst [vmem:[%s172 + $0x128] sm:$0xff] %v1058
      %1323 = vst [vmem:[%s172 + $0x130] sm:$0xff] %v1061
      %1324 = vst [vmem:[%s172 + $0x138] sm:$0xff] %v1063
      %1325 = vst [vmem:[%s172 + $0x140] sm:$0xff] %v1066
      %1326 = vst [vmem:[%s172 + $0x148] sm:$0xff] %v1068
      %1327 = vst [vmem:[%s172 + $0x150] sm:$0xff] %v1071
      %1328 = vst [vmem:[%s172 + $0x158] sm:$0xff] %v1073
      %1329 = vst [vmem:[%s172 + $0x160] sm:$0xff] %v1076
      %1330 = vst [vmem:[%s172 + $0x168] sm:$0xff] %v1078
      %1331 = vst [vmem:[%s172 + $0x170] sm:$0xff] %v1081
      %1332 = vst [vmem:[%s172 + $0x178] sm:$0xff] %v1083
      %1333 = vst [vmem:[%s172 + $0x180] sm:$0xff] %v1086
      %1334 = vst [vmem:[%s172 + $0x188] sm:$0xff] %v1088
      %1335 = vst [vmem:[%s172 + $0x190] sm:$0xff] %v1091
      %1336 = vst [vmem:[%s172 + $0x198] sm:$0xff] %v1093
      %1337 = vst [vmem:[%s172 + $0x1a0] sm:$0xff] %v1096
      %1338 = vst [vmem:[%s172 + $0x1a8] sm:$0xff] %v1098
      %1339 = vst [vmem:[%s172 + $0x1b0] sm:$0xff] %v1101
      %1340 = vst [vmem:[%s172 + $0x1b8] sm:$0xff] %v1103
      %1341 = vst [vmem:[%s172 + $0x1c0] sm:$0xff] %v1106
      %1342 = vst [vmem:[%s172 + $0x1c8] sm:$0xff] %v1108
      %1343 = vst [vmem:[%s172 + $0x1d0] sm:$0xff] %v1111
      %1344 = vst [vmem:[%s172 + $0x1d8] sm:$0xff] %v1113
      %1345 = vst [vmem:[%s172 + $0x1e0] sm:$0xff] %v1116
      %1346 = vst [vmem:[%s172 + $0x1e8] sm:$0xff] %v1118
      %1347 = vst [vmem:[%s172 + $0x1f0] sm:$0xff] %v1121
      %1348 = vst [vmem:[%s172 + $0x1f8] sm:$0xff] %v1123
      %1349 = vst [vmem:[%s172 + $0x200] sm:$0xff] %v1126
      %1350 = vst [vmem:[%s172 + $0x208] sm:$0xff] %v1128
      %1351 = vst [vmem:[%s172 + $0x210] sm:$0xff] %v1131
      %1352 = vst [vmem:[%s172 + $0x218] sm:$0xff] %v1133
      %1353 = vst [vmem:[%s172 + $0x220] sm:$0xff] %v1136
      %1354 = vst [vmem:[%s172 + $0x228] sm:$0xff] %v1138
      %1355 = vst [vmem:[%s172 + $0x230] sm:$0xff] %v1141
      %1356 = vst [vmem:[%s172 + $0x238] sm:$0xff] %v1143
      %1357 = vst [vmem:[%s172 + $0x240] sm:$0xff] %v1146
      %1358 = vst [vmem:[%s172 + $0x248] sm:$0xff] %v1148
      %1359 = vst [vmem:[%s172 + $0x250] sm:$0xff] %v1151
      %1360 = vst [vmem:[%s172 + $0x258] sm:$0xff] %v1153
      %1361 = vst [vmem:[%s172 + $0x260] sm:$0xff] %v1156
      %1362 = vst [vmem:[%s172 + $0x268] sm:$0xff] %v1158
      %1363 = vst [vmem:[%s172 + $0x270] sm:$0xff] %v1161
      %1364 = vst [vmem:[%s172 + $0x278] sm:$0xff] %v1163
      %1365 = vst [vmem:[%s172 + $0x280] sm:$0xff] %v1166
      %1366 = vst [vmem:[%s172 + $0x288] sm:$0xff] %v1168
      %1367 = vst [vmem:[%s172 + $0x290] sm:$0xff] %v1171
      %1368 = vst [vmem:[%s172 + $0x298] sm:$0xff] %v1173
      %1369 = vst [vmem:[%s172 + $0x2a0] sm:$0xff] %v1176
      %1370 = vst [vmem:[%s172 + $0x2a8] sm:$0xff] %v1178
      %1371 = vst [vmem:[%s172 + $0x2b0] sm:$0xff] %v1181
      %1372 = vst [vmem:[%s172 + $0x2b8] sm:$0xff] %v1183
      %1373 = vst [vmem:[%s172 + $0x2c0] sm:$0xff] %v1186
      %1374 = vst [vmem:[%s172 + $0x2c8] sm:$0xff] %v1188
      %1375 = vst [vmem:[%s172 + $0x2d0] sm:$0xff] %v1191
      %1376 = vst [vmem:[%s172 + $0x2d8] sm:$0xff] %v1193
      %1377 = vst [vmem:[%s172 + $0x2e0] sm:$0xff] %v1196
      %1378 = vst [vmem:[%s172 + $0x2e8] sm:$0xff] %v1198
      %1379 = vst [vmem:[%s172 + $0x2f0] sm:$0xff] %v1201
      %1380 = vst [vmem:[%s172 + $0x2f8] sm:$0xff] %v1203
      %1381 = vst [vmem:[%s172 + $0x300] sm:$0xff] %v1206
      %1382 = vst [vmem:[%s172 + $0x308] sm:$0xff] %v1208
      %1383 = vst [vmem:[%s172 + $0x310] sm:$0xff] %v1211
      %1384 = vst [vmem:[%s172 + $0x318] sm:$0xff] %v1213
      %1385 = vst [vmem:[%s172 + $0x320] sm:$0xff] %v1216
      %1386 = vst [vmem:[%s172 + $0x328] sm:$0xff] %v1218
      %1387 = vst [vmem:[%s172 + $0x330] sm:$0xff] %v1221
      %1388 = vst [vmem:[%s172 + $0x338] sm:$0xff] %v1223
      %1389 = vst [vmem:[%s172 + $0x340] sm:$0xff] %v1226
      %1390 = vst [vmem:[%s172 + $0x348] sm:$0xff] %v1228
      %1391 = vst [vmem:[%s172 + $0x350] sm:$0xff] %v1231
      %1392 = vst [vmem:[%s172 + $0x358] sm:$0xff] %v1233
      %1393 = vst [vmem:[%s172 + $0x360] sm:$0xff] %v1236
      %1394 = vst [vmem:[%s172 + $0x368] sm:$0xff] %v1238
      %1395 = vst [vmem:[%s172 + $0x370] sm:$0xff] %v1241
      %1396 = vst [vmem:[%s172 + $0x378] sm:$0xff] %v1243
      %1397 = vst [vmem:[%s172 + $0x380] sm:$0xff] %v1246
      %1398 = vst [vmem:[%s172 + $0x388] sm:$0xff] %v1248
      %1399 = vst [vmem:[%s172 + $0x390] sm:$0xff] %v1251
      %1400 = vst [vmem:[%s172 + $0x398] sm:$0xff] %v1253
      %1401 = vst [vmem:[%s172 + $0x3a0] sm:$0xff] %v1256
      %1402 = vst [vmem:[%s172 + $0x3a8] sm:$0xff] %v1258
      %1403 = vst [vmem:[%s172 + $0x3b0] sm:$0xff] %v1261
      %1404 = vst [vmem:[%s172 + $0x3b8] sm:$0xff] %v1263
      %1405 = vst [vmem:[%s172 + $0x3c0] sm:$0xff] %v1266
      %1406 = vst [vmem:[%s172 + $0x3c8] sm:$0xff] %v1268
      %1407 = vst [vmem:[%s172 + $0x3d0] sm:$0xff] %v1271
      %1408 = vst [vmem:[%s172 + $0x3d8] sm:$0xff] %v1273
      %1409 = vst [vmem:[%s172 + $0x3e0] sm:$0xff] %v1276
      %1410 = vst [vmem:[%s172 + $0x3e8] sm:$0xff] %v1278
      %1411 = vst [vmem:[%s172 + $0x3f0] sm:$0xff] %v1281
      %1412 = vst [vmem:[%s172 + $0x3f8] sm:$0xff] %v1283
      %s1413 = smul.u32 128, %s14
      %p1414 = scmp.lt.s32.totalorder %s1413, 255
      %s1415 = scalar_select %p1414, %s1413, 255
      %s1416 = smul.addr %s1415, 8
      %s1417 = scalar_lea.vmem %s3, %s1416
      // Predicated region
      $region33: #{net_generator_forward.10} parent=31 // pred_check
        %p1418 = pneg %p100
      $region34: #{net_generator_forward.10} parent=31 // pred_check_branch
        %1420 = sbr.rel (%p1418) target = $region36
      $region35: #{net_generator_forward.10} parent=31 // pred_region
        %s1421 = smul.u32 128, %s14
      $region36: #{net_generator_forward.10} parent=31 // pred_fallthru
        _
    $region32: #{net_generator_forward.10} parent=5 // pred_fallthru
      _
    %p1422 = scmp.le.s32.totalorder 2, %s9
    // Predicated region
    $region37: #{net_generator_forward.10} parent=5 // pred_check
      %p1423 = pneg %p1422
    $region38: #{net_generator_forward.10} parent=5 // pred_check_branch
      %1425 = sbr.rel (%p1423) target = $region40
    $region39: #{net_generator_forward.10} parent=5 // pred_region
      %s1426 = ssub.s32 %s9, 2
      // Predicated region
      $region41: #{net_generator_forward.10} parent=39 // pred_check
        %p1427 = pneg %p106
      $region42: #{net_generator_forward.10} parent=39 // pred_check_branch
        %1429 = sbr.rel (%p1427) target = $region44
      $region43: #{net_generator_forward.10} parent=39 // pred_region
        %s1430 = smul.u32 128, %s15
        %p1431 = scmp.lt.s32.totalorder %s1430, 255
        %s1432 = scalar_select %p1431, %s1430, 255
        %s1433 = smul.addr %s1432, 8
        %s1434 = scalar_lea.vmem %s3, %s1433
      $region44: #{net_generator_forward.10} parent=39 // pred_fallthru
        _
    $region40: #{net_generator_forward.10} parent=5 // pred_fallthru
      _
  $region6: #{net_generator_forward.10} parent=0 // loop_footer
    %s13 = sadd.s32 1, %s9
  $region7: #{net_generator_forward.10} parent=0 // loop_footer_branch
    %8 = sbr.rel target = $region3
  $region8: #{net_generator_forward.10} parent=0 // loop_exit
    _

// kernel: net_generator_forward.11
$region0: #{net_generator_forward.11}
  #allocation0 [shape = 'u32[]', space=smem, size = 0x4, offset = 0x4, fixed_abs, tag = 'smem constant byte address 0x4 - core index']
  #allocation1 [shape = 'u32[72,128]{1,0:T(1,128)}', space=vmem, size = 0x9000, scoped, tag = 'internal scratch']
  %s0 = inlined_call_operand.vmem [shape: f32[2,27648], index: 0, kind: input, shape index: {}]
  %s1 = inlined_call_operand.vmem [shape: f32[2,27648], index: 1, kind: output, shape index: {}]
  %s2 = sld [smem:[#allocation0]]
  $region14: #{net_generator_forward.11} parent=0
    _
  %s4 = ssub.s32 1, %s2
  %s5 = scalar_select 0, %s4, %s2
  // Predicated region
  $region2: #{net_generator_forward.11} parent=0 // pred_check
    _
  $region3: #{net_generator_forward.11} parent=0 // pred_check_branch
    %7 = sbr.rel (0) target = $region5
  $region4: #{net_generator_forward.11} parent=0 // pred_region
    _
  $region5: #{net_generator_forward.11} parent=0 // pred_fallthru
    _
  %v8 = vld [vmem:[%s0] sm:$0xff]
  %v9 = vld [vmem:[%s0 + $0x8] sm:$0xff]
  %v10 = vld [vmem:[%s0 + $0x10] sm:$0xff]
  %v11 = vld [vmem:[%s0 + $0x18] sm:$0xff]
  %v12 = vld [vmem:[%s0 + $0x20] sm:$0xff]
  %v13 = vld [vmem:[%s0 + $0x28] sm:$0xff]
  %v14 = vld [vmem:[%s0 + $0x30] sm:$0xff]
  %v15 = vld [vmem:[%s0 + $0x38] sm:$0xff]
  %v16 = vld [vmem:[%s0 + $0x40] sm:$0xff]
  %v17 = vld [vmem:[%s0 + $0x48] sm:$0xff]
  %v18 = vld [vmem:[%s0 + $0x50] sm:$0xff]
  %v19 = vld [vmem:[%s0 + $0x58] sm:$0xff]
  %v20 = vld [vmem:[%s0 + $0x60] sm:$0xff]
  %v21 = vld [vmem:[%s0 + $0x68] sm:$0xff]
  %v22 = vld [vmem:[%s0 + $0x70] sm:$0xff]
  %v23 = vld [vmem:[%s0 + $0x78] sm:$0xff]
  %v24 = vld [vmem:[%s0 + $0x80] sm:$0xff]
  %v25 = vld [vmem:[%s0 + $0x88] sm:$0xff]
  %v26 = vld [vmem:[%s0 + $0x90] sm:$0xff]
  %v27 = vld [vmem:[%s0 + $0x98] sm:$0xff]
  %v28 = vld [vmem:[%s0 + $0xa0] sm:$0xff]
  %v29 = vld [vmem:[%s0 + $0xa8] sm:$0xff]
  %v30 = vld [vmem:[%s0 + $0xb0] sm:$0xff]
  %v31 = vld [vmem:[%s0 + $0xb8] sm:$0xff]
  %v32 = vld [vmem:[%s0 + $0xc0] sm:$0xff]
  %v33 = vld [vmem:[%s0 + $0xc8] sm:$0xff]
  %v34 = vld [vmem:[%s0 + $0xd0] sm:$0xff]
  %v35 = vld [vmem:[%s0 + $0xd8] sm:$0xff]
  %v36 = vld [vmem:[%s0 + $0xe0] sm:$0xff]
  %v37 = vld [vmem:[%s0 + $0xe8] sm:$0xff]
  %v38 = vld [vmem:[%s0 + $0xf0] sm:$0xff]
  %v39 = vld [vmem:[%s0 + $0xf8] sm:$0xff]
  %v40 = vld [vmem:[%s0 + $0x100] sm:$0xff]
  %v41 = vld [vmem:[%s0 + $0x108] sm:$0xff]
  %v42 = vld [vmem:[%s0 + $0x110] sm:$0xff]
  %v43 = vld [vmem:[%s0 + $0x118] sm:$0xff]
  %v44 = vld [vmem:[%s0 + $0x120] sm:$0xff]
  %v45 = vld [vmem:[%s0 + $0x128] sm:$0xff]
  %v46 = vld [vmem:[%s0 + $0x130] sm:$0xff]
  %v47 = vld [vmem:[%s0 + $0x138] sm:$0xff]
  %v48 = vld [vmem:[%s0 + $0x140] sm:$0xff]
  %v49 = vld [vmem:[%s0 + $0x148] sm:$0xff]
  %v50 = vld [vmem:[%s0 + $0x150] sm:$0xff]
  %v51 = vld [vmem:[%s0 + $0x158] sm:$0xff]
  %v52 = vld [vmem:[%s0 + $0x160] sm:$0xff]
  %v53 = vld [vmem:[%s0 + $0x168] sm:$0xff]
  %v54 = vld [vmem:[%s0 + $0x170] sm:$0xff]
  %v55 = vld [vmem:[%s0 + $0x178] sm:$0xff]
  %v56 = vld [vmem:[%s0 + $0x180] sm:$0xff]
  %v57 = vld [vmem:[%s0 + $0x188] sm:$0xff]
  %v58 = vld [vmem:[%s0 + $0x190] sm:$0xff]
  %v59 = vld [vmem:[%s0 + $0x198] sm:$0xff]
  %v60 = vld [vmem:[%s0 + $0x1a0] sm:$0xff]
  %v61 = vld [vmem:[%s0 + $0x1a8] sm:$0xff]
  %v62 = vtanh.pop %v8
  %v63 = vtanh.pop %v9
  %v64 = vtanh.pop %v10
  %v65 = vtanh.pop %v11
  %v66 = vtanh.pop %v12
  %v67 = vtanh.pop %v13
  %v68 = vtanh.pop %v14
  %v69 = vtanh.pop %v15
  %v70 = vtanh.pop %v16
  %v71 = vtanh.pop %v17
  %v72 = vtanh.pop %v18
  %v73 = vtanh.pop %v19
  %v74 = vtanh.pop %v20
  %v75 = vtanh.pop %v21
  %v76 = vtanh.pop %v22
  %v77 = vtanh.pop %v23
  %v78 = vtanh.pop %v24
  %v79 = vtanh.pop %v25
  %v80 = vtanh.pop %v26
  %v81 = vtanh.pop %v27
  %v82 = vtanh.pop %v28
  %v83 = vtanh.pop %v29
  %v84 = vtanh.pop %v30
  %v85 = vtanh.pop %v31
  %v86 = vtanh.pop %v32
  %v87 = vtanh.pop %v33
  %v88 = vtanh.pop %v34
  %v89 = vtanh.pop %v35
  %v90 = vtanh.pop %v36
  %v91 = vtanh.pop %v37
  %v92 = vtanh.pop %v38
  %v93 = vtanh.pop %v39
  %v94 = vtanh.pop %v40
  %v95 = vtanh.pop %v41
  %v96 = vtanh.pop %v42
  %v97 = vtanh.pop %v43
  %v98 = vtanh.pop %v44
  %v99 = vtanh.pop %v45
  %v100 = vtanh.pop %v46
  %v101 = vtanh.pop %v47
  %v102 = vtanh.pop %v48
  %v103 = vtanh.pop %v49
  %v104 = vtanh.pop %v50
  %v105 = vtanh.pop %v51
  %v106 = vtanh.pop %v52
  %v107 = vtanh.pop %v53
  %v108 = vtanh.pop %v54
  %v109 = vtanh.pop %v55
  %v110 = vtanh.pop %v56
  %v111 = vtanh.pop %v57
  %v112 = vtanh.pop %v58
  %v113 = vtanh.pop %v59
  %v114 = vtanh.pop %v60
  %v115 = vtanh.pop %v61
  %116 = vst [vmem:[%s1] sm:$0xff] %v62
  %117 = vst [vmem:[%s1 + $0x8] sm:$0xff] %v63
  %118 = vst [vmem:[%s1 + $0x10] sm:$0xff] %v64
  %119 = vst [vmem:[%s1 + $0x18] sm:$0xff] %v65
  %120 = vst [vmem:[%s1 + $0x20] sm:$0xff] %v66
  %121 = vst [vmem:[%s1 + $0x28] sm:$0xff] %v67
  %122 = vst [vmem:[%s1 + $0x30] sm:$0xff] %v68
  %123 = vst [vmem:[%s1 + $0x38] sm:$0xff] %v69
  %124 = vst [vmem:[%s1 + $0x40] sm:$0xff] %v70
  %125 = vst [vmem:[%s1 + $0x48] sm:$0xff] %v71
  %126 = vst [vmem:[%s1 + $0x50] sm:$0xff] %v72
  %127 = vst [vmem:[%s1 + $0x58] sm:$0xff] %v73
  %128 = vst [vmem:[%s1 + $0x60] sm:$0xff] %v74
  %129 = vst [vmem:[%s1 + $0x68] sm:$0xff] %v75
  %130 = vst [vmem:[%s1 + $0x70] sm:$0xff] %v76
  %131 = vst [vmem:[%s1 + $0x78] sm:$0xff] %v77
  %132 = vst [vmem:[%s1 + $0x80] sm:$0xff] %v78
  %133 = vst [vmem:[%s1 + $0x88] sm:$0xff] %v79
  %134 = vst [vmem:[%s1 + $0x90] sm:$0xff] %v80
  %135 = vst [vmem:[%s1 + $0x98] sm:$0xff] %v81
  %136 = vst [vmem:[%s1 + $0xa0] sm:$0xff] %v82
  %137 = vst [vmem:[%s1 + $0xa8] sm:$0xff] %v83
  %138 = vst [vmem:[%s1 + $0xb0] sm:$0xff] %v84
  %139 = vst [vmem:[%s1 + $0xb8] sm:$0xff] %v85
  %140 = vst [vmem:[%s1 + $0xc0] sm:$0xff] %v86
  %141 = vst [vmem:[%s1 + $0xc8] sm:$0xff] %v87
  %142 = vst [vmem:[%s1 + $0xd0] sm:$0xff] %v88
  %143 = vst [vmem:[%s1 + $0xd8] sm:$0xff] %v89
  %144 = vst [vmem:[%s1 + $0xe0] sm:$0xff] %v90
  %145 = vst [vmem:[%s1 + $0xe8] sm:$0xff] %v91
  %146 = vst [vmem:[%s1 + $0xf0] sm:$0xff] %v92
  %147 = vst [vmem:[%s1 + $0xf8] sm:$0xff] %v93
  %148 = vst [vmem:[%s1 + $0x100] sm:$0xff] %v94
  %149 = vst [vmem:[%s1 + $0x108] sm:$0xff] %v95
  %150 = vst [vmem:[%s1 + $0x110] sm:$0xff] %v96
  %151 = vst [vmem:[%s1 + $0x118] sm:$0xff] %v97
  %152 = vst [vmem:[%s1 + $0x120] sm:$0xff] %v98
  %153 = vst [vmem:[%s1 + $0x128] sm:$0xff] %v99
  %154 = vst [vmem:[%s1 + $0x130] sm:$0xff] %v100
  %155 = vst [vmem:[%s1 + $0x138] sm:$0xff] %v101
  %156 = vst [vmem:[%s1 + $0x140] sm:$0xff] %v102
  %157 = vst [vmem:[%s1 + $0x148] sm:$0xff] %v103
  %158 = vst [vmem:[%s1 + $0x150] sm:$0xff] %v104
  %159 = vst [vmem:[%s1 + $0x158] sm:$0xff] %v105
  %160 = vst [vmem:[%s1 + $0x160] sm:$0xff] %v106
  %161 = vst [vmem:[%s1 + $0x168] sm:$0xff] %v107
  %162 = vst [vmem:[%s1 + $0x170] sm:$0xff] %v108
  %163 = vst [vmem:[%s1 + $0x178] sm:$0xff] %v109
  %164 = vst [vmem:[%s1 + $0x180] sm:$0xff] %v110
  %165 = vst [vmem:[%s1 + $0x188] sm:$0xff] %v111
  %166 = vst [vmem:[%s1 + $0x190] sm:$0xff] %v112
  %167 = vst [vmem:[%s1 + $0x198] sm:$0xff] %v113
  %168 = vst [vmem:[%s1 + $0x1a0] sm:$0xff] %v114
  %169 = vst [vmem:[%s1 + $0x1a8] sm:$0xff] %v115
  // Predicated region
  $region6: #{net_generator_forward.11} parent=0 // pred_check
    _
  $region7: #{net_generator_forward.11} parent=0 // pred_check_branch
    %171 = sbr.rel (0) target = $region9
  $region8: #{net_generator_forward.11} parent=0 // pred_region
    _
  $region9: #{net_generator_forward.11} parent=0 // pred_fallthru
    _
  // Predicated region
  $region10: #{net_generator_forward.11} parent=0 // pred_check
    _
  $region11: #{net_generator_forward.11} parent=0 // pred_check_branch
    %173 = sbr.rel (0) target = $region13
  $region12: #{net_generator_forward.11} parent=0 // pred_region
    _
  $region13: #{net_generator_forward.11} parent=0 // pred_fallthru
    _

</llo_original>
